<compile_context>
chip_gen: v6e
topology: v6e:2x2x1
jax: 0.10.0
libtpu: 0.0.40
codegen_flags: <defaults>
</compile_context>

<pallas_src>
import jax
import jax.numpy as jnp
from jax.experimental import pallas as pl
from jax.experimental.pallas import tpu as pltpu

N_IN = 128
H1 = 1024
H1_CHUNK = 256           # layer-1 columns processed per fused chunk
H2 = 256
N_CLASSES = 10
OUT_PAD = 128            # lane-dense padded logits width
BN_EPS = 1e-5


def label_predictor_kernel(x_ref,
                           w1_ref, b1_ref,
                           w2_ref, b2_ref,
                           w3_ref, b3_ref,
                           o_ref,
                           h2_acc):
    # x_ref : [TB, 128]   bf16
    # w1_ref: [128, 1024] bf16 (BN1 scale folded), b1_ref: [1, 1024] f32 shift
    # w2_ref: [1024, 256] bf16 (BN2 scale folded), b2_ref: [1, 256]  f32 shift
    # w3_ref: [256, 128]  bf16 (logits, padded),   b3_ref: [1, 128]  f32
    # o_ref : [TB, 128]   bf16 padded logits
    # h2_acc: [TB, 256]   f32 VMEM scratch (layer-2 pre-activation accumulator)
    x = x_ref[...]

    # Fused Layer1 -> Layer2: chunk H1 so the full [TB,1024] f32 h1 never
    # exists.  The loop is fully unrolled at trace time (4 iterations); every
    # slice start is a static multiple of 256, so the ref slices are free
    # lane/sublane-aligned views, and committing each partial product to the
    # scratch ref bounds the live range of each chunk's intermediates.
    for c in range(H1 // H1_CHUNK):
        s0 = c * H1_CHUNK
        h1_c = jnp.dot(x, w1_ref[:, s0:s0 + H1_CHUNK],
                       preferred_element_type=jnp.float32)
        h1_c = jnp.maximum(h1_c + b1_ref[:, s0:s0 + H1_CHUNK], 0.0)
        partial = jnp.dot(h1_c.astype(jnp.bfloat16),
                          w2_ref[s0:s0 + H1_CHUNK, :],
                          preferred_element_type=jnp.float32)
        if c == 0:
            h2_acc[...] = partial
        else:
            h2_acc[...] = h2_acc[...] + partial

    # BN2 shift + ReLU, then the (padded) logits matmul.
    h2 = jnp.maximum(h2_acc[...] + b2_ref[...], 0.0)
    out = jnp.dot(h2.astype(jnp.bfloat16), w3_ref[...],
                  preferred_element_type=jnp.float32)
    # Bias add in f32; store lane-dense logits in bf16 (halves output traffic).
    o_ref[...] = (out + b3_ref[...]).astype(o_ref.dtype)


def label_predictor_forward(x, params, *, tile_b=512):
    """x: [B, 128] float32.  Returns [B, n_classes] bf16 logits."""
    B, F = x.shape
    assert F == N_IN

    # Batch tiling: keep a multiple of 8 sublanes, clamp to the (padded)
    # batch, and when the whole batch would fit in one tile split it in two
    # so the "parallel" grid axis has >= 2 steps (keeps both v7x TensorCores
    # busy; negligible cost elsewhere).
    b_min = ((B + 7) // 8) * 8
    tile_b = max(8, ((min(tile_b, b_min) + 7) // 8) * 8)
    if tile_b >= b_min and b_min >= 16:
        tile_b = ((b_min // 2 + 7) // 8) * 8
    b_pad = pl.cdiv(B, tile_b) * tile_b
    if b_pad != B:
        x = jnp.pad(x, ((0, b_pad - B), (0, 0)))
    x = x.astype(jnp.bfloat16)

    grid = (b_pad // tile_b,)

    weight_bytes = 2 * (N_IN * H1 + H1 * H2 + H2 * OUT_PAD) \
        + 4 * (H1 + H2 + OUT_PAD)
    cost = pl.CostEstimate(
        flops=2 * b_pad * (N_IN * H1 + H1 * H2 + H2 * OUT_PAD),
        transcendentals=0,
        bytes_accessed=weight_bytes + b_pad * (N_IN * 2 + OUT_PAD * 2),
    )

    def build(weight_mode):
        def wspec(shape):
            if weight_mode is None:
                return pl.BlockSpec(shape, lambda i: (0, 0))
            return pl.BlockSpec(shape, lambda i: (0, 0),
                                pipeline_mode=weight_mode)

        return pl.pallas_call(
            label_predictor_kernel,
            out_shape=jax.ShapeDtypeStruct((b_pad, OUT_PAD), jnp.bfloat16),
            grid_spec=pltpu.PrefetchScalarGridSpec(
                num_scalar_prefetch=0,
                grid=grid,
                in_specs=[
                    pl.BlockSpec((tile_b, N_IN), lambda i: (i, 0)),  # x tile
                    wspec((N_IN, H1)),      # w1 (BN1 scale folded, bf16)
                    wspec((1, H1)),         # shift1 (f32)
                    wspec((H1, H2)),        # w2 (BN2 scale folded, bf16)
                    wspec((1, H2)),         # shift2 (f32)
                    wspec((H2, OUT_PAD)),   # w3 padded (bf16)
                    wspec((1, OUT_PAD)),    # bias3 padded (f32)
                ],
                out_specs=pl.BlockSpec((tile_b, OUT_PAD), lambda i: (i, 0)),
                scratch_shapes=[pltpu.VMEM((tile_b, H2), jnp.float32)],
            ),
            compiler_params=pltpu.CompilerParams(
                dimension_semantics=("parallel",)),
            cost_estimate=cost,
        )

    args = (x,
            params["w1"], params["b1"],
            params["w2"], params["b2"],
            params["w3"], params["b3"])

    # Weights never change across grid steps -> single-buffer them to save
    # VMEM; fall back to default buffering if pipeline_mode is rejected.
    try:
        out = build(pl.Buffered(1))(*args)
    except Exception:
        out = build(None)(*args)

    return out[:B, :N_CLASSES]


def make_params(key):
    """Deterministic synthetic parameters with PyTorch-equivalent shapes.

    Returns (fused_params, ref_params):
      fused : BN scale folded into weight columns (bf16), per-feature shift
              (f32), logits weight/bias padded to 128 lanes.
      ref   : unfused f32 masters for the pure-JAX reference.
    """
    ks = jax.random.split(key, 16)

    def dense(k, fan_in, fan_out):
        bound = 1.0 / jnp.sqrt(fan_in)
        return jax.random.uniform(k, (fan_in, fan_out), jnp.float32,
                                  -bound, bound)

    w1 = dense(ks[0], N_IN, H1)
    b1 = jax.random.uniform(ks[1], (H1,), jnp.float32, -0.1, 0.1)
    w2 = dense(ks[2], H1, H2)
    b2 = jax.random.uniform(ks[3], (H2,), jnp.float32, -0.1, 0.1)
    w3 = dense(ks[4], H2, N_CLASSES)
    b3 = jax.random.uniform(ks[5], (N_CLASSES,), jnp.float32, -0.1, 0.1)

    def bn(kg, kb, km, kv, n):
        gamma = 1.0 + 0.05 * jax.random.normal(kg, (n,), jnp.float32)
        beta = 0.05 * jax.random.normal(kb, (n,), jnp.float32)
        mean = 0.05 * jax.random.normal(km, (n,), jnp.float32)
        var = jnp.abs(1.0 + 0.05 * jax.random.normal(kv, (n,), jnp.float32))
        return gamma, beta, mean, var

    g1, be1, m1, v1 = bn(ks[6], ks[7], ks[8], ks[9], H1)
    g2, be2, m2, v2 = bn(ks[10], ks[11], ks[12], ks[13], H2)

    # Fold:  BN(x@W + b) = x@(W*scale) + (b*scale + beta - mean*scale)
    def fold(w, b_lin, gamma, beta, mean, var):
        scale = gamma / jnp.sqrt(var + BN_EPS)
        w_fused = w * scale[None, :]
        shift = beta - mean * scale + b_lin * scale
        return w_fused, shift.reshape(1, -1)

    w1f, sh1 = fold(w1, b1, g1, be1, m1, v1)
    w2f, sh2 = fold(w2, b2, g2, be2, m2, v2)

    # Pad logits layer 10 -> 128 lanes (zero columns).
    w3p = jnp.zeros((H2, OUT_PAD), jnp.float32).at[:, :N_CLASSES].set(w3)
    b3p = jnp.zeros((1, OUT_PAD), jnp.float32).at[0, :N_CLASSES].set(b3)

    fused = {
        "w1": w1f.astype(jnp.bfloat16), "b1": sh1,
        "w2": w2f.astype(jnp.bfloat16), "b2": sh2,
        "w3": w3p.astype(jnp.bfloat16), "b3": b3p,
    }
    ref = {
        "w1": w1f, "b1": sh1,
        "w2": w2f, "b2": sh2,
        "w3": w3, "b3": b3.reshape(1, -1),
    }
    return fused, ref


def reference_forward(x, ref):
    h1 = jnp.maximum(x @ ref["w1"] + ref["b1"], 0.0)
    h2 = jnp.maximum(h1 @ ref["w2"] + ref["b2"], 0.0)
    return h2 @ ref["w3"] + ref["b3"]


if __name__ == "__main__":
    key = jax.random.PRNGKey(0)
    kx, kp = jax.random.split(key)

    B = 16  # small batch; tile clamps to 8 rows -> 2 grid steps
    x = jax.random.normal(kx, (B, N_IN), jnp.float32)
    fused, ref_params = make_params(kp)

    out = label_predictor_forward(x, fused, tile_b=512)
    out = jax.block_until_ready(out)

    ref = reference_forward(x, ref_params)
    assert out.shape == (B, N_CLASSES)
    # bf16 matmuls w/ f32 accumulation + bf16 logits vs f32 reference.
    err = float(jnp.max(jnp.abs(out.astype(jnp.float32) - ref)))
    assert err < 5e-2, err

    print("KERNEL_OK")
</pallas_src>

<mosaic_0001>
module attributes {stable_mosaic.version = 11 : i64} {
  func.func @label_predictor_kernel(%arg0: i32, %arg1: memref<8x128xbf16, #tpu.memory_space<vmem>>, %arg2: memref<128x1024xbf16, #tpu.memory_space<vmem>>, %arg3: memref<1x1024xf32, #tpu.memory_space<vmem>>, %arg4: memref<1024x256xbf16, #tpu.memory_space<vmem>>, %arg5: memref<1x256xf32, #tpu.memory_space<vmem>>, %arg6: memref<256x128xbf16, #tpu.memory_space<vmem>>, %arg7: memref<1x128xf32, #tpu.memory_space<vmem>>, %arg8: memref<8x128xbf16, #tpu.memory_space<vmem>>, %arg9: memref<8x256xf32, #tpu.memory_space<vmem>>) attributes {dimension_semantics = [#tpu.dimension_semantics<parallel>], iteration_bounds = array<i64: 2>, scalar_prefetch = 0 : i64, scratch_operands = 1 : i64, tpu.core_type = #tpu.core_type<tc>, window_params = [{transform_indices = @transform_0, window_bounds = array<i64: 8, 128>}, {pipeline_mode = #tpu.pipeline_mode<synchronous>, transform_indices = @transform_1, window_bounds = array<i64: 128, 1024>}, {pipeline_mode = #tpu.pipeline_mode<synchronous>, transform_indices = @transform_2, window_bounds = array<i64: 1, 1024>}, {pipeline_mode = #tpu.pipeline_mode<synchronous>, transform_indices = @transform_3, window_bounds = array<i64: 1024, 256>}, {pipeline_mode = #tpu.pipeline_mode<synchronous>, transform_indices = @transform_4, window_bounds = array<i64: 1, 256>}, {pipeline_mode = #tpu.pipeline_mode<synchronous>, transform_indices = @transform_5, window_bounds = array<i64: 256, 128>}, {pipeline_mode = #tpu.pipeline_mode<synchronous>, transform_indices = @transform_6, window_bounds = array<i64: 1, 128>}, {transform_indices = @transform_7, window_bounds = array<i64: 8, 128>}]} {
    %c0 = arith.constant 0 : index
    %c0_0 = arith.constant 0 : index
    %0 = vector.load %arg1[%c0, %c0_0] : memref<8x128xbf16, #tpu.memory_space<vmem>>, vector<8x128xbf16>
    %c0_1 = arith.constant 0 : index
    %c0_2 = arith.constant 0 : index
    %1 = vector.load %arg2[%c0_1, %c0_2] : memref<128x1024xbf16, #tpu.memory_space<vmem>>, vector<128x256xbf16>
    %cst = arith.constant dense<0.000000e+00> : vector<8x256xf32>
    %2 = tpu.matmul %0, %1, %cst {dimension_numbers = #tpu.dot_dimension_numbers<[1], [0], [0], [1], [0, 0, 1, 1], [], []>} : vector<8x128xbf16>, vector<128x256xbf16>, vector<8x256xf32> -> vector<8x256xf32>
    %c0_3 = arith.constant 0 : index
    %c0_4 = arith.constant 0 : index
    %3 = vector.load %arg3[%c0_3, %c0_4] : memref<1x1024xf32, #tpu.memory_space<vmem>>, vector<1x256xf32>
    %4 = vector.broadcast %3 : vector<1x256xf32> to vector<8x256xf32>
    %5 = arith.addf %2, %4 : vector<8x256xf32>
    %cst_5 = arith.constant 0.000000e+00 : f32
    %6 = vector.broadcast %cst_5 : f32 to vector<8x256xf32>
    %7 = arith.maximumf %5, %6 : vector<8x256xf32>
    %8 = arith.truncf %7 : vector<8x256xf32> to vector<8x256xbf16>
    %c0_6 = arith.constant 0 : index
    %c0_7 = arith.constant 0 : index
    %9 = vector.load %arg4[%c0_6, %c0_7] : memref<1024x256xbf16, #tpu.memory_space<vmem>>, vector<256x256xbf16>
    %cst_8 = arith.constant dense<0.000000e+00> : vector<8x256xf32>
    %10 = tpu.matmul %8, %9, %cst_8 {dimension_numbers = #tpu.dot_dimension_numbers<[1], [0], [0], [1], [0, 0, 1, 1], [], []>} : vector<8x256xbf16>, vector<256x256xbf16>, vector<8x256xf32> -> vector<8x256xf32>
    %c0_9 = arith.constant 0 : index
    %c0_10 = arith.constant 0 : index
    %11 = vector.load %arg9[%c0_9, %c0_10] : memref<8x256xf32, #tpu.memory_space<vmem>>, vector<8x256xf32>
    tpu.vector_store %arg9[%c0_9, %c0_10], %10 {strides = array<i32>} : memref<8x256xf32, #tpu.memory_space<vmem>>, vector<8x256xf32>,
    %c0_11 = arith.constant 0 : index
    %c256 = arith.constant 256 : index
    %12 = vector.load %arg2[%c0_11, %c256] : memref<128x1024xbf16, #tpu.memory_space<vmem>>, vector<128x256xbf16>
    %cst_12 = arith.constant dense<0.000000e+00> : vector<8x256xf32>
    %13 = tpu.matmul %0, %12, %cst_12 {dimension_numbers = #tpu.dot_dimension_numbers<[1], [0], [0], [1], [0, 0, 1, 1], [], []>} : vector<8x128xbf16>, vector<128x256xbf16>, vector<8x256xf32> -> vector<8x256xf32>
    %c0_13 = arith.constant 0 : index
    %c256_14 = arith.constant 256 : index
    %14 = vector.load %arg3[%c0_13, %c256_14] : memref<1x1024xf32, #tpu.memory_space<vmem>>, vector<1x256xf32>
    %15 = vector.broadcast %14 : vector<1x256xf32> to vector<8x256xf32>
    %16 = arith.addf %13, %15 : vector<8x256xf32>
    %cst_15 = arith.constant 0.000000e+00 : f32
    %17 = vector.broadcast %cst_15 : f32 to vector<8x256xf32>
    %18 = arith.maximumf %16, %17 : vector<8x256xf32>
    %19 = arith.truncf %18 : vector<8x256xf32> to vector<8x256xbf16>
    %c256_16 = arith.constant 256 : index
    %c0_17 = arith.constant 0 : index
    %20 = vector.load %arg4[%c256_16, %c0_17] : memref<1024x256xbf16, #tpu.memory_space<vmem>>, vector<256x256xbf16>
    %cst_18 = arith.constant dense<0.000000e+00> : vector<8x256xf32>
    %21 = tpu.matmul %19, %20, %cst_18 {dimension_numbers = #tpu.dot_dimension_numbers<[1], [0], [0], [1], [0, 0, 1, 1], [], []>} : vector<8x256xbf16>, vector<256x256xbf16>, vector<8x256xf32> -> vector<8x256xf32>
    %c0_19 = arith.constant 0 : index
    %c0_20 = arith.constant 0 : index
    %22 = vector.load %arg9[%c0_19, %c0_20] : memref<8x256xf32, #tpu.memory_space<vmem>>, vector<8x256xf32>
    %23 = arith.addf %22, %21 : vector<8x256xf32>
    %c0_21 = arith.constant 0 : index
    %c0_22 = arith.constant 0 : index
    %24 = vector.load %arg9[%c0_21, %c0_22] : memref<8x256xf32, #tpu.memory_space<vmem>>, vector<8x256xf32>
    tpu.vector_store %arg9[%c0_21, %c0_22], %23 {strides = array<i32>} : memref<8x256xf32, #tpu.memory_space<vmem>>, vector<8x256xf32>,
    %c0_23 = arith.constant 0 : index
    %c512 = arith.constant 512 : index
    %25 = vector.load %arg2[%c0_23, %c512] : memref<128x1024xbf16, #tpu.memory_space<vmem>>, vector<128x256xbf16>
    %cst_24 = arith.constant dense<0.000000e+00> : vector<8x256xf32>
    %26 = tpu.matmul %0, %25, %cst_24 {dimension_numbers = #tpu.dot_dimension_numbers<[1], [0], [0], [1], [0, 0, 1, 1], [], []>} : vector<8x128xbf16>, vector<128x256xbf16>, vector<8x256xf32> -> vector<8x256xf32>
    %c0_25 = arith.constant 0 : index
    %c512_26 = arith.constant 512 : index
    %27 = vector.load %arg3[%c0_25, %c512_26] : memref<1x1024xf32, #tpu.memory_space<vmem>>, vector<1x256xf32>
    %28 = vector.broadcast %27 : vector<1x256xf32> to vector<8x256xf32>
    %29 = arith.addf %26, %28 : vector<8x256xf32>
    %cst_27 = arith.constant 0.000000e+00 : f32
    %30 = vector.broadcast %cst_27 : f32 to vector<8x256xf32>
    %31 = arith.maximumf %29, %30 : vector<8x256xf32>
    %32 = arith.truncf %31 : vector<8x256xf32> to vector<8x256xbf16>
    %c512_28 = arith.constant 512 : index
    %c0_29 = arith.constant 0 : index
    %33 = vector.load %arg4[%c512_28, %c0_29] : memref<1024x256xbf16, #tpu.memory_space<vmem>>, vector<256x256xbf16>
    %cst_30 = arith.constant dense<0.000000e+00> : vector<8x256xf32>
    %34 = tpu.matmul %32, %33, %cst_30 {dimension_numbers = #tpu.dot_dimension_numbers<[1], [0], [0], [1], [0, 0, 1, 1], [], []>} : vector<8x256xbf16>, vector<256x256xbf16>, vector<8x256xf32> -> vector<8x256xf32>
    %c0_31 = arith.constant 0 : index
    %c0_32 = arith.constant 0 : index
    %35 = vector.load %arg9[%c0_31, %c0_32] : memref<8x256xf32, #tpu.memory_space<vmem>>, vector<8x256xf32>
    %36 = arith.addf %35, %34 : vector<8x256xf32>
    %c0_33 = arith.constant 0 : index
    %c0_34 = arith.constant 0 : index
    %37 = vector.load %arg9[%c0_33, %c0_34] : memref<8x256xf32, #tpu.memory_space<vmem>>, vector<8x256xf32>
    tpu.vector_store %arg9[%c0_33, %c0_34], %36 {strides = array<i32>} : memref<8x256xf32, #tpu.memory_space<vmem>>, vector<8x256xf32>,
    %c0_35 = arith.constant 0 : index
    %c768 = arith.constant 768 : index
    %38 = vector.load %arg2[%c0_35, %c768] : memref<128x1024xbf16, #tpu.memory_space<vmem>>, vector<128x256xbf16>
    %cst_36 = arith.constant dense<0.000000e+00> : vector<8x256xf32>
    %39 = tpu.matmul %0, %38, %cst_36 {dimension_numbers = #tpu.dot_dimension_numbers<[1], [0], [0], [1], [0, 0, 1, 1], [], []>} : vector<8x128xbf16>, vector<128x256xbf16>, vector<8x256xf32> -> vector<8x256xf32>
    %c0_37 = arith.constant 0 : index
    %c768_38 = arith.constant 768 : index
    %40 = vector.load %arg3[%c0_37, %c768_38] : memref<1x1024xf32, #tpu.memory_space<vmem>>, vector<1x256xf32>
    %41 = vector.broadcast %40 : vector<1x256xf32> to vector<8x256xf32>
    %42 = arith.addf %39, %41 : vector<8x256xf32>
    %cst_39 = arith.constant 0.000000e+00 : f32
    %43 = vector.broadcast %cst_39 : f32 to vector<8x256xf32>
    %44 = arith.maximumf %42, %43 : vector<8x256xf32>
    %45 = arith.truncf %44 : vector<8x256xf32> to vector<8x256xbf16>
    %c768_40 = arith.constant 768 : index
    %c0_41 = arith.constant 0 : index
    %46 = vector.load %arg4[%c768_40, %c0_41] : memref<1024x256xbf16, #tpu.memory_space<vmem>>, vector<256x256xbf16>
    %cst_42 = arith.constant dense<0.000000e+00> : vector<8x256xf32>
    %47 = tpu.matmul %45, %46, %cst_42 {dimension_numbers = #tpu.dot_dimension_numbers<[1], [0], [0], [1], [0, 0, 1, 1], [], []>} : vector<8x256xbf16>, vector<256x256xbf16>, vector<8x256xf32> -> vector<8x256xf32>
    %c0_43 = arith.constant 0 : index
    %c0_44 = arith.constant 0 : index
    %48 = vector.load %arg9[%c0_43, %c0_44] : memref<8x256xf32, #tpu.memory_space<vmem>>, vector<8x256xf32>
    %49 = arith.addf %48, %47 : vector<8x256xf32>
    %c0_45 = arith.constant 0 : index
    %c0_46 = arith.constant 0 : index
    %50 = vector.load %arg9[%c0_45, %c0_46] : memref<8x256xf32, #tpu.memory_space<vmem>>, vector<8x256xf32>
    tpu.vector_store %arg9[%c0_45, %c0_46], %49 {strides = array<i32>} : memref<8x256xf32, #tpu.memory_space<vmem>>, vector<8x256xf32>,
    %c0_47 = arith.constant 0 : index
    %c0_48 = arith.constant 0 : index
    %51 = vector.load %arg9[%c0_47, %c0_48] : memref<8x256xf32, #tpu.memory_space<vmem>>, vector<8x256xf32>
    %c0_49 = arith.constant 0 : index
    %c0_50 = arith.constant 0 : index
    %52 = vector.load %arg5[%c0_49, %c0_50] : memref<1x256xf32, #tpu.memory_space<vmem>>, vector<1x256xf32>
    %53 = vector.broadcast %52 : vector<1x256xf32> to vector<8x256xf32>
    %54 = arith.addf %51, %53 : vector<8x256xf32>
    %cst_51 = arith.constant 0.000000e+00 : f32
    %55 = vector.broadcast %cst_51 : f32 to vector<8x256xf32>
    %56 = arith.maximumf %54, %55 : vector<8x256xf32>
    %57 = arith.truncf %56 : vector<8x256xf32> to vector<8x256xbf16>
    %c0_52 = arith.constant 0 : index
    %c0_53 = arith.constant 0 : index
    %58 = vector.load %arg6[%c0_52, %c0_53] : memref<256x128xbf16, #tpu.memory_space<vmem>>, vector<256x128xbf16>
    %cst_54 = arith.constant dense<0.000000e+00> : vector<8x128xf32>
    %59 = tpu.matmul %57, %58, %cst_54 {dimension_numbers = #tpu.dot_dimension_numbers<[1], [0], [0], [1], [0, 0, 1, 1], [], []>} : vector<8x256xbf16>, vector<256x128xbf16>, vector<8x128xf32> -> vector<8x128xf32>
    %c0_55 = arith.constant 0 : index
    %c0_56 = arith.constant 0 : index
    %60 = vector.load %arg7[%c0_55, %c0_56] : memref<1x128xf32, #tpu.memory_space<vmem>>, vector<1x128xf32>
    %61 = vector.broadcast %60 : vector<1x128xf32> to vector<8x128xf32>
    %62 = arith.addf %59, %61 : vector<8x128xf32>
    %63 = arith.truncf %62 : vector<8x128xf32> to vector<8x128xbf16>
    %c0_57 = arith.constant 0 : index
    %c0_58 = arith.constant 0 : index
    %64 = vector.load %arg8[%c0_57, %c0_58] : memref<8x128xbf16, #tpu.memory_space<vmem>>, vector<8x128xbf16>
    tpu.vector_store %arg8[%c0_57, %c0_58], %63 {strides = array<i32>} : memref<8x128xbf16, #tpu.memory_space<vmem>>, vector<8x128xbf16>,
    return
  }
  func.func @transform_0(%arg0: i32) -> (i32, i32) {
    %c0_i32 = arith.constant 0 : i32
    %c0_i32_0 = arith.constant 0 : i32
    return %arg0, %c0_i32 : i32, i32
  }
  func.func @transform_1(%arg0: i32) -> (i32, i32) {
    %c0_i32 = arith.constant 0 : i32
    %c0_i32_0 = arith.constant 0 : i32
    %c0_i32_1 = arith.constant 0 : i32
    return %c0_i32, %c0_i32_0 : i32, i32
  }
  func.func @transform_2(%arg0: i32) -> (i32, i32) {
    %c0_i32 = arith.constant 0 : i32
    %c0_i32_0 = arith.constant 0 : i32
    %c0_i32_1 = arith.constant 0 : i32
    return %c0_i32, %c0_i32_0 : i32, i32
  }
  func.func @transform_3(%arg0: i32) -> (i32, i32) {
    %c0_i32 = arith.constant 0 : i32
    %c0_i32_0 = arith.constant 0 : i32
    %c0_i32_1 = arith.constant 0 : i32
    return %c0_i32, %c0_i32_0 : i32, i32
  }
  func.func @transform_4(%arg0: i32) -> (i32, i32) {
    %c0_i32 = arith.constant 0 : i32
    %c0_i32_0 = arith.constant 0 : i32
    %c0_i32_1 = arith.constant 0 : i32
    return %c0_i32, %c0_i32_0 : i32, i32
  }
  func.func @transform_5(%arg0: i32) -> (i32, i32) {
    %c0_i32 = arith.constant 0 : i32
    %c0_i32_0 = arith.constant 0 : i32
    %c0_i32_1 = arith.constant 0 : i32
    return %c0_i32, %c0_i32_0 : i32, i32
  }
  func.func @transform_6(%arg0: i32) -> (i32, i32) {
    %c0_i32 = arith.constant 0 : i32
    %c0_i32_0 = arith.constant 0 : i32
    %c0_i32_1 = arith.constant 0 : i32
    return %c0_i32, %c0_i32_0 : i32, i32
  }
  func.func @transform_7(%arg0: i32) -> (i32, i32) {
    %c0_i32 = arith.constant 0 : i32
    %c0_i32_0 = arith.constant 0 : i32
    return %arg0, %c0_i32 : i32, i32
  }
}

module attributes {stable_mosaic.version = 11 : i64} {
  func.func @label_predictor_kernel(%arg0: i32, %arg1: memref<8x128xbf16, #tpu.memory_space<vmem>>, %arg2: memref<128x1024xbf16, #tpu.memory_space<vmem>>, %arg3: memref<1x1024xf32, #tpu.memory_space<vmem>>, %arg4: memref<1024x256xbf16, #tpu.memory_space<vmem>>, %arg5: memref<1x256xf32, #tpu.memory_space<vmem>>, %arg6: memref<256x128xbf16, #tpu.memory_space<vmem>>, %arg7: memref<1x128xf32, #tpu.memory_space<vmem>>, %arg8: memref<8x128xbf16, #tpu.memory_space<vmem>>, %arg9: memref<8x256xf32, #tpu.memory_space<vmem>>) attributes {dimension_semantics = [#tpu.dimension_semantics<parallel>], iteration_bounds = array<i64: 2>, scalar_prefetch = 0 : i64, scratch_operands = 1 : i64, tpu.core_type = #tpu.core_type<tc>, window_params = [{transform_indices = @transform_0, window_bounds = array<i64: 8, 128>}, {pipeline_mode = #tpu.pipeline_mode<synchronous>, transform_indices = @transform_1, window_bounds = array<i64: 128, 1024>}, {pipeline_mode = #tpu.pipeline_mode<synchronous>, transform_indices = @transform_2, window_bounds = array<i64: 1, 1024>}, {pipeline_mode = #tpu.pipeline_mode<synchronous>, transform_indices = @transform_3, window_bounds = array<i64: 1024, 256>}, {pipeline_mode = #tpu.pipeline_mode<synchronous>, transform_indices = @transform_4, window_bounds = array<i64: 1, 256>}, {pipeline_mode = #tpu.pipeline_mode<synchronous>, transform_indices = @transform_5, window_bounds = array<i64: 256, 128>}, {pipeline_mode = #tpu.pipeline_mode<synchronous>, transform_indices = @transform_6, window_bounds = array<i64: 1, 128>}, {transform_indices = @transform_7, window_bounds = array<i64: 8, 128>}]} {
    %c0 = arith.constant 0 : index
    %c0_0 = arith.constant 0 : index
    %0 = vector.load %arg1[%c0, %c0_0] : memref<8x128xbf16, #tpu.memory_space<vmem>>, vector<8x128xbf16>
    %c0_1 = arith.constant 0 : index
    %c0_2 = arith.constant 0 : index
    %1 = vector.load %arg2[%c0_1, %c0_2] : memref<128x1024xbf16, #tpu.memory_space<vmem>>, vector<128x256xbf16>
    %cst = arith.constant dense<0.000000e+00> : vector<8x256xf32>
    %2 = tpu.matmul %0, %1, %cst {dimension_numbers = #tpu.dot_dimension_numbers<[1], [0], [0], [1], [0, 0, 1, 1], [], []>} : vector<8x128xbf16>, vector<128x256xbf16>, vector<8x256xf32> -> vector<8x256xf32>
    %c0_3 = arith.constant 0 : index
    %c0_4 = arith.constant 0 : index
    %3 = vector.load %arg3[%c0_3, %c0_4] : memref<1x1024xf32, #tpu.memory_space<vmem>>, vector<1x256xf32>
    %4 = vector.broadcast %3 : vector<1x256xf32> to vector<8x256xf32>
    %5 = arith.addf %2, %4 : vector<8x256xf32>
    %cst_5 = arith.constant 0.000000e+00 : f32
    %6 = vector.broadcast %cst_5 : f32 to vector<8x256xf32>
    %7 = arith.maximumf %5, %6 : vector<8x256xf32>
    %8 = arith.truncf %7 : vector<8x256xf32> to vector<8x256xbf16>
    %c0_6 = arith.constant 0 : index
    %c0_7 = arith.constant 0 : index
    %9 = vector.load %arg4[%c0_6, %c0_7] : memref<1024x256xbf16, #tpu.memory_space<vmem>>, vector<256x256xbf16>
    %cst_8 = arith.constant dense<0.000000e+00> : vector<8x256xf32>
    %10 = tpu.matmul %8, %9, %cst_8 {dimension_numbers = #tpu.dot_dimension_numbers<[1], [0], [0], [1], [0, 0, 1, 1], [], []>} : vector<8x256xbf16>, vector<256x256xbf16>, vector<8x256xf32> -> vector<8x256xf32>
    %c0_9 = arith.constant 0 : index
    %c0_10 = arith.constant 0 : index
    %11 = vector.load %arg9[%c0_9, %c0_10] : memref<8x256xf32, #tpu.memory_space<vmem>>, vector<8x256xf32>
    tpu.vector_store %arg9[%c0_9, %c0_10], %10 {strides = array<i32>} : memref<8x256xf32, #tpu.memory_space<vmem>>, vector<8x256xf32>,
    %c0_11 = arith.constant 0 : index
    %c256 = arith.constant 256 : index
    %12 = vector.load %arg2[%c0_11, %c256] : memref<128x1024xbf16, #tpu.memory_space<vmem>>, vector<128x256xbf16>
    %cst_12 = arith.constant dense<0.000000e+00> : vector<8x256xf32>
    %13 = tpu.matmul %0, %12, %cst_12 {dimension_numbers = #tpu.dot_dimension_numbers<[1], [0], [0], [1], [0, 0, 1, 1], [], []>} : vector<8x128xbf16>, vector<128x256xbf16>, vector<8x256xf32> -> vector<8x256xf32>
    %c0_13 = arith.constant 0 : index
    %c256_14 = arith.constant 256 : index
    %14 = vector.load %arg3[%c0_13, %c256_14] : memref<1x1024xf32, #tpu.memory_space<vmem>>, vector<1x256xf32>
    %15 = vector.broadcast %14 : vector<1x256xf32> to vector<8x256xf32>
    %16 = arith.addf %13, %15 : vector<8x256xf32>
    %cst_15 = arith.constant 0.000000e+00 : f32
    %17 = vector.broadcast %cst_15 : f32 to vector<8x256xf32>
    %18 = arith.maximumf %16, %17 : vector<8x256xf32>
    %19 = arith.truncf %18 : vector<8x256xf32> to vector<8x256xbf16>
    %c256_16 = arith.constant 256 : index
    %c0_17 = arith.constant 0 : index
    %20 = vector.load %arg4[%c256_16, %c0_17] : memref<1024x256xbf16, #tpu.memory_space<vmem>>, vector<256x256xbf16>
    %cst_18 = arith.constant dense<0.000000e+00> : vector<8x256xf32>
    %21 = tpu.matmul %19, %20, %cst_18 {dimension_numbers = #tpu.dot_dimension_numbers<[1], [0], [0], [1], [0, 0, 1, 1], [], []>} : vector<8x256xbf16>, vector<256x256xbf16>, vector<8x256xf32> -> vector<8x256xf32>
    %c0_19 = arith.constant 0 : index
    %c0_20 = arith.constant 0 : index
    %22 = vector.load %arg9[%c0_19, %c0_20] : memref<8x256xf32, #tpu.memory_space<vmem>>, vector<8x256xf32>
    %23 = arith.addf %22, %21 : vector<8x256xf32>
    %c0_21 = arith.constant 0 : index
    %c0_22 = arith.constant 0 : index
    %24 = vector.load %arg9[%c0_21, %c0_22] : memref<8x256xf32, #tpu.memory_space<vmem>>, vector<8x256xf32>
    tpu.vector_store %arg9[%c0_21, %c0_22], %23 {strides = array<i32>} : memref<8x256xf32, #tpu.memory_space<vmem>>, vector<8x256xf32>,
    %c0_23 = arith.constant 0 : index
    %c512 = arith.constant 512 : index
    %25 = vector.load %arg2[%c0_23, %c512] : memref<128x1024xbf16, #tpu.memory_space<vmem>>, vector<128x256xbf16>
    %cst_24 = arith.constant dense<0.000000e+00> : vector<8x256xf32>
    %26 = tpu.matmul %0, %25, %cst_24 {dimension_numbers = #tpu.dot_dimension_numbers<[1], [0], [0], [1], [0, 0, 1, 1], [], []>} : vector<8x128xbf16>, vector<128x256xbf16>, vector<8x256xf32> -> vector<8x256xf32>
    %c0_25 = arith.constant 0 : index
    %c512_26 = arith.constant 512 : index
    %27 = vector.load %arg3[%c0_25, %c512_26] : memref<1x1024xf32, #tpu.memory_space<vmem>>, vector<1x256xf32>
    %28 = vector.broadcast %27 : vector<1x256xf32> to vector<8x256xf32>
    %29 = arith.addf %26, %28 : vector<8x256xf32>
    %cst_27 = arith.constant 0.000000e+00 : f32
    %30 = vector.broadcast %cst_27 : f32 to vector<8x256xf32>
    %31 = arith.maximumf %29, %30 : vector<8x256xf32>
    %32 = arith.truncf %31 : vector<8x256xf32> to vector<8x256xbf16>
    %c512_28 = arith.constant 512 : index
    %c0_29 = arith.constant 0 : index
    %33 = vector.load %arg4[%c512_28, %c0_29] : memref<1024x256xbf16, #tpu.memory_space<vmem>>, vector<256x256xbf16>
    %cst_30 = arith.constant dense<0.000000e+00> : vector<8x256xf32>
    %34 = tpu.matmul %32, %33, %cst_30 {dimension_numbers = #tpu.dot_dimension_numbers<[1], [0], [0], [1], [0, 0, 1, 1], [], []>} : vector<8x256xbf16>, vector<256x256xbf16>, vector<8x256xf32> -> vector<8x256xf32>
    %c0_31 = arith.constant 0 : index
    %c0_32 = arith.constant 0 : index
    %35 = vector.load %arg9[%c0_31, %c0_32] : memref<8x256xf32, #tpu.memory_space<vmem>>, vector<8x256xf32>
    %36 = arith.addf %35, %34 : vector<8x256xf32>
    %c0_33 = arith.constant 0 : index
    %c0_34 = arith.constant 0 : index
    %37 = vector.load %arg9[%c0_33, %c0_34] : memref<8x256xf32, #tpu.memory_space<vmem>>, vector<8x256xf32>
    tpu.vector_store %arg9[%c0_33, %c0_34], %36 {strides = array<i32>} : memref<8x256xf32, #tpu.memory_space<vmem>>, vector<8x256xf32>,
    %c0_35 = arith.constant 0 : index
    %c768 = arith.constant 768 : index
    %38 = vector.load %arg2[%c0_35, %c768] : memref<128x1024xbf16, #tpu.memory_space<vmem>>, vector<128x256xbf16>
    %cst_36 = arith.constant dense<0.000000e+00> : vector<8x256xf32>
    %39 = tpu.matmul %0, %38, %cst_36 {dimension_numbers = #tpu.dot_dimension_numbers<[1], [0], [0], [1], [0, 0, 1, 1], [], []>} : vector<8x128xbf16>, vector<128x256xbf16>, vector<8x256xf32> -> vector<8x256xf32>
    %c0_37 = arith.constant 0 : index
    %c768_38 = arith.constant 768 : index
    %40 = vector.load %arg3[%c0_37, %c768_38] : memref<1x1024xf32, #tpu.memory_space<vmem>>, vector<1x256xf32>
    %41 = vector.broadcast %40 : vector<1x256xf32> to vector<8x256xf32>
    %42 = arith.addf %39, %41 : vector<8x256xf32>
    %cst_39 = arith.constant 0.000000e+00 : f32
    %43 = vector.broadcast %cst_39 : f32 to vector<8x256xf32>
    %44 = arith.maximumf %42, %43 : vector<8x256xf32>
    %45 = arith.truncf %44 : vector<8x256xf32> to vector<8x256xbf16>
    %c768_40 = arith.constant 768 : index
    %c0_41 = arith.constant 0 : index
    %46 = vector.load %arg4[%c768_40, %c0_41] : memref<1024x256xbf16, #tpu.memory_space<vmem>>, vector<256x256xbf16>
    %cst_42 = arith.constant dense<0.000000e+00> : vector<8x256xf32>
    %47 = tpu.matmul %45, %46, %cst_42 {dimension_numbers = #tpu.dot_dimension_numbers<[1], [0], [0], [1], [0, 0, 1, 1], [], []>} : vector<8x256xbf16>, vector<256x256xbf16>, vector<8x256xf32> -> vector<8x256xf32>
    %c0_43 = arith.constant 0 : index
    %c0_44 = arith.constant 0 : index
    %48 = vector.load %arg9[%c0_43, %c0_44] : memref<8x256xf32, #tpu.memory_space<vmem>>, vector<8x256xf32>
    %49 = arith.addf %48, %47 : vector<8x256xf32>
    %c0_45 = arith.constant 0 : index
    %c0_46 = arith.constant 0 : index
    %50 = vector.load %arg9[%c0_45, %c0_46] : memref<8x256xf32, #tpu.memory_space<vmem>>, vector<8x256xf32>
    tpu.vector_store %arg9[%c0_45, %c0_46], %49 {strides = array<i32>} : memref<8x256xf32, #tpu.memory_space<vmem>>, vector<8x256xf32>,
    %c0_47 = arith.constant 0 : index
    %c0_48 = arith.constant 0 : index
    %51 = vector.load %arg9[%c0_47, %c0_48] : memref<8x256xf32, #tpu.memory_space<vmem>>, vector<8x256xf32>
    %c0_49 = arith.constant 0 : index
    %c0_50 = arith.constant 0 : index
    %52 = vector.load %arg5[%c0_49, %c0_50] : memref<1x256xf32, #tpu.memory_space<vmem>>, vector<1x256xf32>
    %53 = vector.broadcast %52 : vector<1x256xf32> to vector<8x256xf32>
    %54 = arith.addf %51, %53 : vector<8x256xf32>
    %cst_51 = arith.constant 0.000000e+00 : f32
    %55 = vector.broadcast %cst_51 : f32 to vector<8x256xf32>
    %56 = arith.maximumf %54, %55 : vector<8x256xf32>
    %57 = arith.truncf %56 : vector<8x256xf32> to vector<8x256xbf16>
    %c0_52 = arith.constant 0 : index
    %c0_53 = arith.constant 0 : index
    %58 = vector.load %arg6[%c0_52, %c0_53] : memref<256x128xbf16, #tpu.memory_space<vmem>>, vector<256x128xbf16>
    %cst_54 = arith.constant dense<0.000000e+00> : vector<8x128xf32>
    %59 = tpu.matmul %57, %58, %cst_54 {dimension_numbers = #tpu.dot_dimension_numbers<[1], [0], [0], [1], [0, 0, 1, 1], [], []>} : vector<8x256xbf16>, vector<256x128xbf16>, vector<8x128xf32> -> vector<8x128xf32>
    %c0_55 = arith.constant 0 : index
    %c0_56 = arith.constant 0 : index
    %60 = vector.load %arg7[%c0_55, %c0_56] : memref<1x128xf32, #tpu.memory_space<vmem>>, vector<1x128xf32>
    %61 = vector.broadcast %60 : vector<1x128xf32> to vector<8x128xf32>
    %62 = arith.addf %59, %61 : vector<8x128xf32>
    %63 = arith.truncf %62 : vector<8x128xf32> to vector<8x128xbf16>
    %c0_57 = arith.constant 0 : index
    %c0_58 = arith.constant 0 : index
    %64 = vector.load %arg8[%c0_57, %c0_58] : memref<8x128xbf16, #tpu.memory_space<vmem>>, vector<8x128xbf16>
    tpu.vector_store %arg8[%c0_57, %c0_58], %63 {strides = array<i32>} : memref<8x128xbf16, #tpu.memory_space<vmem>>, vector<8x128xbf16>,
    return
  }
  func.func @transform_0(%arg0: i32) -> (i32, i32) {
    %c0_i32 = arith.constant 0 : i32
    %c0_i32_0 = arith.constant 0 : i32
    return %arg0, %c0_i32 : i32, i32
  }
  func.func @transform_1(%arg0: i32) -> (i32, i32) {
    %c0_i32 = arith.constant 0 : i32
    %c0_i32_0 = arith.constant 0 : i32
    %c0_i32_1 = arith.constant 0 : i32
    return %c0_i32, %c0_i32_0 : i32, i32
  }
  func.func @transform_2(%arg0: i32) -> (i32, i32) {
    %c0_i32 = arith.constant 0 : i32
    %c0_i32_0 = arith.constant 0 : i32
    %c0_i32_1 = arith.constant 0 : i32
    return %c0_i32, %c0_i32_0 : i32, i32
  }
  func.func @transform_3(%arg0: i32) -> (i32, i32) {
    %c0_i32 = arith.constant 0 : i32
    %c0_i32_0 = arith.constant 0 : i32
    %c0_i32_1 = arith.constant 0 : i32
    return %c0_i32, %c0_i32_0 : i32, i32
  }
  func.func @transform_4(%arg0: i32) -> (i32, i32) {
    %c0_i32 = arith.constant 0 : i32
    %c0_i32_0 = arith.constant 0 : i32
    %c0_i32_1 = arith.constant 0 : i32
    return %c0_i32, %c0_i32_0 : i32, i32
  }
  func.func @transform_5(%arg0: i32) -> (i32, i32) {
    %c0_i32 = arith.constant 0 : i32
    %c0_i32_0 = arith.constant 0 : i32
    %c0_i32_1 = arith.constant 0 : i32
    return %c0_i32, %c0_i32_0 : i32, i32
  }
  func.func @transform_6(%arg0: i32) -> (i32, i32) {
    %c0_i32 = arith.constant 0 : i32
    %c0_i32_0 = arith.constant 0 : i32
    %c0_i32_1 = arith.constant 0 : i32
    return %c0_i32, %c0_i32_0 : i32, i32
  }
  func.func @transform_7(%arg0: i32) -> (i32, i32) {
    %c0_i32 = arith.constant 0 : i32
    %c0_i32_0 = arith.constant 0 : i32
    return %arg0, %c0_i32 : i32, i32
  }
}

</mosaic_0001>

<llo_original>
// kernel: tpu_custom_call.1
$region0: #{tpu_custom_call.1}
  #allocation0 [shape = 'u32[]', space=smem, size = 0x4, offset = 0x4, fixed_abs, tag = 'smem constant byte address 0x4 - core index']
  #allocation1 [shape = 'u32[144,128]{1,0:T(1,128)}', space=vmem, size = 0x12000, scoped, tag = 'internal scratch']
  #allocation2 [shape = 'f32[8,256]{1,0:T(8,128)}', space=vmem, size = 0x2000, scoped, tag = 'scratch operand']
  %s0 = inlined_call_operand.hbm [shape: bf16[16,128], index: 0, kind: input, shape index: {}]
  %s1 = inlined_call_operand.hbm [shape: bf16[128,1024], index: 1, kind: input, shape index: {}]
  %s2 = inlined_call_operand.hbm [shape: f32[1,1024], index: 2, kind: input, shape index: {}]
  %s3 = inlined_call_operand.hbm [shape: bf16[1024,256], index: 3, kind: input, shape index: {}]
  %s4 = inlined_call_operand.vmem [shape: f32[1,256], index: 4, kind: input, shape index: {}]
  %s5 = inlined_call_operand.hbm [shape: bf16[256,128], index: 5, kind: input, shape index: {}]
  %s6 = inlined_call_operand.vmem [shape: f32[1,128], index: 6, kind: input, shape index: {}]
  %s7 = inlined_call_operand.hbm [shape: bf16[16,128], index: 7, kind: output, shape index: {}]
  %s8 = sld [smem:[#allocation0]]
  $region81: #{tpu_custom_call.1} parent=0
    _
  %s10 = ssub.s32 1, %s8
  %s11 = scalar_select 0, %s10, %s8
  $region1: #{tpu_custom_call.1} parent=0
    #allocation3 [shape = 'u8[4096]{0}', space=vmem, size = 0x1000, scoped, tag = 'input window, operand 0']
    #allocation4 [shape = 's32[2]{0}', space=sflag, size = 0x8, scoped, tag = 'scoped memory for tpu_custom_call.1']
    #allocation5 [shape = 's32[2]{0}', space=sflag, size = 0x8, scoped, tag = 'scoped memory for tpu_custom_call.1']
    #allocation6 [shape = 'u8[262144]{0}', space=vmem, size = 0x40000, scoped, tag = 'input window, operand 1, single buffered']
    #allocation7 [shape = 's32[1]{0}', space=sflag, size = 0x4, scoped, tag = 'scoped memory for tpu_custom_call.1']
    #allocation8 [shape = 'u8[4096]{0}', space=vmem, size = 0x1000, scoped, tag = 'input window, operand 2, single buffered']
    #allocation9 [shape = 'u8[524288]{0}', space=vmem, size = 0x80000, scoped, tag = 'input window, operand 3, single buffered']
    #allocation10 [shape = 's32[1]{0}', space=sflag, size = 0x4, scoped, tag = 'scoped memory for tpu_custom_call.1']
    #allocation11 [shape = 'u8[65536]{0}', space=vmem, size = 0x10000, scoped, tag = 'input window, operand 5, single buffered']
    #allocation12 [shape = 'u8[4096]{0}', space=vmem, size = 0x1000, scoped, tag = 'output window, operand 0']
    %12 = vsyncpa [#allocation4], 0
    %s13 = scalar_lea.sflag [#allocation4], 1
    %14 = vsyncpa %s13, 0
    %15 = vsyncpa [#allocation7], 0
    %16 = vsyncpa [#allocation10], 0
    %17 = vsyncpa [#allocation5], 0
    %s18 = scalar_lea.sflag [#allocation5], 1
    %19 = vsyncpa %s18, 0
    loop: start=0, step=1, limit=4
    $region2: #{tpu_custom_call.1} parent=1 // loop_pre_header
      _
    $region3: #{tpu_custom_call.1} parent=1 // loop_header
      %s21 = sphi 0, %s25
      %p22 = scmp.ge.s32.totalorder %s21, 4
      %s31 = sphi 0, %s33
      %s34 = sphi 0, %s31
      %s35 = sphi 0, %s34
      %s51 = sphi 0, %s35
      %s55 = sphi 0, %s55
      %s57 = sphi 0, %s55
      %s58 = sphi 0, %s57
      %s72 = sphi 0, %s58
      %s76 = sphi 0, %s76
      %s78 = sphi 0, %s76
      %s79 = sphi 0, %s78
      %s93 = sphi 0, %s79
      %s97 = sphi 0, %s97
      %s99 = sphi 0, %s97
      %s100 = sphi 0, %s99
      %s114 = sphi 0, %s100
      %s118 = sphi 0, %s118
      %s120 = sphi 0, %s118
      %s121 = sphi 0, %s120
      %s135 = sphi 0, %s121
      %s139 = sphi 0, %s139
      %s141 = sphi 0, %s139
      %s142 = sphi 0, %s141
      %s156 = sphi 0, %s142
      %s160 = sphi 0, %s160
      %s162 = sphi 0, %s160
      %s163 = sphi 0, %s162
      %s177 = sphi 0, %s163
      %s183 = sphi 0, %s185
      %s186 = sphi 0, %s183
      %s187 = sphi 0, %s186
      %s203 = sphi 0, %s187
    $region4: #{tpu_custom_call.1} parent=1 // loop_header_branch
      %24 = sbr.rel (%p22) target = $region8
    $region5: #{tpu_custom_call.1} parent=1 // loop_body
      %s26 = ssub.s32 %s21, 1
      %s27 = ssub.s32 %s21, 2
      %s28 = sadd.s32 %s21, 1
      %s29 = ssub.s32 %s21, %s28
      %p30 = scmp.eq.s32.totalorder %s29, 0
      %s32 = sadd.s32 %s31, 1
      %s33 = scalar_select %p30, %s31, %s32
      %p36 = pneg %p30
      %p37 = scmp.eq.s32.totalorder %s21, 1
      %p38 = por %p36, %p37
      %p39 = scmp.ne.s32.totalorder %s31, %s34
      %p40 = scmp.eq.s32.totalorder %s21, 0
      %p41 = por %p39, %p40
      %p42 = scmp.ne.s32.totalorder %s31, %s34
      %p43 = scmp.eq.s32.totalorder %s26, 1
      %p44 = por %p42, %p43
      %p45 = scmp.ne.s32.totalorder %s34, %s35
      %p46 = scmp.eq.s32.totalorder %s26, 0
      %p47 = por %p45, %p46
      %p48 = scmp.ne.s32.totalorder %s34, %s35
      %p49 = scmp.eq.s32.totalorder %s27, 1
      %p50 = por %p48, %p49
      %p52 = scmp.ne.s32.totalorder %s35, %s51
      %p53 = scmp.eq.s32.totalorder %s27, 0
      %p54 = por %p52, %p53
      %s56 = sadd.s32 %s55, 1
      %p59 = scmp.eq.s32.totalorder %s21, 1
      %p60 = scmp.ne.s32.totalorder %s55, %s57
      %p61 = scmp.eq.s32.totalorder %s21, 0
      %p62 = por %p60, %p61
      %p63 = scmp.ne.s32.totalorder %s55, %s57
      %p64 = scmp.eq.s32.totalorder %s26, 1
      %p65 = por %p63, %p64
      %p66 = scmp.ne.s32.totalorder %s57, %s58
      %p67 = scmp.eq.s32.totalorder %s26, 0
      %p68 = por %p66, %p67
      %p69 = scmp.ne.s32.totalorder %s57, %s58
      %p70 = scmp.eq.s32.totalorder %s27, 1
      %p71 = por %p69, %p70
      %p73 = scmp.ne.s32.totalorder %s58, %s72
      %p74 = scmp.eq.s32.totalorder %s27, 0
      %p75 = por %p73, %p74
      %s77 = sadd.s32 %s76, 1
      %p80 = scmp.eq.s32.totalorder %s21, 1
      %p81 = scmp.ne.s32.totalorder %s76, %s78
      %p82 = scmp.eq.s32.totalorder %s21, 0
      %p83 = por %p81, %p82
      %p84 = scmp.ne.s32.totalorder %s76, %s78
      %p85 = scmp.eq.s32.totalorder %s26, 1
      %p86 = por %p84, %p85
      %p87 = scmp.ne.s32.totalorder %s78, %s79
      %p88 = scmp.eq.s32.totalorder %s26, 0
      %p89 = por %p87, %p88
      %p90 = scmp.ne.s32.totalorder %s78, %s79
      %p91 = scmp.eq.s32.totalorder %s27, 1
      %p92 = por %p90, %p91
      %p94 = scmp.ne.s32.totalorder %s79, %s93
      %p95 = scmp.eq.s32.totalorder %s27, 0
      %p96 = por %p94, %p95
      %s98 = sadd.s32 %s97, 1
      %p101 = scmp.eq.s32.totalorder %s21, 1
      %p102 = scmp.ne.s32.totalorder %s97, %s99
      %p103 = scmp.eq.s32.totalorder %s21, 0
      %p104 = por %p102, %p103
      %p105 = scmp.ne.s32.totalorder %s97, %s99
      %p106 = scmp.eq.s32.totalorder %s26, 1
      %p107 = por %p105, %p106
      %p108 = scmp.ne.s32.totalorder %s99, %s100
      %p109 = scmp.eq.s32.totalorder %s26, 0
      %p110 = por %p108, %p109
      %p111 = scmp.ne.s32.totalorder %s99, %s100
      %p112 = scmp.eq.s32.totalorder %s27, 1
      %p113 = por %p111, %p112
      %p115 = scmp.ne.s32.totalorder %s100, %s114
      %p116 = scmp.eq.s32.totalorder %s27, 0
      %p117 = por %p115, %p116
      %s119 = sadd.s32 %s118, 1
      %p122 = scmp.eq.s32.totalorder %s21, 1
      %p123 = scmp.ne.s32.totalorder %s118, %s120
      %p124 = scmp.eq.s32.totalorder %s21, 0
      %p125 = por %p123, %p124
      %p126 = scmp.ne.s32.totalorder %s118, %s120
      %p127 = scmp.eq.s32.totalorder %s26, 1
      %p128 = por %p126, %p127
      %p129 = scmp.ne.s32.totalorder %s120, %s121
      %p130 = scmp.eq.s32.totalorder %s26, 0
      %p131 = por %p129, %p130
      %p132 = scmp.ne.s32.totalorder %s120, %s121
      %p133 = scmp.eq.s32.totalorder %s27, 1
      %p134 = por %p132, %p133
      %p136 = scmp.ne.s32.totalorder %s121, %s135
      %p137 = scmp.eq.s32.totalorder %s27, 0
      %p138 = por %p136, %p137
      %s140 = sadd.s32 %s139, 1
      %p143 = scmp.eq.s32.totalorder %s21, 1
      %p144 = scmp.ne.s32.totalorder %s139, %s141
      %p145 = scmp.eq.s32.totalorder %s21, 0
      %p146 = por %p144, %p145
      %p147 = scmp.ne.s32.totalorder %s139, %s141
      %p148 = scmp.eq.s32.totalorder %s26, 1
      %p149 = por %p147, %p148
      %p150 = scmp.ne.s32.totalorder %s141, %s142
      %p151 = scmp.eq.s32.totalorder %s26, 0
      %p152 = por %p150, %p151
      %p153 = scmp.ne.s32.totalorder %s141, %s142
      %p154 = scmp.eq.s32.totalorder %s27, 1
      %p155 = por %p153, %p154
      %p157 = scmp.ne.s32.totalorder %s142, %s156
      %p158 = scmp.eq.s32.totalorder %s27, 0
      %p159 = por %p157, %p158
      %s161 = sadd.s32 %s160, 1
      %p164 = scmp.eq.s32.totalorder %s21, 1
      %p165 = scmp.ne.s32.totalorder %s160, %s162
      %p166 = scmp.eq.s32.totalorder %s21, 0
      %p167 = por %p165, %p166
      %p168 = scmp.ne.s32.totalorder %s160, %s162
      %p169 = scmp.eq.s32.totalorder %s26, 1
      %p170 = por %p168, %p169
      %p171 = scmp.ne.s32.totalorder %s162, %s163
      %p172 = scmp.eq.s32.totalorder %s26, 0
      %p173 = por %p171, %p172
      %p174 = scmp.ne.s32.totalorder %s162, %s163
      %p175 = scmp.eq.s32.totalorder %s27, 1
      %p176 = por %p174, %p175
      %p178 = scmp.ne.s32.totalorder %s163, %s177
      %p179 = scmp.eq.s32.totalorder %s27, 0
      %p180 = por %p178, %p179
      %s181 = ssub.s32 %s21, %s28
      %p182 = scmp.eq.s32.totalorder %s181, 0
      %s184 = sadd.s32 %s183, 1
      %s185 = scalar_select %p182, %s183, %s184
      %p188 = pneg %p182
      %p189 = scmp.eq.s32.totalorder %s21, 1
      %p190 = por %p188, %p189
      %p191 = scmp.ne.s32.totalorder %s183, %s186
      %p192 = scmp.eq.s32.totalorder %s21, 0
      %p193 = por %p191, %p192
      %p194 = scmp.ne.s32.totalorder %s183, %s186
      %p195 = scmp.eq.s32.totalorder %s26, 1
      %p196 = por %p194, %p195
      %p197 = scmp.ne.s32.totalorder %s186, %s187
      %p198 = scmp.eq.s32.totalorder %s26, 0
      %p199 = por %p197, %p198
      %p200 = scmp.ne.s32.totalorder %s186, %s187
      %p201 = scmp.eq.s32.totalorder %s27, 1
      %p202 = por %p200, %p201
      %p204 = scmp.ne.s32.totalorder %s187, %s203
      %p205 = scmp.eq.s32.totalorder %s27, 0
      %p206 = por %p204, %p205
      %p207 = scmp.le.s32.totalorder 1, %s21
      %p208 = scmp.lt.s32.totalorder %s21, 3
      %p209 = pnand %p207, %p208
      %p210 = pneg %p209
      // Predicated region
      $region9: #{tpu_custom_call.1} parent=5 // pred_check
        _
      $region10: #{tpu_custom_call.1} parent=5 // pred_check_branch
        %212 = sbr.rel (%p209) target = $region12
      $region11: #{tpu_custom_call.1} parent=5 // pred_region
        %s213 = ssub.s32 %s21, 1
        // Predicated region
        $region13: #{tpu_custom_call.1} parent=11 // pred_check
          %p214 = pneg %p68
        $region14: #{tpu_custom_call.1} parent=11 // pred_check_branch
          %216 = sbr.rel (%p214) target = $region16
        $region15: #{tpu_custom_call.1} parent=11 // pred_region
          %s218 = ssub.s32 8192, 8192
          %219 = vsyncadd [#allocation7], %s218
          %s220 = sshll.u32 [#allocation6], 4
          %s221 = int_to_ptr.vmem [resolvable:$true] %s220
          %226 = dma.hbm_to_vmem [thread:$0]  %s1, 8192, %s221, [#allocation7], 512, 512, 32
        $region16: #{tpu_custom_call.1} parent=11 // pred_fallthru
          _
        // Predicated region
        $region17: #{tpu_custom_call.1} parent=11 // pred_check
          %p227 = pneg %p89
        $region18: #{tpu_custom_call.1} parent=11 // pred_check_branch
          %229 = sbr.rel (%p227) target = $region20
        $region19: #{tpu_custom_call.1} parent=11 // pred_region
          %s231 = ssub.s32 128, 128
          %232 = vsyncadd [#allocation7], %s231
          %s234 = sshll.u32 [#allocation8], 4
          %s235 = int_to_ptr.vmem [resolvable:$true] %s234
          %237 = dma.hbm_to_vmem [thread:$0]  %s2, 128, %s235, [#allocation7]
        $region20: #{tpu_custom_call.1} parent=11 // pred_fallthru
          _
        // Predicated region
        $region21: #{tpu_custom_call.1} parent=11 // pred_check
          %p238 = pneg %p110
        $region22: #{tpu_custom_call.1} parent=11 // pred_check_branch
          %240 = sbr.rel (%p238) target = $region24
        $region23: #{tpu_custom_call.1} parent=11 // pred_region
          %s242 = ssub.s32 16384, 16384
          %243 = vsyncadd [#allocation10], %s242
          %s244 = sshll.u32 [#allocation9], 4
          %s245 = int_to_ptr.vmem [resolvable:$true] %s244
          %250 = dma.hbm_to_vmem [thread:$0]  %s3, 16384, %s245, [#allocation10], 128, 128, 8
        $region24: #{tpu_custom_call.1} parent=11 // pred_fallthru
          _
        // Predicated region
        $region25: #{tpu_custom_call.1} parent=11 // pred_check
          %p251 = pneg %p131
        $region26: #{tpu_custom_call.1} parent=11 // pred_check_branch
          %253 = sbr.rel (%p251) target = $region28
        $region27: #{tpu_custom_call.1} parent=11 // pred_region
          _
        $region28: #{tpu_custom_call.1} parent=11 // pred_fallthru
          _
        // Predicated region
        $region29: #{tpu_custom_call.1} parent=11 // pred_check
          %p254 = pneg %p152
        $region30: #{tpu_custom_call.1} parent=11 // pred_check_branch
          %256 = sbr.rel (%p254) target = $region32
        $region31: #{tpu_custom_call.1} parent=11 // pred_region
          %s258 = ssub.s32 2048, 2048
          %259 = vsyncadd [#allocation10], %s258
          %s260 = sshll.u32 [#allocation11], 4
          %s261 = int_to_ptr.vmem [resolvable:$true] %s260
          %266 = dma.hbm_to_vmem [thread:$0]  %s5, 2048, %s261, [#allocation10], 64, 64, 4
        $region32: #{tpu_custom_call.1} parent=11 // pred_fallthru
          _
        // Predicated region
        $region33: #{tpu_custom_call.1} parent=11 // pred_check
          %p267 = pneg %p173
        $region34: #{tpu_custom_call.1} parent=11 // pred_check_branch
          %269 = sbr.rel (%p267) target = $region36
        $region35: #{tpu_custom_call.1} parent=11 // pred_region
          _
        $region36: #{tpu_custom_call.1} parent=11 // pred_fallthru
          _
      $region12: #{tpu_custom_call.1} parent=5 // pred_fallthru
        _
      %p270 = scmp.lt.s32.totalorder %s21, 2
      // Predicated region
      $region37: #{tpu_custom_call.1} parent=5 // pred_check
        %p271 = pneg %p270
      $region38: #{tpu_custom_call.1} parent=5 // pred_check_branch
        %273 = sbr.rel (%p271) target = $region40
      $region39: #{tpu_custom_call.1} parent=5 // pred_region
        // Predicated region
        $region41: #{tpu_custom_call.1} parent=39 // pred_check
          %p274 = pneg %p41
        $region42: #{tpu_custom_call.1} parent=39 // pred_check_branch
          %276 = sbr.rel (%p274) target = $region44
        $region43: #{tpu_custom_call.1} parent=39 // pred_region
          %s277 = sand.u32 %s31, 1
          %s278 = scalar_lea.sflag [#allocation4], %s277
          %s279 = sand.u32 %s31, 1
          %s280 = smul.addr %s279, 4
          %s281 = scalar_lea.vmem [#allocation3], %s280
          %s283 = ssub.s32 64, 64
          %284 = vsyncadd %s278, %s283
          %s285 = smul.addr %s21, 64
          %s286 = scalar_lea.hbm %s0, %s285
          %s288 = sshll.u32 %s281, 4
          %s289 = int_to_ptr.vmem [resolvable:$true] %s288
          %291 = dma.hbm_to_vmem [thread:$0]  %s286, 64, %s289, %s278
        $region44: #{tpu_custom_call.1} parent=39 // pred_fallthru
          _
      $region40: #{tpu_custom_call.1} parent=5 // pred_fallthru
        _
      %p292 = scmp.le.s32.totalorder 1, %s21
      %p293 = scmp.lt.s32.totalorder %s21, 3
      %p294 = pnand %p292, %p293
      %p295 = pneg %p294
      // Predicated region
      $region45: #{tpu_custom_call.1} parent=5 // pred_check
        _
      $region46: #{tpu_custom_call.1} parent=5 // pred_check_branch
        %297 = sbr.rel (%p294) target = $region48
      $region47: #{tpu_custom_call.1} parent=5 // pred_region
        %s298 = ssub.s32 %s21, 1
        %s299 = sand.u32 %s34, 1
        %s300 = scalar_lea.sflag [#allocation4], %s299
        %s301 = sand.u32 %s34, 1
        %s302 = smul.addr %s301, 4
        %s303 = scalar_lea.vmem [#allocation3], %s302
        // Predicated region
        $region49: #{tpu_custom_call.1} parent=47 // pred_check
          %p304 = pneg %p47
        $region50: #{tpu_custom_call.1} parent=47 // pred_check_branch
          %306 = sbr.rel (%p304) target = $region52
        $region51: #{tpu_custom_call.1} parent=47 // pred_region
          %307 = dma.done %s300, 64
        $region52: #{tpu_custom_call.1} parent=47 // pred_fallthru
          _
        // Predicated region
        $region53: #{tpu_custom_call.1} parent=47 // pred_check
          %p308 = pneg %p68
        $region54: #{tpu_custom_call.1} parent=47 // pred_check_branch
          %310 = sbr.rel (%p308) target = $region56
        $region55: #{tpu_custom_call.1} parent=47 // pred_region
          %311 = dma.done [#allocation7], 8192
        $region56: #{tpu_custom_call.1} parent=47 // pred_fallthru
          _
        // Predicated region
        $region57: #{tpu_custom_call.1} parent=47 // pred_check
          %p312 = pneg %p89
        $region58: #{tpu_custom_call.1} parent=47 // pred_check_branch
          %314 = sbr.rel (%p312) target = $region60
        $region59: #{tpu_custom_call.1} parent=47 // pred_region
          %315 = dma.done [#allocation7], 128
        $region60: #{tpu_custom_call.1} parent=47 // pred_fallthru
          _
        // Predicated region
        $region61: #{tpu_custom_call.1} parent=47 // pred_check
          %p316 = pneg %p110
        $region62: #{tpu_custom_call.1} parent=47 // pred_check_branch
          %318 = sbr.rel (%p316) target = $region64
        $region63: #{tpu_custom_call.1} parent=47 // pred_region
          %319 = dma.done [#allocation10], 16384
        $region64: #{tpu_custom_call.1} parent=47 // pred_fallthru
          _
        // Predicated region
        $region65: #{tpu_custom_call.1} parent=47 // pred_check
          %p320 = pneg %p152
        $region66: #{tpu_custom_call.1} parent=47 // pred_check_branch
          %322 = sbr.rel (%p320) target = $region68
        $region67: #{tpu_custom_call.1} parent=47 // pred_region
          %323 = dma.done [#allocation10], 2048
        $region68: #{tpu_custom_call.1} parent=47 // pred_fallthru
          _
        %s324 = sand.u32 %s34, 1
        %s325 = scalar_lea.sflag [#allocation4], %s324
        %s326 = sand.u32 %s34, 1
        %s327 = smul.addr %s326, 4
        %s328 = scalar_lea.vmem [#allocation3], %s327
        %p329 = pneg %p47
        %p330 = pneg %p44
        %p331 = pneg %p68
        %p332 = pneg %p65
        %p333 = pneg %p89
        %p334 = pneg %p86
        %p335 = pneg %p110
        %p336 = pneg %p107
        %p337 = pneg %p131
        %p338 = pneg %p128
        %p339 = pneg %p152
        %p340 = pneg %p149
        %p341 = pneg %p173
        %p342 = pneg %p170
        %p343 = pneg %p199
        %p344 = pneg %p196
        %s345 = sand.u32 %s186, 1
        %s346 = scalar_lea.sflag [#allocation5], %s345
        %s347 = sand.u32 %s186, 1
        %s348 = smul.addr %s347, 4
        %s349 = scalar_lea.vmem [#allocation12], %s348
        %v351 = vld [vmem:[%s303] sm:$0xf]
        %v352 = vld [vmem:[#allocation6] sm:$0xff]
        %v353 = vld [vmem:[#allocation6 + $0x20] sm:$0xff]
        %v354 = vld [vmem:[#allocation6 + $0x40] sm:$0xff]
        %v355 = vld [vmem:[#allocation6 + $0x60] sm:$0xff]
        %v356 = vld [vmem:[#allocation6 + $0x80] sm:$0xff]
        %v357 = vld [vmem:[#allocation6 + $0xa0] sm:$0xff]
        %v358 = vld [vmem:[#allocation6 + $0xc0] sm:$0xff]
        %v359 = vld [vmem:[#allocation6 + $0xe0] sm:$0xff]
        %v360 = vld [vmem:[#allocation6 + $0x100] sm:$0xff]
        %v361 = vld [vmem:[#allocation6 + $0x120] sm:$0xff]
        %v362 = vld [vmem:[#allocation6 + $0x140] sm:$0xff]
        %v363 = vld [vmem:[#allocation6 + $0x160] sm:$0xff]
        %v364 = vld [vmem:[#allocation6 + $0x180] sm:$0xff]
        %v365 = vld [vmem:[#allocation6 + $0x1a0] sm:$0xff]
        %v366 = vld [vmem:[#allocation6 + $0x1c0] sm:$0xff]
        %v367 = vld [vmem:[#allocation6 + $0x1e0] sm:$0xff]
        %v368 = vld [vmem:[#allocation8] sm:$0x3]
        %v370 = vlaneseq
        %v371 = vshrl.u32 %v370, 7
        %v372 = vsub.s32 0, %v371
        %v373 = vrot.slane %v368, %v372
        %v374 = vlaneseq
        %v375 = vshrl.u32 %v374, 7
        %v376 = vsub.s32 1, %v375
        %v377 = vrot.slane %v368, %v376
        %v396 = vunpack.c.l.b16 %v352
        %v397 = vunpack.c.h.b16 %v352
        %v398 = vunpack.c.l.b16 %v353
        %v399 = vunpack.c.h.b16 %v353
        %v400 = vunpack.c.l.b16 %v354
        %v401 = vunpack.c.h.b16 %v354
        %v402 = vunpack.c.l.b16 %v355
        %v403 = vunpack.c.h.b16 %v355
        %v404 = vunpack.c.l.b16 %v356
        %v405 = vunpack.c.h.b16 %v356
        %v406 = vunpack.c.l.b16 %v357
        %v407 = vunpack.c.h.b16 %v357
        %v408 = vunpack.c.l.b16 %v358
        %v409 = vunpack.c.h.b16 %v358
        %v410 = vunpack.c.l.b16 %v359
        %v411 = vunpack.c.h.b16 %v359
        %v412 = vunpack.c.l.b16 %v360
        %v413 = vunpack.c.h.b16 %v360
        %v414 = vunpack.c.l.b16 %v361
        %v415 = vunpack.c.h.b16 %v361
        %v416 = vunpack.c.l.b16 %v362
        %v417 = vunpack.c.h.b16 %v362
        %v418 = vunpack.c.l.b16 %v363
        %v419 = vunpack.c.h.b16 %v363
        %v420 = vunpack.c.l.b16 %v364
        %v421 = vunpack.c.h.b16 %v364
        %v422 = vunpack.c.l.b16 %v365
        %v423 = vunpack.c.h.b16 %v365
        %v424 = vunpack.c.l.b16 %v366
        %v425 = vunpack.c.h.b16 %v366
        %v426 = vunpack.c.l.b16 %v367
        %v427 = vunpack.c.h.b16 %v367
        %v428 = vpack.c.b16 %v398, %v396
        %v429 = vpack.c.b16 %v399, %v397
        %v430 = vpack.c.b16 %v402, %v400
        %v431 = vpack.c.b16 %v403, %v401
        %v432 = vpack.c.b16 %v406, %v404
        %v433 = vpack.c.b16 %v407, %v405
        %v434 = vpack.c.b16 %v410, %v408
        %v435 = vpack.c.b16 %v411, %v409
        %v436 = vpack.c.b16 %v414, %v412
        %v437 = vpack.c.b16 %v415, %v413
        %v438 = vpack.c.b16 %v418, %v416
        %v439 = vpack.c.b16 %v419, %v417
        %v440 = vpack.c.b16 %v422, %v420
        %v441 = vpack.c.b16 %v423, %v421
        %v442 = vpack.c.b16 %v426, %v424
        %v443 = vpack.c.b16 %v427, %v425
        %460 = vmatprep.subr.bf16.mxu0 %v443
        %461 = vmatpush1.bf16.msra.mxu0 %v442
        %462 = vmatprep.subr.bf16.mxu0 %v441
        %463 = vmatpush1.bf16.msra.mxu0 %v440
        %464 = vmatprep.subr.bf16.mxu0 %v439
        %465 = vmatpush1.bf16.msra.mxu0 %v438
        %466 = vmatprep.subr.bf16.mxu0 %v437
        %467 = vmatpush1.bf16.msra.mxu0 %v436
        %468 = vmatprep.subr.bf16.mxu0 %v435
        %469 = vmatpush1.bf16.msra.mxu0 %v434
        %470 = vmatprep.subr.bf16.mxu0 %v433
        %471 = vmatpush1.bf16.msra.mxu0 %v432
        %472 = vmatprep.subr.bf16.mxu0 %v431
        %473 = vmatpush1.bf16.msra.mxu0 %v430
        %474 = vmatprep.subr.bf16.mxu0 %v429
        %475 = vmatpush1.bf16.msra.mxu0 %v428
        %476 = vmatprep.subr.bf16.mxu0 0
        %477 = vmatpush2.bf16.msra.mxu0 0
        %478 = vmatprep.subr.bf16.mxu0 0
        %479 = vmatpush2.bf16.msra.mxu0 0
        %480 = vmatprep.subr.bf16.mxu0 0
        %481 = vmatpush2.bf16.msra.mxu0 0
        %482 = vmatprep.subr.bf16.mxu0 0
        %483 = vmatpush2.bf16.msra.mxu0 0
        %484 = vmatprep.subr.bf16.mxu0 0
        %485 = vmatpush2.bf16.msra.mxu0 0
        %486 = vmatprep.subr.bf16.mxu0 0
        %487 = vmatpush2.bf16.msra.mxu0 0
        %488 = vmatprep.subr.bf16.mxu0 0
        %489 = vmatpush2.bf16.msra.mxu0 0
        %490 = vmatprep.subr.bf16.mxu0 0
        %491 = vmatpush2.bf16.msra.mxu0 0
        %492 = vmatprep.mubr.bf16.mxu0 0
        %493 = vmatmul.mubr.bf16.gmra.mxu0 %v351
        %v494 = vpop.f32.mrf.mxu0
        %v495 = vadd.f32 %v373, %v494
        %v496 = vpop.f32.mrf.mxu0
        %v497 = vadd.f32 %v377, %v496
        %v498 = vpop.f32.mrf.mxu0
        %v499 = vpop.f32.mrf.mxu0
        %500 = vdwg.mxu0
        %v501 = vmax.f32 %v495, 0.0
        %v502 = vmax.f32 %v497, 0.0
        %v503 = vpack.c.bf16 %v501, %v501
        %v504 = vpack.c.bf16 %v502, %v502
        %v505 = vld [vmem:[#allocation9] sm:$0xff]
        %v506 = vld [vmem:[#allocation9 + $0x8] sm:$0xff]
        %v507 = vld [vmem:[#allocation9 + $0x10] sm:$0xff]
        %v508 = vld [vmem:[#allocation9 + $0x18] sm:$0xff]
        %v509 = vld [vmem:[#allocation9 + $0x20] sm:$0xff]
        %v510 = vld [vmem:[#allocation9 + $0x28] sm:$0xff]
        %v511 = vld [vmem:[#allocation9 + $0x30] sm:$0xff]
        %v512 = vld [vmem:[#allocation9 + $0x38] sm:$0xff]
        %v513 = vld [vmem:[#allocation9 + $0x40] sm:$0xff]
        %v514 = vld [vmem:[#allocation9 + $0x48] sm:$0xff]
        %v515 = vld [vmem:[#allocation9 + $0x50] sm:$0xff]
        %v516 = vld [vmem:[#allocation9 + $0x58] sm:$0xff]
        %v517 = vld [vmem:[#allocation9 + $0x60] sm:$0xff]
        %v518 = vld [vmem:[#allocation9 + $0x68] sm:$0xff]
        %v519 = vld [vmem:[#allocation9 + $0x70] sm:$0xff]
        %v520 = vld [vmem:[#allocation9 + $0x78] sm:$0xff]
        %v521 = vld [vmem:[#allocation9 + $0x80] sm:$0xff]
        %v522 = vld [vmem:[#allocation9 + $0x88] sm:$0xff]
        %v523 = vld [vmem:[#allocation9 + $0x90] sm:$0xff]
        %v524 = vld [vmem:[#allocation9 + $0x98] sm:$0xff]
        %v525 = vld [vmem:[#allocation9 + $0xa0] sm:$0xff]
        %v526 = vld [vmem:[#allocation9 + $0xa8] sm:$0xff]
        %v527 = vld [vmem:[#allocation9 + $0xb0] sm:$0xff]
        %v528 = vld [vmem:[#allocation9 + $0xb8] sm:$0xff]
        %v529 = vld [vmem:[#allocation9 + $0xc0] sm:$0xff]
        %v530 = vld [vmem:[#allocation9 + $0xc8] sm:$0xff]
        %v531 = vld [vmem:[#allocation9 + $0xd0] sm:$0xff]
        %v532 = vld [vmem:[#allocation9 + $0xd8] sm:$0xff]
        %v533 = vld [vmem:[#allocation9 + $0xe0] sm:$0xff]
        %v534 = vld [vmem:[#allocation9 + $0xe8] sm:$0xff]
        %v535 = vld [vmem:[#allocation9 + $0xf0] sm:$0xff]
        %v536 = vld [vmem:[#allocation9 + $0xf8] sm:$0xff]
        %v569 = vunpack.c.l.b16 %v505
        %v570 = vunpack.c.h.b16 %v505
        %v571 = vunpack.c.l.b16 %v506
        %v572 = vunpack.c.h.b16 %v506
        %v573 = vunpack.c.l.b16 %v507
        %v574 = vunpack.c.h.b16 %v507
        %v575 = vunpack.c.l.b16 %v508
        %v576 = vunpack.c.h.b16 %v508
        %v577 = vunpack.c.l.b16 %v509
        %v578 = vunpack.c.h.b16 %v509
        %v579 = vunpack.c.l.b16 %v510
        %v580 = vunpack.c.h.b16 %v510
        %v581 = vunpack.c.l.b16 %v511
        %v582 = vunpack.c.h.b16 %v511
        %v583 = vunpack.c.l.b16 %v512
        %v584 = vunpack.c.h.b16 %v512
        %v585 = vunpack.c.l.b16 %v513
        %v586 = vunpack.c.h.b16 %v513
        %v587 = vunpack.c.l.b16 %v514
        %v588 = vunpack.c.h.b16 %v514
        %v589 = vunpack.c.l.b16 %v515
        %v590 = vunpack.c.h.b16 %v515
        %v591 = vunpack.c.l.b16 %v516
        %v592 = vunpack.c.h.b16 %v516
        %v593 = vunpack.c.l.b16 %v517
        %v594 = vunpack.c.h.b16 %v517
        %v595 = vunpack.c.l.b16 %v518
        %v596 = vunpack.c.h.b16 %v518
        %v597 = vunpack.c.l.b16 %v519
        %v598 = vunpack.c.h.b16 %v519
        %v599 = vunpack.c.l.b16 %v520
        %v600 = vunpack.c.h.b16 %v520
        %v601 = vunpack.c.l.b16 %v521
        %v602 = vunpack.c.h.b16 %v521
        %v603 = vunpack.c.l.b16 %v522
        %v604 = vunpack.c.h.b16 %v522
        %v605 = vunpack.c.l.b16 %v523
        %v606 = vunpack.c.h.b16 %v523
        %v607 = vunpack.c.l.b16 %v524
        %v608 = vunpack.c.h.b16 %v524
        %v609 = vunpack.c.l.b16 %v525
        %v610 = vunpack.c.h.b16 %v525
        %v611 = vunpack.c.l.b16 %v526
        %v612 = vunpack.c.h.b16 %v526
        %v613 = vunpack.c.l.b16 %v527
        %v614 = vunpack.c.h.b16 %v527
        %v615 = vunpack.c.l.b16 %v528
        %v616 = vunpack.c.h.b16 %v528
        %v617 = vunpack.c.l.b16 %v529
        %v618 = vunpack.c.h.b16 %v529
        %v619 = vunpack.c.l.b16 %v530
        %v620 = vunpack.c.h.b16 %v530
        %v621 = vunpack.c.l.b16 %v531
        %v622 = vunpack.c.h.b16 %v531
        %v623 = vunpack.c.l.b16 %v532
        %v624 = vunpack.c.h.b16 %v532
        %v625 = vunpack.c.l.b16 %v533
        %v626 = vunpack.c.h.b16 %v533
        %v627 = vunpack.c.l.b16 %v534
        %v628 = vunpack.c.h.b16 %v534
        %v629 = vunpack.c.l.b16 %v535
        %v630 = vunpack.c.h.b16 %v535
        %v631 = vunpack.c.l.b16 %v536
        %v632 = vunpack.c.h.b16 %v536
        %v633 = vpack.c.b16 %v571, %v569
        %v634 = vpack.c.b16 %v572, %v570
        %v635 = vpack.c.b16 %v575, %v573
        %v636 = vpack.c.b16 %v576, %v574
        %v637 = vpack.c.b16 %v579, %v577
        %v638 = vpack.c.b16 %v580, %v578
        %v639 = vpack.c.b16 %v583, %v581
        %v640 = vpack.c.b16 %v584, %v582
        %v641 = vpack.c.b16 %v587, %v585
        %v642 = vpack.c.b16 %v588, %v586
        %v643 = vpack.c.b16 %v591, %v589
        %v644 = vpack.c.b16 %v592, %v590
        %v645 = vpack.c.b16 %v595, %v593
        %v646 = vpack.c.b16 %v596, %v594
        %v647 = vpack.c.b16 %v599, %v597
        %v648 = vpack.c.b16 %v600, %v598
        %v649 = vpack.c.b16 %v603, %v601
        %v650 = vpack.c.b16 %v604, %v602
        %v651 = vpack.c.b16 %v607, %v605
        %v652 = vpack.c.b16 %v608, %v606
        %v653 = vpack.c.b16 %v611, %v609
        %v654 = vpack.c.b16 %v612, %v610
        %v655 = vpack.c.b16 %v615, %v613
        %v656 = vpack.c.b16 %v616, %v614
        %v657 = vpack.c.b16 %v619, %v617
        %v658 = vpack.c.b16 %v620, %v618
        %v659 = vpack.c.b16 %v623, %v621
        %v660 = vpack.c.b16 %v624, %v622
        %v661 = vpack.c.b16 %v627, %v625
        %v662 = vpack.c.b16 %v628, %v626
        %v663 = vpack.c.b16 %v631, %v629
        %v664 = vpack.c.b16 %v632, %v630
        %697 = vmatprep.subr.bf16.mxu0 %v648
        %698 = vmatpush1.bf16.msra.mxu0 %v647
        %699 = vmatprep.subr.bf16.mxu0 %v646
        %700 = vmatpush1.bf16.msra.mxu0 %v645
        %701 = vmatprep.subr.bf16.mxu0 %v644
        %702 = vmatpush1.bf16.msra.mxu0 %v643
        %703 = vmatprep.subr.bf16.mxu0 %v642
        %704 = vmatpush1.bf16.msra.mxu0 %v641
        %705 = vmatprep.subr.bf16.mxu0 %v640
        %706 = vmatpush1.bf16.msra.mxu0 %v639
        %707 = vmatprep.subr.bf16.mxu0 %v638
        %708 = vmatpush1.bf16.msra.mxu0 %v637
        %709 = vmatprep.subr.bf16.mxu0 %v636
        %710 = vmatpush1.bf16.msra.mxu0 %v635
        %711 = vmatprep.subr.bf16.mxu0 %v634
        %712 = vmatpush1.bf16.msra.mxu0 %v633
        %713 = vmatprep.subr.bf16.mxu0 %v664
        %714 = vmatpush2.bf16.msra.mxu0 %v663
        %715 = vmatprep.subr.bf16.mxu0 %v662
        %716 = vmatpush2.bf16.msra.mxu0 %v661
        %717 = vmatprep.subr.bf16.mxu0 %v660
        %718 = vmatpush2.bf16.msra.mxu0 %v659
        %719 = vmatprep.subr.bf16.mxu0 %v658
        %720 = vmatpush2.bf16.msra.mxu0 %v657
        %721 = vmatprep.subr.bf16.mxu0 %v656
        %722 = vmatpush2.bf16.msra.mxu0 %v655
        %723 = vmatprep.subr.bf16.mxu0 %v654
        %724 = vmatpush2.bf16.msra.mxu0 %v653
        %725 = vmatprep.subr.bf16.mxu0 %v652
        %726 = vmatpush2.bf16.msra.mxu0 %v651
        %727 = vmatprep.subr.bf16.mxu0 %v650
        %728 = vmatpush2.bf16.msra.mxu0 %v649
        %729 = vmatprep.mubr.bf16.mxu0 %v504
        %730 = vmatmul.mubr.bf16.gmra.mxu0 %v503
        %v731 = vpop.f32.mrf.mxu0
        %v732 = vadd.f32 0.0, %v731
        %v733 = vpop.f32.mrf.mxu0
        %v734 = vadd.f32 0.0, %v733
        %v735 = vpop.f32.mrf.mxu0
        %v736 = vpop.f32.mrf.mxu0
        %737 = vdwg.mxu0
        %738 = vst [vmem:[#allocation2] sm:$0xff] %v732
        %739 = vst [vmem:[#allocation2 + $0x8] sm:$0xff] %v734
        %v740 = vld [vmem:[#allocation6 + $0x8] sm:$0xff]
        %v741 = vld [vmem:[#allocation6 + $0x28] sm:$0xff]
        %v742 = vld [vmem:[#allocation6 + $0x48] sm:$0xff]
        %v743 = vld [vmem:[#allocation6 + $0x68] sm:$0xff]
        %v744 = vld [vmem:[#allocation6 + $0x88] sm:$0xff]
        %v745 = vld [vmem:[#allocation6 + $0xa8] sm:$0xff]
        %v746 = vld [vmem:[#allocation6 + $0xc8] sm:$0xff]
        %v747 = vld [vmem:[#allocation6 + $0xe8] sm:$0xff]
        %v748 = vld [vmem:[#allocation6 + $0x108] sm:$0xff]
        %v749 = vld [vmem:[#allocation6 + $0x128] sm:$0xff]
        %v750 = vld [vmem:[#allocation6 + $0x148] sm:$0xff]
        %v751 = vld [vmem:[#allocation6 + $0x168] sm:$0xff]
        %v752 = vld [vmem:[#allocation6 + $0x188] sm:$0xff]
        %v753 = vld [vmem:[#allocation6 + $0x1a8] sm:$0xff]
        %v754 = vld [vmem:[#allocation6 + $0x1c8] sm:$0xff]
        %v755 = vld [vmem:[#allocation6 + $0x1e8] sm:$0xff]
        %v756 = vld [vmem:[#allocation8 + $0x2] sm:$0x3]
        %v758 = vlaneseq
        %v759 = vshrl.u32 %v758, 7
        %v760 = vsub.s32 0, %v759
        %v761 = vrot.slane %v756, %v760
        %v762 = vlaneseq
        %v763 = vshrl.u32 %v762, 7
        %v764 = vsub.s32 1, %v763
        %v765 = vrot.slane %v756, %v764
        %v784 = vunpack.c.l.b16 %v740
        %v785 = vunpack.c.h.b16 %v740
        %v786 = vunpack.c.l.b16 %v741
        %v787 = vunpack.c.h.b16 %v741
        %v788 = vunpack.c.l.b16 %v742
        %v789 = vunpack.c.h.b16 %v742
        %v790 = vunpack.c.l.b16 %v743
        %v791 = vunpack.c.h.b16 %v743
        %v792 = vunpack.c.l.b16 %v744
        %v793 = vunpack.c.h.b16 %v744
        %v794 = vunpack.c.l.b16 %v745
        %v795 = vunpack.c.h.b16 %v745
        %v796 = vunpack.c.l.b16 %v746
        %v797 = vunpack.c.h.b16 %v746
        %v798 = vunpack.c.l.b16 %v747
        %v799 = vunpack.c.h.b16 %v747
        %v800 = vunpack.c.l.b16 %v748
        %v801 = vunpack.c.h.b16 %v748
        %v802 = vunpack.c.l.b16 %v749
        %v803 = vunpack.c.h.b16 %v749
        %v804 = vunpack.c.l.b16 %v750
        %v805 = vunpack.c.h.b16 %v750
        %v806 = vunpack.c.l.b16 %v751
        %v807 = vunpack.c.h.b16 %v751
        %v808 = vunpack.c.l.b16 %v752
        %v809 = vunpack.c.h.b16 %v752
        %v810 = vunpack.c.l.b16 %v753
        %v811 = vunpack.c.h.b16 %v753
        %v812 = vunpack.c.l.b16 %v754
        %v813 = vunpack.c.h.b16 %v754
        %v814 = vunpack.c.l.b16 %v755
        %v815 = vunpack.c.h.b16 %v755
        %v816 = vpack.c.b16 %v786, %v784
        %v817 = vpack.c.b16 %v787, %v785
        %v818 = vpack.c.b16 %v790, %v788
        %v819 = vpack.c.b16 %v791, %v789
        %v820 = vpack.c.b16 %v794, %v792
        %v821 = vpack.c.b16 %v795, %v793
        %v822 = vpack.c.b16 %v798, %v796
        %v823 = vpack.c.b16 %v799, %v797
        %v824 = vpack.c.b16 %v802, %v800
        %v825 = vpack.c.b16 %v803, %v801
        %v826 = vpack.c.b16 %v806, %v804
        %v827 = vpack.c.b16 %v807, %v805
        %v828 = vpack.c.b16 %v810, %v808
        %v829 = vpack.c.b16 %v811, %v809
        %v830 = vpack.c.b16 %v814, %v812
        %v831 = vpack.c.b16 %v815, %v813
        %848 = vmatprep.subr.bf16.mxu0 %v831
        %849 = vmatpush1.bf16.msra.mxu0 %v830
        %850 = vmatprep.subr.bf16.mxu0 %v829
        %851 = vmatpush1.bf16.msra.mxu0 %v828
        %852 = vmatprep.subr.bf16.mxu0 %v827
        %853 = vmatpush1.bf16.msra.mxu0 %v826
        %854 = vmatprep.subr.bf16.mxu0 %v825
        %855 = vmatpush1.bf16.msra.mxu0 %v824
        %856 = vmatprep.subr.bf16.mxu0 %v823
        %857 = vmatpush1.bf16.msra.mxu0 %v822
        %858 = vmatprep.subr.bf16.mxu0 %v821
        %859 = vmatpush1.bf16.msra.mxu0 %v820
        %860 = vmatprep.subr.bf16.mxu0 %v819
        %861 = vmatpush1.bf16.msra.mxu0 %v818
        %862 = vmatprep.subr.bf16.mxu0 %v817
        %863 = vmatpush1.bf16.msra.mxu0 %v816
        %864 = vmatprep.subr.bf16.mxu0 0
        %865 = vmatpush2.bf16.msra.mxu0 0
        %866 = vmatprep.subr.bf16.mxu0 0
        %867 = vmatpush2.bf16.msra.mxu0 0
        %868 = vmatprep.subr.bf16.mxu0 0
        %869 = vmatpush2.bf16.msra.mxu0 0
        %870 = vmatprep.subr.bf16.mxu0 0
        %871 = vmatpush2.bf16.msra.mxu0 0
        %872 = vmatprep.subr.bf16.mxu0 0
        %873 = vmatpush2.bf16.msra.mxu0 0
        %874 = vmatprep.subr.bf16.mxu0 0
        %875 = vmatpush2.bf16.msra.mxu0 0
        %876 = vmatprep.subr.bf16.mxu0 0
        %877 = vmatpush2.bf16.msra.mxu0 0
        %878 = vmatprep.subr.bf16.mxu0 0
        %879 = vmatpush2.bf16.msra.mxu0 0
        %880 = vmatprep.mubr.bf16.mxu0 0
        %881 = vmatmul.mubr.bf16.gmra.mxu0 %v351
        %v882 = vpop.f32.mrf.mxu0
        %v883 = vadd.f32 %v761, %v882
        %v884 = vpop.f32.mrf.mxu0
        %v885 = vadd.f32 %v765, %v884
        %v886 = vpop.f32.mrf.mxu0
        %v887 = vpop.f32.mrf.mxu0
        %888 = vdwg.mxu0
        %v889 = vmax.f32 %v883, 0.0
        %v890 = vmax.f32 %v885, 0.0
        %v891 = vpack.c.bf16 %v889, %v889
        %v892 = vpack.c.bf16 %v890, %v890
        %v893 = vld [vmem:[#allocation9 + $0x100] sm:$0xff]
        %v894 = vld [vmem:[#allocation9 + $0x108] sm:$0xff]
        %v895 = vld [vmem:[#allocation9 + $0x110] sm:$0xff]
        %v896 = vld [vmem:[#allocation9 + $0x118] sm:$0xff]
        %v897 = vld [vmem:[#allocation9 + $0x120] sm:$0xff]
        %v898 = vld [vmem:[#allocation9 + $0x128] sm:$0xff]
        %v899 = vld [vmem:[#allocation9 + $0x130] sm:$0xff]
        %v900 = vld [vmem:[#allocation9 + $0x138] sm:$0xff]
        %v901 = vld [vmem:[#allocation9 + $0x140] sm:$0xff]
        %v902 = vld [vmem:[#allocation9 + $0x148] sm:$0xff]
        %v903 = vld [vmem:[#allocation9 + $0x150] sm:$0xff]
        %v904 = vld [vmem:[#allocation9 + $0x158] sm:$0xff]
        %v905 = vld [vmem:[#allocation9 + $0x160] sm:$0xff]
        %v906 = vld [vmem:[#allocation9 + $0x168] sm:$0xff]
        %v907 = vld [vmem:[#allocation9 + $0x170] sm:$0xff]
        %v908 = vld [vmem:[#allocation9 + $0x178] sm:$0xff]
        %v909 = vld [vmem:[#allocation9 + $0x180] sm:$0xff]
        %v910 = vld [vmem:[#allocation9 + $0x188] sm:$0xff]
        %v911 = vld [vmem:[#allocation9 + $0x190] sm:$0xff]
        %v912 = vld [vmem:[#allocation9 + $0x198] sm:$0xff]
        %v913 = vld [vmem:[#allocation9 + $0x1a0] sm:$0xff]
        %v914 = vld [vmem:[#allocation9 + $0x1a8] sm:$0xff]
        %v915 = vld [vmem:[#allocation9 + $0x1b0] sm:$0xff]
        %v916 = vld [vmem:[#allocation9 + $0x1b8] sm:$0xff]
        %v917 = vld [vmem:[#allocation9 + $0x1c0] sm:$0xff]
        %v918 = vld [vmem:[#allocation9 + $0x1c8] sm:$0xff]
        %v919 = vld [vmem:[#allocation9 + $0x1d0] sm:$0xff]
        %v920 = vld [vmem:[#allocation9 + $0x1d8] sm:$0xff]
        %v921 = vld [vmem:[#allocation9 + $0x1e0] sm:$0xff]
        %v922 = vld [vmem:[#allocation9 + $0x1e8] sm:$0xff]
        %v923 = vld [vmem:[#allocation9 + $0x1f0] sm:$0xff]
        %v924 = vld [vmem:[#allocation9 + $0x1f8] sm:$0xff]
        %v957 = vunpack.c.l.b16 %v893
        %v958 = vunpack.c.h.b16 %v893
        %v959 = vunpack.c.l.b16 %v894
        %v960 = vunpack.c.h.b16 %v894
        %v961 = vunpack.c.l.b16 %v895
        %v962 = vunpack.c.h.b16 %v895
        %v963 = vunpack.c.l.b16 %v896
        %v964 = vunpack.c.h.b16 %v896
        %v965 = vunpack.c.l.b16 %v897
        %v966 = vunpack.c.h.b16 %v897
        %v967 = vunpack.c.l.b16 %v898
        %v968 = vunpack.c.h.b16 %v898
        %v969 = vunpack.c.l.b16 %v899
        %v970 = vunpack.c.h.b16 %v899
        %v971 = vunpack.c.l.b16 %v900
        %v972 = vunpack.c.h.b16 %v900
        %v973 = vunpack.c.l.b16 %v901
        %v974 = vunpack.c.h.b16 %v901
        %v975 = vunpack.c.l.b16 %v902
        %v976 = vunpack.c.h.b16 %v902
        %v977 = vunpack.c.l.b16 %v903
        %v978 = vunpack.c.h.b16 %v903
        %v979 = vunpack.c.l.b16 %v904
        %v980 = vunpack.c.h.b16 %v904
        %v981 = vunpack.c.l.b16 %v905
        %v982 = vunpack.c.h.b16 %v905
        %v983 = vunpack.c.l.b16 %v906
        %v984 = vunpack.c.h.b16 %v906
        %v985 = vunpack.c.l.b16 %v907
        %v986 = vunpack.c.h.b16 %v907
        %v987 = vunpack.c.l.b16 %v908
        %v988 = vunpack.c.h.b16 %v908
        %v989 = vunpack.c.l.b16 %v909
        %v990 = vunpack.c.h.b16 %v909
        %v991 = vunpack.c.l.b16 %v910
        %v992 = vunpack.c.h.b16 %v910
        %v993 = vunpack.c.l.b16 %v911
        %v994 = vunpack.c.h.b16 %v911
        %v995 = vunpack.c.l.b16 %v912
        %v996 = vunpack.c.h.b16 %v912
        %v997 = vunpack.c.l.b16 %v913
        %v998 = vunpack.c.h.b16 %v913
        %v999 = vunpack.c.l.b16 %v914
        %v1000 = vunpack.c.h.b16 %v914
        %v1001 = vunpack.c.l.b16 %v915
        %v1002 = vunpack.c.h.b16 %v915
        %v1003 = vunpack.c.l.b16 %v916
        %v1004 = vunpack.c.h.b16 %v916
        %v1005 = vunpack.c.l.b16 %v917
        %v1006 = vunpack.c.h.b16 %v917
        %v1007 = vunpack.c.l.b16 %v918
        %v1008 = vunpack.c.h.b16 %v918
        %v1009 = vunpack.c.l.b16 %v919
        %v1010 = vunpack.c.h.b16 %v919
        %v1011 = vunpack.c.l.b16 %v920
        %v1012 = vunpack.c.h.b16 %v920
        %v1013 = vunpack.c.l.b16 %v921
        %v1014 = vunpack.c.h.b16 %v921
        %v1015 = vunpack.c.l.b16 %v922
        %v1016 = vunpack.c.h.b16 %v922
        %v1017 = vunpack.c.l.b16 %v923
        %v1018 = vunpack.c.h.b16 %v923
        %v1019 = vunpack.c.l.b16 %v924
        %v1020 = vunpack.c.h.b16 %v924
        %v1021 = vpack.c.b16 %v959, %v957
        %v1022 = vpack.c.b16 %v960, %v958
        %v1023 = vpack.c.b16 %v963, %v961
        %v1024 = vpack.c.b16 %v964, %v962
        %v1025 = vpack.c.b16 %v967, %v965
        %v1026 = vpack.c.b16 %v968, %v966
        %v1027 = vpack.c.b16 %v971, %v969
        %v1028 = vpack.c.b16 %v972, %v970
        %v1029 = vpack.c.b16 %v975, %v973
        %v1030 = vpack.c.b16 %v976, %v974
        %v1031 = vpack.c.b16 %v979, %v977
        %v1032 = vpack.c.b16 %v980, %v978
        %v1033 = vpack.c.b16 %v983, %v981
        %v1034 = vpack.c.b16 %v984, %v982
        %v1035 = vpack.c.b16 %v987, %v985
        %v1036 = vpack.c.b16 %v988, %v986
        %v1037 = vpack.c.b16 %v991, %v989
        %v1038 = vpack.c.b16 %v992, %v990
        %v1039 = vpack.c.b16 %v995, %v993
        %v1040 = vpack.c.b16 %v996, %v994
        %v1041 = vpack.c.b16 %v999, %v997
        %v1042 = vpack.c.b16 %v1000, %v998
        %v1043 = vpack.c.b16 %v1003, %v1001
        %v1044 = vpack.c.b16 %v1004, %v1002
        %v1045 = vpack.c.b16 %v1007, %v1005
        %v1046 = vpack.c.b16 %v1008, %v1006
        %v1047 = vpack.c.b16 %v1011, %v1009
        %v1048 = vpack.c.b16 %v1012, %v1010
        %v1049 = vpack.c.b16 %v1015, %v1013
        %v1050 = vpack.c.b16 %v1016, %v1014
        %v1051 = vpack.c.b16 %v1019, %v1017
        %v1052 = vpack.c.b16 %v1020, %v1018
        %1085 = vmatprep.subr.bf16.mxu0 %v1036
        %1086 = vmatpush1.bf16.msra.mxu0 %v1035
        %1087 = vmatprep.subr.bf16.mxu0 %v1034
        %1088 = vmatpush1.bf16.msra.mxu0 %v1033
        %1089 = vmatprep.subr.bf16.mxu0 %v1032
        %1090 = vmatpush1.bf16.msra.mxu0 %v1031
        %1091 = vmatprep.subr.bf16.mxu0 %v1030
        %1092 = vmatpush1.bf16.msra.mxu0 %v1029
        %1093 = vmatprep.subr.bf16.mxu0 %v1028
        %1094 = vmatpush1.bf16.msra.mxu0 %v1027
        %1095 = vmatprep.subr.bf16.mxu0 %v1026
        %1096 = vmatpush1.bf16.msra.mxu0 %v1025
        %1097 = vmatprep.subr.bf16.mxu0 %v1024
        %1098 = vmatpush1.bf16.msra.mxu0 %v1023
        %1099 = vmatprep.subr.bf16.mxu0 %v1022
        %1100 = vmatpush1.bf16.msra.mxu0 %v1021
        %1101 = vmatprep.subr.bf16.mxu0 %v1052
        %1102 = vmatpush2.bf16.msra.mxu0 %v1051
        %1103 = vmatprep.subr.bf16.mxu0 %v1050
        %1104 = vmatpush2.bf16.msra.mxu0 %v1049
        %1105 = vmatprep.subr.bf16.mxu0 %v1048
        %1106 = vmatpush2.bf16.msra.mxu0 %v1047
        %1107 = vmatprep.subr.bf16.mxu0 %v1046
        %1108 = vmatpush2.bf16.msra.mxu0 %v1045
        %1109 = vmatprep.subr.bf16.mxu0 %v1044
        %1110 = vmatpush2.bf16.msra.mxu0 %v1043
        %1111 = vmatprep.subr.bf16.mxu0 %v1042
        %1112 = vmatpush2.bf16.msra.mxu0 %v1041
        %1113 = vmatprep.subr.bf16.mxu0 %v1040
        %1114 = vmatpush2.bf16.msra.mxu0 %v1039
        %1115 = vmatprep.subr.bf16.mxu0 %v1038
        %1116 = vmatpush2.bf16.msra.mxu0 %v1037
        %1117 = vmatprep.mubr.bf16.mxu0 %v892
        %1118 = vmatmul.mubr.bf16.gmra.mxu0 %v891
        %v1119 = vpop.f32.mrf.mxu0
        %v1120 = vadd.f32 0.0, %v1119
        %v1121 = vpop.f32.mrf.mxu0
        %v1122 = vadd.f32 0.0, %v1121
        %v1123 = vpop.f32.mrf.mxu0
        %v1124 = vpop.f32.mrf.mxu0
        %1125 = vdwg.mxu0
        %v1126 = vld [vmem:[#allocation2] sm:$0xff]
        %v1127 = vld [vmem:[#allocation2 + $0x8] sm:$0xff]
        %v1128 = vadd.f32 %v1126, %v1120
        %v1129 = vadd.f32 %v1127, %v1122
        %1130 = vst [vmem:[#allocation2] sm:$0xff] %v1128
        %1131 = vst [vmem:[#allocation2 + $0x8] sm:$0xff] %v1129
        %v1132 = vld [vmem:[#allocation6 + $0x10] sm:$0xff]
        %v1133 = vld [vmem:[#allocation6 + $0x30] sm:$0xff]
        %v1134 = vld [vmem:[#allocation6 + $0x50] sm:$0xff]
        %v1135 = vld [vmem:[#allocation6 + $0x70] sm:$0xff]
        %v1136 = vld [vmem:[#allocation6 + $0x90] sm:$0xff]
        %v1137 = vld [vmem:[#allocation6 + $0xb0] sm:$0xff]
        %v1138 = vld [vmem:[#allocation6 + $0xd0] sm:$0xff]
        %v1139 = vld [vmem:[#allocation6 + $0xf0] sm:$0xff]
        %v1140 = vld [vmem:[#allocation6 + $0x110] sm:$0xff]
        %v1141 = vld [vmem:[#allocation6 + $0x130] sm:$0xff]
        %v1142 = vld [vmem:[#allocation6 + $0x150] sm:$0xff]
        %v1143 = vld [vmem:[#allocation6 + $0x170] sm:$0xff]
        %v1144 = vld [vmem:[#allocation6 + $0x190] sm:$0xff]
        %v1145 = vld [vmem:[#allocation6 + $0x1b0] sm:$0xff]
        %v1146 = vld [vmem:[#allocation6 + $0x1d0] sm:$0xff]
        %v1147 = vld [vmem:[#allocation6 + $0x1f0] sm:$0xff]
        %v1148 = vld [vmem:[#allocation8 + $0x4] sm:$0x3]
        %v1150 = vlaneseq
        %v1151 = vshrl.u32 %v1150, 7
        %v1152 = vsub.s32 0, %v1151
        %v1153 = vrot.slane %v1148, %v1152
        %v1154 = vlaneseq
        %v1155 = vshrl.u32 %v1154, 7
        %v1156 = vsub.s32 1, %v1155
        %v1157 = vrot.slane %v1148, %v1156
        %v1176 = vunpack.c.l.b16 %v1132
        %v1177 = vunpack.c.h.b16 %v1132
        %v1178 = vunpack.c.l.b16 %v1133
        %v1179 = vunpack.c.h.b16 %v1133
        %v1180 = vunpack.c.l.b16 %v1134
        %v1181 = vunpack.c.h.b16 %v1134
        %v1182 = vunpack.c.l.b16 %v1135
        %v1183 = vunpack.c.h.b16 %v1135
        %v1184 = vunpack.c.l.b16 %v1136
        %v1185 = vunpack.c.h.b16 %v1136
        %v1186 = vunpack.c.l.b16 %v1137
        %v1187 = vunpack.c.h.b16 %v1137
        %v1188 = vunpack.c.l.b16 %v1138
        %v1189 = vunpack.c.h.b16 %v1138
        %v1190 = vunpack.c.l.b16 %v1139
        %v1191 = vunpack.c.h.b16 %v1139
        %v1192 = vunpack.c.l.b16 %v1140
        %v1193 = vunpack.c.h.b16 %v1140
        %v1194 = vunpack.c.l.b16 %v1141
        %v1195 = vunpack.c.h.b16 %v1141
        %v1196 = vunpack.c.l.b16 %v1142
        %v1197 = vunpack.c.h.b16 %v1142
        %v1198 = vunpack.c.l.b16 %v1143
        %v1199 = vunpack.c.h.b16 %v1143
        %v1200 = vunpack.c.l.b16 %v1144
        %v1201 = vunpack.c.h.b16 %v1144
        %v1202 = vunpack.c.l.b16 %v1145
        %v1203 = vunpack.c.h.b16 %v1145
        %v1204 = vunpack.c.l.b16 %v1146
        %v1205 = vunpack.c.h.b16 %v1146
        %v1206 = vunpack.c.l.b16 %v1147
        %v1207 = vunpack.c.h.b16 %v1147
        %v1208 = vpack.c.b16 %v1178, %v1176
        %v1209 = vpack.c.b16 %v1179, %v1177
        %v1210 = vpack.c.b16 %v1182, %v1180
        %v1211 = vpack.c.b16 %v1183, %v1181
        %v1212 = vpack.c.b16 %v1186, %v1184
        %v1213 = vpack.c.b16 %v1187, %v1185
        %v1214 = vpack.c.b16 %v1190, %v1188
        %v1215 = vpack.c.b16 %v1191, %v1189
        %v1216 = vpack.c.b16 %v1194, %v1192
        %v1217 = vpack.c.b16 %v1195, %v1193
        %v1218 = vpack.c.b16 %v1198, %v1196
        %v1219 = vpack.c.b16 %v1199, %v1197
        %v1220 = vpack.c.b16 %v1202, %v1200
        %v1221 = vpack.c.b16 %v1203, %v1201
        %v1222 = vpack.c.b16 %v1206, %v1204
        %v1223 = vpack.c.b16 %v1207, %v1205
        %1240 = vmatprep.subr.bf16.mxu0 %v1223
        %1241 = vmatpush1.bf16.msra.mxu0 %v1222
        %1242 = vmatprep.subr.bf16.mxu0 %v1221
        %1243 = vmatpush1.bf16.msra.mxu0 %v1220
        %1244 = vmatprep.subr.bf16.mxu0 %v1219
        %1245 = vmatpush1.bf16.msra.mxu0 %v1218
        %1246 = vmatprep.subr.bf16.mxu0 %v1217
        %1247 = vmatpush1.bf16.msra.mxu0 %v1216
        %1248 = vmatprep.subr.bf16.mxu0 %v1215
        %1249 = vmatpush1.bf16.msra.mxu0 %v1214
        %1250 = vmatprep.subr.bf16.mxu0 %v1213
        %1251 = vmatpush1.bf16.msra.mxu0 %v1212
        %1252 = vmatprep.subr.bf16.mxu0 %v1211
        %1253 = vmatpush1.bf16.msra.mxu0 %v1210
        %1254 = vmatprep.subr.bf16.mxu0 %v1209
        %1255 = vmatpush1.bf16.msra.mxu0 %v1208
        %1256 = vmatprep.subr.bf16.mxu0 0
        %1257 = vmatpush2.bf16.msra.mxu0 0
        %1258 = vmatprep.subr.bf16.mxu0 0
        %1259 = vmatpush2.bf16.msra.mxu0 0
        %1260 = vmatprep.subr.bf16.mxu0 0
        %1261 = vmatpush2.bf16.msra.mxu0 0
        %1262 = vmatprep.subr.bf16.mxu0 0
        %1263 = vmatpush2.bf16.msra.mxu0 0
        %1264 = vmatprep.subr.bf16.mxu0 0
        %1265 = vmatpush2.bf16.msra.mxu0 0
        %1266 = vmatprep.subr.bf16.mxu0 0
        %1267 = vmatpush2.bf16.msra.mxu0 0
        %1268 = vmatprep.subr.bf16.mxu0 0
        %1269 = vmatpush2.bf16.msra.mxu0 0
        %1270 = vmatprep.subr.bf16.mxu0 0
        %1271 = vmatpush2.bf16.msra.mxu0 0
        %1272 = vmatprep.mubr.bf16.mxu0 0
        %1273 = vmatmul.mubr.bf16.gmra.mxu0 %v351
        %v1274 = vpop.f32.mrf.mxu0
        %v1275 = vadd.f32 %v1153, %v1274
        %v1276 = vpop.f32.mrf.mxu0
        %v1277 = vadd.f32 %v1157, %v1276
        %v1278 = vpop.f32.mrf.mxu0
        %v1279 = vpop.f32.mrf.mxu0
        %1280 = vdwg.mxu0
        %v1281 = vmax.f32 %v1275, 0.0
        %v1282 = vmax.f32 %v1277, 0.0
        %v1283 = vpack.c.bf16 %v1281, %v1281
        %v1284 = vpack.c.bf16 %v1282, %v1282
        %v1285 = vld [vmem:[#allocation9 + $0x200] sm:$0xff]
        %v1286 = vld [vmem:[#allocation9 + $0x208] sm:$0xff]
        %v1287 = vld [vmem:[#allocation9 + $0x210] sm:$0xff]
        %v1288 = vld [vmem:[#allocation9 + $0x218] sm:$0xff]
        %v1289 = vld [vmem:[#allocation9 + $0x220] sm:$0xff]
        %v1290 = vld [vmem:[#allocation9 + $0x228] sm:$0xff]
        %v1291 = vld [vmem:[#allocation9 + $0x230] sm:$0xff]
        %v1292 = vld [vmem:[#allocation9 + $0x238] sm:$0xff]
        %v1293 = vld [vmem:[#allocation9 + $0x240] sm:$0xff]
        %v1294 = vld [vmem:[#allocation9 + $0x248] sm:$0xff]
        %v1295 = vld [vmem:[#allocation9 + $0x250] sm:$0xff]
        %v1296 = vld [vmem:[#allocation9 + $0x258] sm:$0xff]
        %v1297 = vld [vmem:[#allocation9 + $0x260] sm:$0xff]
        %v1298 = vld [vmem:[#allocation9 + $0x268] sm:$0xff]
        %v1299 = vld [vmem:[#allocation9 + $0x270] sm:$0xff]
        %v1300 = vld [vmem:[#allocation9 + $0x278] sm:$0xff]
        %v1301 = vld [vmem:[#allocation9 + $0x280] sm:$0xff]
        %v1302 = vld [vmem:[#allocation9 + $0x288] sm:$0xff]
        %v1303 = vld [vmem:[#allocation9 + $0x290] sm:$0xff]
        %v1304 = vld [vmem:[#allocation9 + $0x298] sm:$0xff]
        %v1305 = vld [vmem:[#allocation9 + $0x2a0] sm:$0xff]
        %v1306 = vld [vmem:[#allocation9 + $0x2a8] sm:$0xff]
        %v1307 = vld [vmem:[#allocation9 + $0x2b0] sm:$0xff]
        %v1308 = vld [vmem:[#allocation9 + $0x2b8] sm:$0xff]
        %v1309 = vld [vmem:[#allocation9 + $0x2c0] sm:$0xff]
        %v1310 = vld [vmem:[#allocation9 + $0x2c8] sm:$0xff]
        %v1311 = vld [vmem:[#allocation9 + $0x2d0] sm:$0xff]
        %v1312 = vld [vmem:[#allocation9 + $0x2d8] sm:$0xff]
        %v1313 = vld [vmem:[#allocation9 + $0x2e0] sm:$0xff]
        %v1314 = vld [vmem:[#allocation9 + $0x2e8] sm:$0xff]
        %v1315 = vld [vmem:[#allocation9 + $0x2f0] sm:$0xff]
        %v1316 = vld [vmem:[#allocation9 + $0x2f8] sm:$0xff]
        %v1349 = vunpack.c.l.b16 %v1285
        %v1350 = vunpack.c.h.b16 %v1285
        %v1351 = vunpack.c.l.b16 %v1286
        %v1352 = vunpack.c.h.b16 %v1286
        %v1353 = vunpack.c.l.b16 %v1287
        %v1354 = vunpack.c.h.b16 %v1287
        %v1355 = vunpack.c.l.b16 %v1288
        %v1356 = vunpack.c.h.b16 %v1288
        %v1357 = vunpack.c.l.b16 %v1289
        %v1358 = vunpack.c.h.b16 %v1289
        %v1359 = vunpack.c.l.b16 %v1290
        %v1360 = vunpack.c.h.b16 %v1290
        %v1361 = vunpack.c.l.b16 %v1291
        %v1362 = vunpack.c.h.b16 %v1291
        %v1363 = vunpack.c.l.b16 %v1292
        %v1364 = vunpack.c.h.b16 %v1292
        %v1365 = vunpack.c.l.b16 %v1293
        %v1366 = vunpack.c.h.b16 %v1293
        %v1367 = vunpack.c.l.b16 %v1294
        %v1368 = vunpack.c.h.b16 %v1294
        %v1369 = vunpack.c.l.b16 %v1295
        %v1370 = vunpack.c.h.b16 %v1295
        %v1371 = vunpack.c.l.b16 %v1296
        %v1372 = vunpack.c.h.b16 %v1296
        %v1373 = vunpack.c.l.b16 %v1297
        %v1374 = vunpack.c.h.b16 %v1297
        %v1375 = vunpack.c.l.b16 %v1298
        %v1376 = vunpack.c.h.b16 %v1298
        %v1377 = vunpack.c.l.b16 %v1299
        %v1378 = vunpack.c.h.b16 %v1299
        %v1379 = vunpack.c.l.b16 %v1300
        %v1380 = vunpack.c.h.b16 %v1300
        %v1381 = vunpack.c.l.b16 %v1301
        %v1382 = vunpack.c.h.b16 %v1301
        %v1383 = vunpack.c.l.b16 %v1302
        %v1384 = vunpack.c.h.b16 %v1302
        %v1385 = vunpack.c.l.b16 %v1303
        %v1386 = vunpack.c.h.b16 %v1303
        %v1387 = vunpack.c.l.b16 %v1304
        %v1388 = vunpack.c.h.b16 %v1304
        %v1389 = vunpack.c.l.b16 %v1305
        %v1390 = vunpack.c.h.b16 %v1305
        %v1391 = vunpack.c.l.b16 %v1306
        %v1392 = vunpack.c.h.b16 %v1306
        %v1393 = vunpack.c.l.b16 %v1307
        %v1394 = vunpack.c.h.b16 %v1307
        %v1395 = vunpack.c.l.b16 %v1308
        %v1396 = vunpack.c.h.b16 %v1308
        %v1397 = vunpack.c.l.b16 %v1309
        %v1398 = vunpack.c.h.b16 %v1309
        %v1399 = vunpack.c.l.b16 %v1310
        %v1400 = vunpack.c.h.b16 %v1310
        %v1401 = vunpack.c.l.b16 %v1311
        %v1402 = vunpack.c.h.b16 %v1311
        %v1403 = vunpack.c.l.b16 %v1312
        %v1404 = vunpack.c.h.b16 %v1312
        %v1405 = vunpack.c.l.b16 %v1313
        %v1406 = vunpack.c.h.b16 %v1313
        %v1407 = vunpack.c.l.b16 %v1314
        %v1408 = vunpack.c.h.b16 %v1314
        %v1409 = vunpack.c.l.b16 %v1315
        %v1410 = vunpack.c.h.b16 %v1315
        %v1411 = vunpack.c.l.b16 %v1316
        %v1412 = vunpack.c.h.b16 %v1316
        %v1413 = vpack.c.b16 %v1351, %v1349
        %v1414 = vpack.c.b16 %v1352, %v1350
        %v1415 = vpack.c.b16 %v1355, %v1353
        %v1416 = vpack.c.b16 %v1356, %v1354
        %v1417 = vpack.c.b16 %v1359, %v1357
        %v1418 = vpack.c.b16 %v1360, %v1358
        %v1419 = vpack.c.b16 %v1363, %v1361
        %v1420 = vpack.c.b16 %v1364, %v1362
        %v1421 = vpack.c.b16 %v1367, %v1365
        %v1422 = vpack.c.b16 %v1368, %v1366
        %v1423 = vpack.c.b16 %v1371, %v1369
        %v1424 = vpack.c.b16 %v1372, %v1370
        %v1425 = vpack.c.b16 %v1375, %v1373
        %v1426 = vpack.c.b16 %v1376, %v1374
        %v1427 = vpack.c.b16 %v1379, %v1377
        %v1428 = vpack.c.b16 %v1380, %v1378
        %v1429 = vpack.c.b16 %v1383, %v1381
        %v1430 = vpack.c.b16 %v1384, %v1382
        %v1431 = vpack.c.b16 %v1387, %v1385
        %v1432 = vpack.c.b16 %v1388, %v1386
        %v1433 = vpack.c.b16 %v1391, %v1389
        %v1434 = vpack.c.b16 %v1392, %v1390
        %v1435 = vpack.c.b16 %v1395, %v1393
        %v1436 = vpack.c.b16 %v1396, %v1394
        %v1437 = vpack.c.b16 %v1399, %v1397
        %v1438 = vpack.c.b16 %v1400, %v1398
        %v1439 = vpack.c.b16 %v1403, %v1401
        %v1440 = vpack.c.b16 %v1404, %v1402
        %v1441 = vpack.c.b16 %v1407, %v1405
        %v1442 = vpack.c.b16 %v1408, %v1406
        %v1443 = vpack.c.b16 %v1411, %v1409
        %v1444 = vpack.c.b16 %v1412, %v1410
        %1477 = vmatprep.subr.bf16.mxu0 %v1428
        %1478 = vmatpush1.bf16.msra.mxu0 %v1427
        %1479 = vmatprep.subr.bf16.mxu0 %v1426
        %1480 = vmatpush1.bf16.msra.mxu0 %v1425
        %1481 = vmatprep.subr.bf16.mxu0 %v1424
        %1482 = vmatpush1.bf16.msra.mxu0 %v1423
        %1483 = vmatprep.subr.bf16.mxu0 %v1422
        %1484 = vmatpush1.bf16.msra.mxu0 %v1421
        %1485 = vmatprep.subr.bf16.mxu0 %v1420
        %1486 = vmatpush1.bf16.msra.mxu0 %v1419
        %1487 = vmatprep.subr.bf16.mxu0 %v1418
        %1488 = vmatpush1.bf16.msra.mxu0 %v1417
        %1489 = vmatprep.subr.bf16.mxu0 %v1416
        %1490 = vmatpush1.bf16.msra.mxu0 %v1415
        %1491 = vmatprep.subr.bf16.mxu0 %v1414
        %1492 = vmatpush1.bf16.msra.mxu0 %v1413
        %1493 = vmatprep.subr.bf16.mxu0 %v1444
        %1494 = vmatpush2.bf16.msra.mxu0 %v1443
        %1495 = vmatprep.subr.bf16.mxu0 %v1442
        %1496 = vmatpush2.bf16.msra.mxu0 %v1441
        %1497 = vmatprep.subr.bf16.mxu0 %v1440
        %1498 = vmatpush2.bf16.msra.mxu0 %v1439
        %1499 = vmatprep.subr.bf16.mxu0 %v1438
        %1500 = vmatpush2.bf16.msra.mxu0 %v1437
        %1501 = vmatprep.subr.bf16.mxu0 %v1436
        %1502 = vmatpush2.bf16.msra.mxu0 %v1435
        %1503 = vmatprep.subr.bf16.mxu0 %v1434
        %1504 = vmatpush2.bf16.msra.mxu0 %v1433
        %1505 = vmatprep.subr.bf16.mxu0 %v1432
        %1506 = vmatpush2.bf16.msra.mxu0 %v1431
        %1507 = vmatprep.subr.bf16.mxu0 %v1430
        %1508 = vmatpush2.bf16.msra.mxu0 %v1429
        %1509 = vmatprep.mubr.bf16.mxu0 %v1284
        %1510 = vmatmul.mubr.bf16.gmra.mxu0 %v1283
        %v1511 = vpop.f32.mrf.mxu0
        %v1512 = vadd.f32 0.0, %v1511
        %v1513 = vpop.f32.mrf.mxu0
        %v1514 = vadd.f32 0.0, %v1513
        %v1515 = vpop.f32.mrf.mxu0
        %v1516 = vpop.f32.mrf.mxu0
        %1517 = vdwg.mxu0
        %v1518 = vld [vmem:[#allocation2] sm:$0xff]
        %v1519 = vld [vmem:[#allocation2 + $0x8] sm:$0xff]
        %v1520 = vadd.f32 %v1518, %v1512
        %v1521 = vadd.f32 %v1519, %v1514
        %1522 = vst [vmem:[#allocation2] sm:$0xff] %v1520
        %1523 = vst [vmem:[#allocation2 + $0x8] sm:$0xff] %v1521
        %v1524 = vld [vmem:[#allocation6 + $0x18] sm:$0xff]
        %v1525 = vld [vmem:[#allocation6 + $0x38] sm:$0xff]
        %v1526 = vld [vmem:[#allocation6 + $0x58] sm:$0xff]
        %v1527 = vld [vmem:[#allocation6 + $0x78] sm:$0xff]
        %v1528 = vld [vmem:[#allocation6 + $0x98] sm:$0xff]
        %v1529 = vld [vmem:[#allocation6 + $0xb8] sm:$0xff]
        %v1530 = vld [vmem:[#allocation6 + $0xd8] sm:$0xff]
        %v1531 = vld [vmem:[#allocation6 + $0xf8] sm:$0xff]
        %v1532 = vld [vmem:[#allocation6 + $0x118] sm:$0xff]
        %v1533 = vld [vmem:[#allocation6 + $0x138] sm:$0xff]
        %v1534 = vld [vmem:[#allocation6 + $0x158] sm:$0xff]
        %v1535 = vld [vmem:[#allocation6 + $0x178] sm:$0xff]
        %v1536 = vld [vmem:[#allocation6 + $0x198] sm:$0xff]
        %v1537 = vld [vmem:[#allocation6 + $0x1b8] sm:$0xff]
        %v1538 = vld [vmem:[#allocation6 + $0x1d8] sm:$0xff]
        %v1539 = vld [vmem:[#allocation6 + $0x1f8] sm:$0xff]
        %v1540 = vld [vmem:[#allocation8 + $0x6] sm:$0x3]
        %v1542 = vlaneseq
        %v1543 = vshrl.u32 %v1542, 7
        %v1544 = vsub.s32 0, %v1543
        %v1545 = vrot.slane %v1540, %v1544
        %v1546 = vlaneseq
        %v1547 = vshrl.u32 %v1546, 7
        %v1548 = vsub.s32 1, %v1547
        %v1549 = vrot.slane %v1540, %v1548
        %v1568 = vunpack.c.l.b16 %v1524
        %v1569 = vunpack.c.h.b16 %v1524
        %v1570 = vunpack.c.l.b16 %v1525
        %v1571 = vunpack.c.h.b16 %v1525
        %v1572 = vunpack.c.l.b16 %v1526
        %v1573 = vunpack.c.h.b16 %v1526
        %v1574 = vunpack.c.l.b16 %v1527
        %v1575 = vunpack.c.h.b16 %v1527
        %v1576 = vunpack.c.l.b16 %v1528
        %v1577 = vunpack.c.h.b16 %v1528
        %v1578 = vunpack.c.l.b16 %v1529
        %v1579 = vunpack.c.h.b16 %v1529
        %v1580 = vunpack.c.l.b16 %v1530
        %v1581 = vunpack.c.h.b16 %v1530
        %v1582 = vunpack.c.l.b16 %v1531
        %v1583 = vunpack.c.h.b16 %v1531
        %v1584 = vunpack.c.l.b16 %v1532
        %v1585 = vunpack.c.h.b16 %v1532
        %v1586 = vunpack.c.l.b16 %v1533
        %v1587 = vunpack.c.h.b16 %v1533
        %v1588 = vunpack.c.l.b16 %v1534
        %v1589 = vunpack.c.h.b16 %v1534
        %v1590 = vunpack.c.l.b16 %v1535
        %v1591 = vunpack.c.h.b16 %v1535
        %v1592 = vunpack.c.l.b16 %v1536
        %v1593 = vunpack.c.h.b16 %v1536
        %v1594 = vunpack.c.l.b16 %v1537
        %v1595 = vunpack.c.h.b16 %v1537
        %v1596 = vunpack.c.l.b16 %v1538
        %v1597 = vunpack.c.h.b16 %v1538
        %v1598 = vunpack.c.l.b16 %v1539
        %v1599 = vunpack.c.h.b16 %v1539
        %v1600 = vpack.c.b16 %v1570, %v1568
        %v1601 = vpack.c.b16 %v1571, %v1569
        %v1602 = vpack.c.b16 %v1574, %v1572
        %v1603 = vpack.c.b16 %v1575, %v1573
        %v1604 = vpack.c.b16 %v1578, %v1576
        %v1605 = vpack.c.b16 %v1579, %v1577
        %v1606 = vpack.c.b16 %v1582, %v1580
        %v1607 = vpack.c.b16 %v1583, %v1581
        %v1608 = vpack.c.b16 %v1586, %v1584
        %v1609 = vpack.c.b16 %v1587, %v1585
        %v1610 = vpack.c.b16 %v1590, %v1588
        %v1611 = vpack.c.b16 %v1591, %v1589
        %v1612 = vpack.c.b16 %v1594, %v1592
        %v1613 = vpack.c.b16 %v1595, %v1593
        %v1614 = vpack.c.b16 %v1598, %v1596
        %v1615 = vpack.c.b16 %v1599, %v1597
        %1632 = vmatprep.subr.bf16.mxu0 %v1615
        %1633 = vmatpush1.bf16.msra.mxu0 %v1614
        %1634 = vmatprep.subr.bf16.mxu0 %v1613
        %1635 = vmatpush1.bf16.msra.mxu0 %v1612
        %1636 = vmatprep.subr.bf16.mxu0 %v1611
        %1637 = vmatpush1.bf16.msra.mxu0 %v1610
        %1638 = vmatprep.subr.bf16.mxu0 %v1609
        %1639 = vmatpush1.bf16.msra.mxu0 %v1608
        %1640 = vmatprep.subr.bf16.mxu0 %v1607
        %1641 = vmatpush1.bf16.msra.mxu0 %v1606
        %1642 = vmatprep.subr.bf16.mxu0 %v1605
        %1643 = vmatpush1.bf16.msra.mxu0 %v1604
        %1644 = vmatprep.subr.bf16.mxu0 %v1603
        %1645 = vmatpush1.bf16.msra.mxu0 %v1602
        %1646 = vmatprep.subr.bf16.mxu0 %v1601
        %1647 = vmatpush1.bf16.msra.mxu0 %v1600
        %1648 = vmatprep.subr.bf16.mxu0 0
        %1649 = vmatpush2.bf16.msra.mxu0 0
        %1650 = vmatprep.subr.bf16.mxu0 0
        %1651 = vmatpush2.bf16.msra.mxu0 0
        %1652 = vmatprep.subr.bf16.mxu0 0
        %1653 = vmatpush2.bf16.msra.mxu0 0
        %1654 = vmatprep.subr.bf16.mxu0 0
        %1655 = vmatpush2.bf16.msra.mxu0 0
        %1656 = vmatprep.subr.bf16.mxu0 0
        %1657 = vmatpush2.bf16.msra.mxu0 0
        %1658 = vmatprep.subr.bf16.mxu0 0
        %1659 = vmatpush2.bf16.msra.mxu0 0
        %1660 = vmatprep.subr.bf16.mxu0 0
        %1661 = vmatpush2.bf16.msra.mxu0 0
        %1662 = vmatprep.subr.bf16.mxu0 0
        %1663 = vmatpush2.bf16.msra.mxu0 0
        %1664 = vmatprep.mubr.bf16.mxu0 0
        %1665 = vmatmul.mubr.bf16.gmra.mxu0 %v351
        %v1666 = vpop.f32.mrf.mxu0
        %v1667 = vadd.f32 %v1545, %v1666
        %v1668 = vpop.f32.mrf.mxu0
        %v1669 = vadd.f32 %v1549, %v1668
        %v1670 = vpop.f32.mrf.mxu0
        %v1671 = vpop.f32.mrf.mxu0
        %1672 = vdwg.mxu0
        %v1673 = vmax.f32 %v1667, 0.0
        %v1674 = vmax.f32 %v1669, 0.0
        %v1675 = vpack.c.bf16 %v1673, %v1673
        %v1676 = vpack.c.bf16 %v1674, %v1674
        %v1677 = vld [vmem:[#allocation9 + $0x300] sm:$0xff]
        %v1678 = vld [vmem:[#allocation9 + $0x308] sm:$0xff]
        %v1679 = vld [vmem:[#allocation9 + $0x310] sm:$0xff]
        %v1680 = vld [vmem:[#allocation9 + $0x318] sm:$0xff]
        %v1681 = vld [vmem:[#allocation9 + $0x320] sm:$0xff]
        %v1682 = vld [vmem:[#allocation9 + $0x328] sm:$0xff]
        %v1683 = vld [vmem:[#allocation9 + $0x330] sm:$0xff]
        %v1684 = vld [vmem:[#allocation9 + $0x338] sm:$0xff]
        %v1685 = vld [vmem:[#allocation9 + $0x340] sm:$0xff]
        %v1686 = vld [vmem:[#allocation9 + $0x348] sm:$0xff]
        %v1687 = vld [vmem:[#allocation9 + $0x350] sm:$0xff]
        %v1688 = vld [vmem:[#allocation9 + $0x358] sm:$0xff]
        %v1689 = vld [vmem:[#allocation9 + $0x360] sm:$0xff]
        %v1690 = vld [vmem:[#allocation9 + $0x368] sm:$0xff]
        %v1691 = vld [vmem:[#allocation9 + $0x370] sm:$0xff]
        %v1692 = vld [vmem:[#allocation9 + $0x378] sm:$0xff]
        %v1693 = vld [vmem:[#allocation9 + $0x380] sm:$0xff]
        %v1694 = vld [vmem:[#allocation9 + $0x388] sm:$0xff]
        %v1695 = vld [vmem:[#allocation9 + $0x390] sm:$0xff]
        %v1696 = vld [vmem:[#allocation9 + $0x398] sm:$0xff]
        %v1697 = vld [vmem:[#allocation9 + $0x3a0] sm:$0xff]
        %v1698 = vld [vmem:[#allocation9 + $0x3a8] sm:$0xff]
        %v1699 = vld [vmem:[#allocation9 + $0x3b0] sm:$0xff]
        %v1700 = vld [vmem:[#allocation9 + $0x3b8] sm:$0xff]
        %v1701 = vld [vmem:[#allocation9 + $0x3c0] sm:$0xff]
        %v1702 = vld [vmem:[#allocation9 + $0x3c8] sm:$0xff]
        %v1703 = vld [vmem:[#allocation9 + $0x3d0] sm:$0xff]
        %v1704 = vld [vmem:[#allocation9 + $0x3d8] sm:$0xff]
        %v1705 = vld [vmem:[#allocation9 + $0x3e0] sm:$0xff]
        %v1706 = vld [vmem:[#allocation9 + $0x3e8] sm:$0xff]
        %v1707 = vld [vmem:[#allocation9 + $0x3f0] sm:$0xff]
        %v1708 = vld [vmem:[#allocation9 + $0x3f8] sm:$0xff]
        %v1741 = vunpack.c.l.b16 %v1677
        %v1742 = vunpack.c.h.b16 %v1677
        %v1743 = vunpack.c.l.b16 %v1678
        %v1744 = vunpack.c.h.b16 %v1678
        %v1745 = vunpack.c.l.b16 %v1679
        %v1746 = vunpack.c.h.b16 %v1679
        %v1747 = vunpack.c.l.b16 %v1680
        %v1748 = vunpack.c.h.b16 %v1680
        %v1749 = vunpack.c.l.b16 %v1681
        %v1750 = vunpack.c.h.b16 %v1681
        %v1751 = vunpack.c.l.b16 %v1682
        %v1752 = vunpack.c.h.b16 %v1682
        %v1753 = vunpack.c.l.b16 %v1683
        %v1754 = vunpack.c.h.b16 %v1683
        %v1755 = vunpack.c.l.b16 %v1684
        %v1756 = vunpack.c.h.b16 %v1684
        %v1757 = vunpack.c.l.b16 %v1685
        %v1758 = vunpack.c.h.b16 %v1685
        %v1759 = vunpack.c.l.b16 %v1686
        %v1760 = vunpack.c.h.b16 %v1686
        %v1761 = vunpack.c.l.b16 %v1687
        %v1762 = vunpack.c.h.b16 %v1687
        %v1763 = vunpack.c.l.b16 %v1688
        %v1764 = vunpack.c.h.b16 %v1688
        %v1765 = vunpack.c.l.b16 %v1689
        %v1766 = vunpack.c.h.b16 %v1689
        %v1767 = vunpack.c.l.b16 %v1690
        %v1768 = vunpack.c.h.b16 %v1690
        %v1769 = vunpack.c.l.b16 %v1691
        %v1770 = vunpack.c.h.b16 %v1691
        %v1771 = vunpack.c.l.b16 %v1692
        %v1772 = vunpack.c.h.b16 %v1692
        %v1773 = vunpack.c.l.b16 %v1693
        %v1774 = vunpack.c.h.b16 %v1693
        %v1775 = vunpack.c.l.b16 %v1694
        %v1776 = vunpack.c.h.b16 %v1694
        %v1777 = vunpack.c.l.b16 %v1695
        %v1778 = vunpack.c.h.b16 %v1695
        %v1779 = vunpack.c.l.b16 %v1696
        %v1780 = vunpack.c.h.b16 %v1696
        %v1781 = vunpack.c.l.b16 %v1697
        %v1782 = vunpack.c.h.b16 %v1697
        %v1783 = vunpack.c.l.b16 %v1698
        %v1784 = vunpack.c.h.b16 %v1698
        %v1785 = vunpack.c.l.b16 %v1699
        %v1786 = vunpack.c.h.b16 %v1699
        %v1787 = vunpack.c.l.b16 %v1700
        %v1788 = vunpack.c.h.b16 %v1700
        %v1789 = vunpack.c.l.b16 %v1701
        %v1790 = vunpack.c.h.b16 %v1701
        %v1791 = vunpack.c.l.b16 %v1702
        %v1792 = vunpack.c.h.b16 %v1702
        %v1793 = vunpack.c.l.b16 %v1703
        %v1794 = vunpack.c.h.b16 %v1703
        %v1795 = vunpack.c.l.b16 %v1704
        %v1796 = vunpack.c.h.b16 %v1704
        %v1797 = vunpack.c.l.b16 %v1705
        %v1798 = vunpack.c.h.b16 %v1705
        %v1799 = vunpack.c.l.b16 %v1706
        %v1800 = vunpack.c.h.b16 %v1706
        %v1801 = vunpack.c.l.b16 %v1707
        %v1802 = vunpack.c.h.b16 %v1707
        %v1803 = vunpack.c.l.b16 %v1708
        %v1804 = vunpack.c.h.b16 %v1708
        %v1805 = vpack.c.b16 %v1743, %v1741
        %v1806 = vpack.c.b16 %v1744, %v1742
        %v1807 = vpack.c.b16 %v1747, %v1745
        %v1808 = vpack.c.b16 %v1748, %v1746
        %v1809 = vpack.c.b16 %v1751, %v1749
        %v1810 = vpack.c.b16 %v1752, %v1750
        %v1811 = vpack.c.b16 %v1755, %v1753
        %v1812 = vpack.c.b16 %v1756, %v1754
        %v1813 = vpack.c.b16 %v1759, %v1757
        %v1814 = vpack.c.b16 %v1760, %v1758
        %v1815 = vpack.c.b16 %v1763, %v1761
        %v1816 = vpack.c.b16 %v1764, %v1762
        %v1817 = vpack.c.b16 %v1767, %v1765
        %v1818 = vpack.c.b16 %v1768, %v1766
        %v1819 = vpack.c.b16 %v1771, %v1769
        %v1820 = vpack.c.b16 %v1772, %v1770
        %v1821 = vpack.c.b16 %v1775, %v1773
        %v1822 = vpack.c.b16 %v1776, %v1774
        %v1823 = vpack.c.b16 %v1779, %v1777
        %v1824 = vpack.c.b16 %v1780, %v1778
        %v1825 = vpack.c.b16 %v1783, %v1781
        %v1826 = vpack.c.b16 %v1784, %v1782
        %v1827 = vpack.c.b16 %v1787, %v1785
        %v1828 = vpack.c.b16 %v1788, %v1786
        %v1829 = vpack.c.b16 %v1791, %v1789
        %v1830 = vpack.c.b16 %v1792, %v1790
        %v1831 = vpack.c.b16 %v1795, %v1793
        %v1832 = vpack.c.b16 %v1796, %v1794
        %v1833 = vpack.c.b16 %v1799, %v1797
        %v1834 = vpack.c.b16 %v1800, %v1798
        %v1835 = vpack.c.b16 %v1803, %v1801
        %v1836 = vpack.c.b16 %v1804, %v1802
        %1869 = vmatprep.subr.bf16.mxu0 %v1820
        %1870 = vmatpush1.bf16.msra.mxu0 %v1819
        %1871 = vmatprep.subr.bf16.mxu0 %v1818
        %1872 = vmatpush1.bf16.msra.mxu0 %v1817
        %1873 = vmatprep.subr.bf16.mxu0 %v1816
        %1874 = vmatpush1.bf16.msra.mxu0 %v1815
        %1875 = vmatprep.subr.bf16.mxu0 %v1814
        %1876 = vmatpush1.bf16.msra.mxu0 %v1813
        %1877 = vmatprep.subr.bf16.mxu0 %v1812
        %1878 = vmatpush1.bf16.msra.mxu0 %v1811
        %1879 = vmatprep.subr.bf16.mxu0 %v1810
        %1880 = vmatpush1.bf16.msra.mxu0 %v1809
        %1881 = vmatprep.subr.bf16.mxu0 %v1808
        %1882 = vmatpush1.bf16.msra.mxu0 %v1807
        %1883 = vmatprep.subr.bf16.mxu0 %v1806
        %1884 = vmatpush1.bf16.msra.mxu0 %v1805
        %1885 = vmatprep.subr.bf16.mxu0 %v1836
        %1886 = vmatpush2.bf16.msra.mxu0 %v1835
        %1887 = vmatprep.subr.bf16.mxu0 %v1834
        %1888 = vmatpush2.bf16.msra.mxu0 %v1833
        %1889 = vmatprep.subr.bf16.mxu0 %v1832
        %1890 = vmatpush2.bf16.msra.mxu0 %v1831
        %1891 = vmatprep.subr.bf16.mxu0 %v1830
        %1892 = vmatpush2.bf16.msra.mxu0 %v1829
        %1893 = vmatprep.subr.bf16.mxu0 %v1828
        %1894 = vmatpush2.bf16.msra.mxu0 %v1827
        %1895 = vmatprep.subr.bf16.mxu0 %v1826
        %1896 = vmatpush2.bf16.msra.mxu0 %v1825
        %1897 = vmatprep.subr.bf16.mxu0 %v1824
        %1898 = vmatpush2.bf16.msra.mxu0 %v1823
        %1899 = vmatprep.subr.bf16.mxu0 %v1822
        %1900 = vmatpush2.bf16.msra.mxu0 %v1821
        %1901 = vmatprep.mubr.bf16.mxu0 %v1676
        %1902 = vmatmul.mubr.bf16.gmra.mxu0 %v1675
        %v1903 = vpop.f32.mrf.mxu0
        %v1904 = vadd.f32 0.0, %v1903
        %v1905 = vpop.f32.mrf.mxu0
        %v1906 = vadd.f32 0.0, %v1905
        %v1907 = vpop.f32.mrf.mxu0
        %v1908 = vpop.f32.mrf.mxu0
        %1909 = vdwg.mxu0
        %v1910 = vld [vmem:[#allocation2] sm:$0xff]
        %v1911 = vld [vmem:[#allocation2 + $0x8] sm:$0xff]
        %v1912 = vadd.f32 %v1910, %v1904
        %v1913 = vadd.f32 %v1911, %v1906
        %1914 = vst [vmem:[#allocation2] sm:$0xff] %v1912
        %1915 = vst [vmem:[#allocation2 + $0x8] sm:$0xff] %v1913
        %v1916 = vld [vmem:[#allocation2] sm:$0xff]
        %v1917 = vld [vmem:[#allocation2 + $0x8] sm:$0xff]
        %v1918 = vld [vmem:[%s4] sm:$0x3]
        %v1920 = vlaneseq
        %v1921 = vshrl.u32 %v1920, 7
        %v1922 = vsub.s32 0, %v1921
        %v1923 = vrot.slane %v1918, %v1922
        %v1924 = vlaneseq
        %v1925 = vshrl.u32 %v1924, 7
        %v1926 = vsub.s32 1, %v1925
        %v1927 = vrot.slane %v1918, %v1926
        %v1930 = vadd.f32 %v1916, %v1923
        %v1931 = vadd.f32 %v1917, %v1927
        %v1932 = vmax.f32 %v1930, 0.0
        %v1933 = vmax.f32 %v1931, 0.0
        %v1934 = vpack.c.bf16 %v1932, %v1932
        %v1935 = vpack.c.bf16 %v1933, %v1933
        %v1936 = vld [vmem:[#allocation11] sm:$0xf]
        %v1937 = vld [vmem:[#allocation11 + $0x4] sm:$0xf]
        %v1938 = vld [vmem:[#allocation11 + $0x8] sm:$0xf]
        %v1939 = vld [vmem:[#allocation11 + $0xc] sm:$0xf]
        %v1940 = vld [vmem:[#allocation11 + $0x10] sm:$0xf]
        %v1941 = vld [vmem:[#allocation11 + $0x14] sm:$0xf]
        %v1942 = vld [vmem:[#allocation11 + $0x18] sm:$0xf]
        %v1943 = vld [vmem:[#allocation11 + $0x1c] sm:$0xf]
        %v1944 = vld [vmem:[#allocation11 + $0x20] sm:$0xf]
        %v1945 = vld [vmem:[#allocation11 + $0x24] sm:$0xf]
        %v1946 = vld [vmem:[#allocation11 + $0x28] sm:$0xf]
        %v1947 = vld [vmem:[#allocation11 + $0x2c] sm:$0xf]
        %v1948 = vld [vmem:[#allocation11 + $0x30] sm:$0xf]
        %v1949 = vld [vmem:[#allocation11 + $0x34] sm:$0xf]
        %v1950 = vld [vmem:[#allocation11 + $0x38] sm:$0xf]
        %v1951 = vld [vmem:[#allocation11 + $0x3c] sm:$0xf]
        %v1952 = vld [vmem:[#allocation11 + $0x40] sm:$0xf]
        %v1953 = vld [vmem:[#allocation11 + $0x44] sm:$0xf]
        %v1954 = vld [vmem:[#allocation11 + $0x48] sm:$0xf]
        %v1955 = vld [vmem:[#allocation11 + $0x4c] sm:$0xf]
        %v1956 = vld [vmem:[#allocation11 + $0x50] sm:$0xf]
        %v1957 = vld [vmem:[#allocation11 + $0x54] sm:$0xf]
        %v1958 = vld [vmem:[#allocation11 + $0x58] sm:$0xf]
        %v1959 = vld [vmem:[#allocation11 + $0x5c] sm:$0xf]
        %v1960 = vld [vmem:[#allocation11 + $0x60] sm:$0xf]
        %v1961 = vld [vmem:[#allocation11 + $0x64] sm:$0xf]
        %v1962 = vld [vmem:[#allocation11 + $0x68] sm:$0xf]
        %v1963 = vld [vmem:[#allocation11 + $0x6c] sm:$0xf]
        %v1964 = vld [vmem:[#allocation11 + $0x70] sm:$0xf]
        %v1965 = vld [vmem:[#allocation11 + $0x74] sm:$0xf]
        %v1966 = vld [vmem:[#allocation11 + $0x78] sm:$0xf]
        %v1967 = vld [vmem:[#allocation11 + $0x7c] sm:$0xf]
        %v1968 = vld [vmem:[%s6] sm:$0x1]
        %v1970 = vlaneseq
        %v1971 = vshrl.u32 %v1970, 7
        %v1972 = vsub.s32 0, %v1971
        %v1973 = vrot.slane %v1968, %v1972
        %v2007 = vunpack.c.l.b16 %v1936
        %v2008 = vunpack.c.l.b16 %v1937
        %v2009 = vunpack.c.l.b16 %v1938
        %v2010 = vunpack.c.l.b16 %v1939
        %v2011 = vunpack.c.l.b16 %v1940
        %v2012 = vunpack.c.l.b16 %v1941
        %v2013 = vunpack.c.l.b16 %v1942
        %v2014 = vunpack.c.l.b16 %v1943
        %v2015 = vunpack.c.l.b16 %v1944
        %v2016 = vunpack.c.l.b16 %v1945
        %v2017 = vunpack.c.l.b16 %v1946
        %v2018 = vunpack.c.l.b16 %v1947
        %v2019 = vunpack.c.l.b16 %v1948
        %v2020 = vunpack.c.l.b16 %v1949
        %v2021 = vunpack.c.l.b16 %v1950
        %v2022 = vunpack.c.l.b16 %v1951
        %v2023 = vunpack.c.l.b16 %v1952
        %v2024 = vunpack.c.l.b16 %v1953
        %v2025 = vunpack.c.l.b16 %v1954
        %v2026 = vunpack.c.l.b16 %v1955
        %v2027 = vunpack.c.l.b16 %v1956
        %v2028 = vunpack.c.l.b16 %v1957
        %v2029 = vunpack.c.l.b16 %v1958
        %v2030 = vunpack.c.l.b16 %v1959
        %v2031 = vunpack.c.l.b16 %v1960
        %v2032 = vunpack.c.l.b16 %v1961
        %v2033 = vunpack.c.l.b16 %v1962
        %v2034 = vunpack.c.l.b16 %v1963
        %v2035 = vunpack.c.l.b16 %v1964
        %v2036 = vunpack.c.l.b16 %v1965
        %v2037 = vunpack.c.l.b16 %v1966
        %v2038 = vunpack.c.l.b16 %v1967
        %v2039 = vpack.c.b16 %v2008, %v2007
        %v2040 = vpack.c.b16 %v2010, %v2009
        %v2041 = vpack.c.b16 %v2012, %v2011
        %v2042 = vpack.c.b16 %v2014, %v2013
        %v2043 = vpack.c.b16 %v2016, %v2015
        %v2044 = vpack.c.b16 %v2018, %v2017
        %v2045 = vpack.c.b16 %v2020, %v2019
        %v2046 = vpack.c.b16 %v2022, %v2021
        %v2047 = vpack.c.b16 %v2024, %v2023
        %v2048 = vpack.c.b16 %v2026, %v2025
        %v2049 = vpack.c.b16 %v2028, %v2027
        %v2050 = vpack.c.b16 %v2030, %v2029
        %v2051 = vpack.c.b16 %v2032, %v2031
        %v2052 = vpack.c.b16 %v2034, %v2033
        %v2053 = vpack.c.b16 %v2036, %v2035
        %v2054 = vpack.c.b16 %v2038, %v2037
        %2071 = vmatprep.subr.bf16.mxu0 0
        %2072 = vmatpush1.bf16.msra.mxu0 %v2046
        %2073 = vmatprep.subr.bf16.mxu0 0
        %2074 = vmatpush1.bf16.msra.mxu0 %v2045
        %2075 = vmatprep.subr.bf16.mxu0 0
        %2076 = vmatpush1.bf16.msra.mxu0 %v2044
        %2077 = vmatprep.subr.bf16.mxu0 0
        %2078 = vmatpush1.bf16.msra.mxu0 %v2043
        %2079 = vmatprep.subr.bf16.mxu0 0
        %2080 = vmatpush1.bf16.msra.mxu0 %v2042
        %2081 = vmatprep.subr.bf16.mxu0 0
        %2082 = vmatpush1.bf16.msra.mxu0 %v2041
        %2083 = vmatprep.subr.bf16.mxu0 0
        %2084 = vmatpush1.bf16.msra.mxu0 %v2040
        %2085 = vmatprep.subr.bf16.mxu0 0
        %2086 = vmatpush1.bf16.msra.mxu0 %v2039
        %2087 = vmatprep.subr.bf16.mxu0 0
        %2088 = vmatpush2.bf16.msra.mxu0 %v2054
        %2089 = vmatprep.subr.bf16.mxu0 0
        %2090 = vmatpush2.bf16.msra.mxu0 %v2053
        %2091 = vmatprep.subr.bf16.mxu0 0
        %2092 = vmatpush2.bf16.msra.mxu0 %v2052
        %2093 = vmatprep.subr.bf16.mxu0 0
        %2094 = vmatpush2.bf16.msra.mxu0 %v2051
        %2095 = vmatprep.subr.bf16.mxu0 0
        %2096 = vmatpush2.bf16.msra.mxu0 %v2050
        %2097 = vmatprep.subr.bf16.mxu0 0
        %2098 = vmatpush2.bf16.msra.mxu0 %v2049
        %2099 = vmatprep.subr.bf16.mxu0 0
        %2100 = vmatpush2.bf16.msra.mxu0 %v2048
        %2101 = vmatprep.subr.bf16.mxu0 0
        %2102 = vmatpush2.bf16.msra.mxu0 %v2047
        %2103 = vmatprep.mubr.bf16.mxu0 %v1935
        %2104 = vmatmul.mubr.bf16.gmra.mxu0 %v1934
        %v2105 = vpop.f32.mrf.mxu0
        %v2106 = vadd.f32 %v1973, %v2105
        %v2107 = vpop.f32.mrf.mxu0
        %v2108 = vpop.f32.mrf.mxu0
        %v2109 = vpop.f32.mrf.mxu0
        %2110 = vdwg.mxu0
        %v2111 = vpack.c.bf16 %v2106, %v2106
        %2112 = vst [vmem:[%s349] sm:$0xf] %v2111
        %s2113 = sand.u32 %s186, 1
        %s2114 = scalar_lea.sflag [#allocation5], %s2113
        %s2115 = sand.u32 %s186, 1
        %s2116 = smul.addr %s2115, 4
        %s2117 = scalar_lea.vmem [#allocation12], %s2116
        // Predicated region
        $region69: #{tpu_custom_call.1} parent=47 // pred_check
          %p2118 = pneg %p196
        $region70: #{tpu_custom_call.1} parent=47 // pred_check_branch
          %2120 = sbr.rel (%p2118) target = $region72
        $region71: #{tpu_custom_call.1} parent=47 // pred_region
          %s2122 = ssub.s32 64, 64
          %2123 = vsyncadd %s2114, %s2122
          %s2124 = smul.addr %s26, 64
          %s2125 = scalar_lea.hbm %s7, %s2124
          %s2127 = sshll.u32 %s2117, 4
          %s2128 = int_to_ptr.vmem [resolvable:$true] %s2127
          %2130 = dma.vmem_to_hbm [thread:$0]  %s2128, 64, %s2125, %s2114
        $region72: #{tpu_custom_call.1} parent=47 // pred_fallthru
          _
      $region48: #{tpu_custom_call.1} parent=5 // pred_fallthru
        _
      %p2131 = scmp.le.s32.totalorder 2, %s21
      // Predicated region
      $region73: #{tpu_custom_call.1} parent=5 // pred_check
        %p2132 = pneg %p2131
      $region74: #{tpu_custom_call.1} parent=5 // pred_check_branch
        %2134 = sbr.rel (%p2132) target = $region76
      $region75: #{tpu_custom_call.1} parent=5 // pred_region
        %s2135 = ssub.s32 %s21, 2
        // Predicated region
        $region77: #{tpu_custom_call.1} parent=75 // pred_check
          %p2136 = pneg %p202
        $region78: #{tpu_custom_call.1} parent=75 // pred_check_branch
          %2138 = sbr.rel (%p2136) target = $region80
        $region79: #{tpu_custom_call.1} parent=75 // pred_region
          %s2139 = sand.u32 %s187, 1
          %s2140 = scalar_lea.sflag [#allocation5], %s2139
          %s2141 = sand.u32 %s187, 1
          %s2142 = smul.addr %s2141, 4
          %s2143 = scalar_lea.vmem [#allocation12], %s2142
          %2144 = dma.done %s2140, 64
        $region80: #{tpu_custom_call.1} parent=75 // pred_fallthru
          _
      $region76: #{tpu_custom_call.1} parent=5 // pred_fallthru
        _
    $region6: #{tpu_custom_call.1} parent=1 // loop_footer
      %s25 = sadd.s32 1, %s21
    $region7: #{tpu_custom_call.1} parent=1 // loop_footer_branch
      %20 = sbr.rel target = $region3
    $region8: #{tpu_custom_call.1} parent=1 // loop_exit
      _
    %2145 = vsyncpa [#allocation4], 1
    %s2146 = scalar_lea.sflag [#allocation4], 1
    %2147 = vsyncpa %s2146, 1
    %2148 = vsyncpa [#allocation7], 1
    %2149 = vsyncpa [#allocation10], 1
    %2150 = vsyncpa [#allocation5], 1
    %s2151 = scalar_lea.sflag [#allocation5], 1
    %2152 = vsyncpa %s2151, 1

// kernel: tpu_custom_call.1
$region0: #{tpu_custom_call.1}
  #allocation0 [shape = 'u32[]', space=smem, size = 0x4, offset = 0x4, fixed_abs, tag = 'smem constant byte address 0x4 - core index']
  #allocation1 [shape = 'u32[144,128]{1,0:T(1,128)}', space=vmem, size = 0x12000, scoped, tag = 'internal scratch']
  #allocation2 [shape = 'f32[8,256]{1,0:T(8,128)}', space=vmem, size = 0x2000, scoped, tag = 'scratch operand']
  %s0 = inlined_call_operand.hbm [shape: bf16[16,128], index: 0, kind: input, shape index: {}]
  %s1 = inlined_call_operand.hbm [shape: bf16[128,1024], index: 1, kind: input, shape index: {}]
  %s2 = inlined_call_operand.hbm [shape: f32[1,1024], index: 2, kind: input, shape index: {}]
  %s3 = inlined_call_operand.hbm [shape: bf16[1024,256], index: 3, kind: input, shape index: {}]
  %s4 = inlined_call_operand.vmem [shape: f32[1,256], index: 4, kind: input, shape index: {}]
  %s5 = inlined_call_operand.hbm [shape: bf16[256,128], index: 5, kind: input, shape index: {}]
  %s6 = inlined_call_operand.vmem [shape: f32[1,128], index: 6, kind: input, shape index: {}]
  %s7 = inlined_call_operand.hbm [shape: bf16[16,128], index: 7, kind: output, shape index: {}]
  %s8 = sld [smem:[#allocation0]]
  $region81: #{tpu_custom_call.1} parent=0
    _
  %s10 = ssub.s32 1, %s8
  %s11 = scalar_select 0, %s10, %s8
  $region1: #{tpu_custom_call.1} parent=0
    #allocation3 [shape = 'u8[4096]{0}', space=vmem, size = 0x1000, scoped, tag = 'input window, operand 0']
    #allocation4 [shape = 's32[2]{0}', space=sflag, size = 0x8, scoped, tag = 'scoped memory for tpu_custom_call.1']
    #allocation5 [shape = 's32[2]{0}', space=sflag, size = 0x8, scoped, tag = 'scoped memory for tpu_custom_call.1']
    #allocation6 [shape = 'u8[262144]{0}', space=vmem, size = 0x40000, scoped, tag = 'input window, operand 1, single buffered']
    #allocation7 [shape = 's32[1]{0}', space=sflag, size = 0x4, scoped, tag = 'scoped memory for tpu_custom_call.1']
    #allocation8 [shape = 'u8[4096]{0}', space=vmem, size = 0x1000, scoped, tag = 'input window, operand 2, single buffered']
    #allocation9 [shape = 'u8[524288]{0}', space=vmem, size = 0x80000, scoped, tag = 'input window, operand 3, single buffered']
    #allocation10 [shape = 's32[1]{0}', space=sflag, size = 0x4, scoped, tag = 'scoped memory for tpu_custom_call.1']
    #allocation11 [shape = 'u8[65536]{0}', space=vmem, size = 0x10000, scoped, tag = 'input window, operand 5, single buffered']
    #allocation12 [shape = 'u8[4096]{0}', space=vmem, size = 0x1000, scoped, tag = 'output window, operand 0']
    %12 = vsyncpa [#allocation4], 0
    %s13 = scalar_lea.sflag [#allocation4], 1
    %14 = vsyncpa %s13, 0
    %15 = vsyncpa [#allocation7], 0
    %16 = vsyncpa [#allocation10], 0
    %17 = vsyncpa [#allocation5], 0
    %s18 = scalar_lea.sflag [#allocation5], 1
    %19 = vsyncpa %s18, 0
    loop: start=0, step=1, limit=4
    $region2: #{tpu_custom_call.1} parent=1 // loop_pre_header
      _
    $region3: #{tpu_custom_call.1} parent=1 // loop_header
      %s21 = sphi 0, %s25
      %p22 = scmp.ge.s32.totalorder %s21, 4
      %s31 = sphi 0, %s33
      %s34 = sphi 0, %s31
      %s35 = sphi 0, %s34
      %s51 = sphi 0, %s35
      %s55 = sphi 0, %s55
      %s57 = sphi 0, %s55
      %s58 = sphi 0, %s57
      %s72 = sphi 0, %s58
      %s76 = sphi 0, %s76
      %s78 = sphi 0, %s76
      %s79 = sphi 0, %s78
      %s93 = sphi 0, %s79
      %s97 = sphi 0, %s97
      %s99 = sphi 0, %s97
      %s100 = sphi 0, %s99
      %s114 = sphi 0, %s100
      %s118 = sphi 0, %s118
      %s120 = sphi 0, %s118
      %s121 = sphi 0, %s120
      %s135 = sphi 0, %s121
      %s139 = sphi 0, %s139
      %s141 = sphi 0, %s139
      %s142 = sphi 0, %s141
      %s156 = sphi 0, %s142
      %s160 = sphi 0, %s160
      %s162 = sphi 0, %s160
      %s163 = sphi 0, %s162
      %s177 = sphi 0, %s163
      %s183 = sphi 0, %s185
      %s186 = sphi 0, %s183
      %s187 = sphi 0, %s186
      %s203 = sphi 0, %s187
    $region4: #{tpu_custom_call.1} parent=1 // loop_header_branch
      %24 = sbr.rel (%p22) target = $region8
    $region5: #{tpu_custom_call.1} parent=1 // loop_body
      %s26 = ssub.s32 %s21, 1
      %s27 = ssub.s32 %s21, 2
      %s28 = sadd.s32 %s21, 1
      %s29 = ssub.s32 %s21, %s28
      %p30 = scmp.eq.s32.totalorder %s29, 0
      %s32 = sadd.s32 %s31, 1
      %s33 = scalar_select %p30, %s31, %s32
      %p36 = pneg %p30
      %p37 = scmp.eq.s32.totalorder %s21, 1
      %p38 = por %p36, %p37
      %p39 = scmp.ne.s32.totalorder %s31, %s34
      %p40 = scmp.eq.s32.totalorder %s21, 0
      %p41 = por %p39, %p40
      %p42 = scmp.ne.s32.totalorder %s31, %s34
      %p43 = scmp.eq.s32.totalorder %s26, 1
      %p44 = por %p42, %p43
      %p45 = scmp.ne.s32.totalorder %s34, %s35
      %p46 = scmp.eq.s32.totalorder %s26, 0
      %p47 = por %p45, %p46
      %p48 = scmp.ne.s32.totalorder %s34, %s35
      %p49 = scmp.eq.s32.totalorder %s27, 1
      %p50 = por %p48, %p49
      %p52 = scmp.ne.s32.totalorder %s35, %s51
      %p53 = scmp.eq.s32.totalorder %s27, 0
      %p54 = por %p52, %p53
      %s56 = sadd.s32 %s55, 1
      %p59 = scmp.eq.s32.totalorder %s21, 1
      %p60 = scmp.ne.s32.totalorder %s55, %s57
      %p61 = scmp.eq.s32.totalorder %s21, 0
      %p62 = por %p60, %p61
      %p63 = scmp.ne.s32.totalorder %s55, %s57
      %p64 = scmp.eq.s32.totalorder %s26, 1
      %p65 = por %p63, %p64
      %p66 = scmp.ne.s32.totalorder %s57, %s58
      %p67 = scmp.eq.s32.totalorder %s26, 0
      %p68 = por %p66, %p67
      %p69 = scmp.ne.s32.totalorder %s57, %s58
      %p70 = scmp.eq.s32.totalorder %s27, 1
      %p71 = por %p69, %p70
      %p73 = scmp.ne.s32.totalorder %s58, %s72
      %p74 = scmp.eq.s32.totalorder %s27, 0
      %p75 = por %p73, %p74
      %s77 = sadd.s32 %s76, 1
      %p80 = scmp.eq.s32.totalorder %s21, 1
      %p81 = scmp.ne.s32.totalorder %s76, %s78
      %p82 = scmp.eq.s32.totalorder %s21, 0
      %p83 = por %p81, %p82
      %p84 = scmp.ne.s32.totalorder %s76, %s78
      %p85 = scmp.eq.s32.totalorder %s26, 1
      %p86 = por %p84, %p85
      %p87 = scmp.ne.s32.totalorder %s78, %s79
      %p88 = scmp.eq.s32.totalorder %s26, 0
      %p89 = por %p87, %p88
      %p90 = scmp.ne.s32.totalorder %s78, %s79
      %p91 = scmp.eq.s32.totalorder %s27, 1
      %p92 = por %p90, %p91
      %p94 = scmp.ne.s32.totalorder %s79, %s93
      %p95 = scmp.eq.s32.totalorder %s27, 0
      %p96 = por %p94, %p95
      %s98 = sadd.s32 %s97, 1
      %p101 = scmp.eq.s32.totalorder %s21, 1
      %p102 = scmp.ne.s32.totalorder %s97, %s99
      %p103 = scmp.eq.s32.totalorder %s21, 0
      %p104 = por %p102, %p103
      %p105 = scmp.ne.s32.totalorder %s97, %s99
      %p106 = scmp.eq.s32.totalorder %s26, 1
      %p107 = por %p105, %p106
      %p108 = scmp.ne.s32.totalorder %s99, %s100
      %p109 = scmp.eq.s32.totalorder %s26, 0
      %p110 = por %p108, %p109
      %p111 = scmp.ne.s32.totalorder %s99, %s100
      %p112 = scmp.eq.s32.totalorder %s27, 1
      %p113 = por %p111, %p112
      %p115 = scmp.ne.s32.totalorder %s100, %s114
      %p116 = scmp.eq.s32.totalorder %s27, 0
      %p117 = por %p115, %p116
      %s119 = sadd.s32 %s118, 1
      %p122 = scmp.eq.s32.totalorder %s21, 1
      %p123 = scmp.ne.s32.totalorder %s118, %s120
      %p124 = scmp.eq.s32.totalorder %s21, 0
      %p125 = por %p123, %p124
      %p126 = scmp.ne.s32.totalorder %s118, %s120
      %p127 = scmp.eq.s32.totalorder %s26, 1
      %p128 = por %p126, %p127
      %p129 = scmp.ne.s32.totalorder %s120, %s121
      %p130 = scmp.eq.s32.totalorder %s26, 0
      %p131 = por %p129, %p130
      %p132 = scmp.ne.s32.totalorder %s120, %s121
      %p133 = scmp.eq.s32.totalorder %s27, 1
      %p134 = por %p132, %p133
      %p136 = scmp.ne.s32.totalorder %s121, %s135
      %p137 = scmp.eq.s32.totalorder %s27, 0
      %p138 = por %p136, %p137
      %s140 = sadd.s32 %s139, 1
      %p143 = scmp.eq.s32.totalorder %s21, 1
      %p144 = scmp.ne.s32.totalorder %s139, %s141
      %p145 = scmp.eq.s32.totalorder %s21, 0
      %p146 = por %p144, %p145
      %p147 = scmp.ne.s32.totalorder %s139, %s141
      %p148 = scmp.eq.s32.totalorder %s26, 1
      %p149 = por %p147, %p148
      %p150 = scmp.ne.s32.totalorder %s141, %s142
      %p151 = scmp.eq.s32.totalorder %s26, 0
      %p152 = por %p150, %p151
      %p153 = scmp.ne.s32.totalorder %s141, %s142
      %p154 = scmp.eq.s32.totalorder %s27, 1
      %p155 = por %p153, %p154
      %p157 = scmp.ne.s32.totalorder %s142, %s156
      %p158 = scmp.eq.s32.totalorder %s27, 0
      %p159 = por %p157, %p158
      %s161 = sadd.s32 %s160, 1
      %p164 = scmp.eq.s32.totalorder %s21, 1
      %p165 = scmp.ne.s32.totalorder %s160, %s162
      %p166 = scmp.eq.s32.totalorder %s21, 0
      %p167 = por %p165, %p166
      %p168 = scmp.ne.s32.totalorder %s160, %s162
      %p169 = scmp.eq.s32.totalorder %s26, 1
      %p170 = por %p168, %p169
      %p171 = scmp.ne.s32.totalorder %s162, %s163
      %p172 = scmp.eq.s32.totalorder %s26, 0
      %p173 = por %p171, %p172
      %p174 = scmp.ne.s32.totalorder %s162, %s163
      %p175 = scmp.eq.s32.totalorder %s27, 1
      %p176 = por %p174, %p175
      %p178 = scmp.ne.s32.totalorder %s163, %s177
      %p179 = scmp.eq.s32.totalorder %s27, 0
      %p180 = por %p178, %p179
      %s181 = ssub.s32 %s21, %s28
      %p182 = scmp.eq.s32.totalorder %s181, 0
      %s184 = sadd.s32 %s183, 1
      %s185 = scalar_select %p182, %s183, %s184
      %p188 = pneg %p182
      %p189 = scmp.eq.s32.totalorder %s21, 1
      %p190 = por %p188, %p189
      %p191 = scmp.ne.s32.totalorder %s183, %s186
      %p192 = scmp.eq.s32.totalorder %s21, 0
      %p193 = por %p191, %p192
      %p194 = scmp.ne.s32.totalorder %s183, %s186
      %p195 = scmp.eq.s32.totalorder %s26, 1
      %p196 = por %p194, %p195
      %p197 = scmp.ne.s32.totalorder %s186, %s187
      %p198 = scmp.eq.s32.totalorder %s26, 0
      %p199 = por %p197, %p198
      %p200 = scmp.ne.s32.totalorder %s186, %s187
      %p201 = scmp.eq.s32.totalorder %s27, 1
      %p202 = por %p200, %p201
      %p204 = scmp.ne.s32.totalorder %s187, %s203
      %p205 = scmp.eq.s32.totalorder %s27, 0
      %p206 = por %p204, %p205
      %p207 = scmp.le.s32.totalorder 1, %s21
      %p208 = scmp.lt.s32.totalorder %s21, 3
      %p209 = pnand %p207, %p208
      %p210 = pneg %p209
      // Predicated region
      $region9: #{tpu_custom_call.1} parent=5 // pred_check
        _
      $region10: #{tpu_custom_call.1} parent=5 // pred_check_branch
        %212 = sbr.rel (%p209) target = $region12
      $region11: #{tpu_custom_call.1} parent=5 // pred_region
        %s213 = ssub.s32 %s21, 1
        // Predicated region
        $region13: #{tpu_custom_call.1} parent=11 // pred_check
          %p214 = pneg %p68
        $region14: #{tpu_custom_call.1} parent=11 // pred_check_branch
          %216 = sbr.rel (%p214) target = $region16
        $region15: #{tpu_custom_call.1} parent=11 // pred_region
          %s218 = ssub.s32 8192, 8192
          %219 = vsyncadd [#allocation7], %s218
          %s220 = sshll.u32 [#allocation6], 4
          %s221 = int_to_ptr.vmem [resolvable:$true] %s220
          %226 = dma.hbm_to_vmem [thread:$0]  %s1, 8192, %s221, [#allocation7], 512, 512, 32
        $region16: #{tpu_custom_call.1} parent=11 // pred_fallthru
          _
        // Predicated region
        $region17: #{tpu_custom_call.1} parent=11 // pred_check
          %p227 = pneg %p89
        $region18: #{tpu_custom_call.1} parent=11 // pred_check_branch
          %229 = sbr.rel (%p227) target = $region20
        $region19: #{tpu_custom_call.1} parent=11 // pred_region
          %s231 = ssub.s32 128, 128
          %232 = vsyncadd [#allocation7], %s231
          %s234 = sshll.u32 [#allocation8], 4
          %s235 = int_to_ptr.vmem [resolvable:$true] %s234
          %237 = dma.hbm_to_vmem [thread:$0]  %s2, 128, %s235, [#allocation7]
        $region20: #{tpu_custom_call.1} parent=11 // pred_fallthru
          _
        // Predicated region
        $region21: #{tpu_custom_call.1} parent=11 // pred_check
          %p238 = pneg %p110
        $region22: #{tpu_custom_call.1} parent=11 // pred_check_branch
          %240 = sbr.rel (%p238) target = $region24
        $region23: #{tpu_custom_call.1} parent=11 // pred_region
          %s242 = ssub.s32 16384, 16384
          %243 = vsyncadd [#allocation10], %s242
          %s244 = sshll.u32 [#allocation9], 4
          %s245 = int_to_ptr.vmem [resolvable:$true] %s244
          %250 = dma.hbm_to_vmem [thread:$0]  %s3, 16384, %s245, [#allocation10], 128, 128, 8
        $region24: #{tpu_custom_call.1} parent=11 // pred_fallthru
          _
        // Predicated region
        $region25: #{tpu_custom_call.1} parent=11 // pred_check
          %p251 = pneg %p131
        $region26: #{tpu_custom_call.1} parent=11 // pred_check_branch
          %253 = sbr.rel (%p251) target = $region28
        $region27: #{tpu_custom_call.1} parent=11 // pred_region
          _
        $region28: #{tpu_custom_call.1} parent=11 // pred_fallthru
          _
        // Predicated region
        $region29: #{tpu_custom_call.1} parent=11 // pred_check
          %p254 = pneg %p152
        $region30: #{tpu_custom_call.1} parent=11 // pred_check_branch
          %256 = sbr.rel (%p254) target = $region32
        $region31: #{tpu_custom_call.1} parent=11 // pred_region
          %s258 = ssub.s32 2048, 2048
          %259 = vsyncadd [#allocation10], %s258
          %s260 = sshll.u32 [#allocation11], 4
          %s261 = int_to_ptr.vmem [resolvable:$true] %s260
          %266 = dma.hbm_to_vmem [thread:$0]  %s5, 2048, %s261, [#allocation10], 64, 64, 4
        $region32: #{tpu_custom_call.1} parent=11 // pred_fallthru
          _
        // Predicated region
        $region33: #{tpu_custom_call.1} parent=11 // pred_check
          %p267 = pneg %p173
        $region34: #{tpu_custom_call.1} parent=11 // pred_check_branch
          %269 = sbr.rel (%p267) target = $region36
        $region35: #{tpu_custom_call.1} parent=11 // pred_region
          _
        $region36: #{tpu_custom_call.1} parent=11 // pred_fallthru
          _
      $region12: #{tpu_custom_call.1} parent=5 // pred_fallthru
        _
      %p270 = scmp.lt.s32.totalorder %s21, 2
      // Predicated region
      $region37: #{tpu_custom_call.1} parent=5 // pred_check
        %p271 = pneg %p270
      $region38: #{tpu_custom_call.1} parent=5 // pred_check_branch
        %273 = sbr.rel (%p271) target = $region40
      $region39: #{tpu_custom_call.1} parent=5 // pred_region
        // Predicated region
        $region41: #{tpu_custom_call.1} parent=39 // pred_check
          %p274 = pneg %p41
        $region42: #{tpu_custom_call.1} parent=39 // pred_check_branch
          %276 = sbr.rel (%p274) target = $region44
        $region43: #{tpu_custom_call.1} parent=39 // pred_region
          %s277 = sand.u32 %s31, 1
          %s278 = scalar_lea.sflag [#allocation4], %s277
          %s279 = sand.u32 %s31, 1
          %s280 = smul.addr %s279, 4
          %s281 = scalar_lea.vmem [#allocation3], %s280
          %s283 = ssub.s32 64, 64
          %284 = vsyncadd %s278, %s283
          %s285 = smul.addr %s21, 64
          %s286 = scalar_lea.hbm %s0, %s285
          %s288 = sshll.u32 %s281, 4
          %s289 = int_to_ptr.vmem [resolvable:$true] %s288
          %291 = dma.hbm_to_vmem [thread:$0]  %s286, 64, %s289, %s278
        $region44: #{tpu_custom_call.1} parent=39 // pred_fallthru
          _
      $region40: #{tpu_custom_call.1} parent=5 // pred_fallthru
        _
      %p292 = scmp.le.s32.totalorder 1, %s21
      %p293 = scmp.lt.s32.totalorder %s21, 3
      %p294 = pnand %p292, %p293
      %p295 = pneg %p294
      // Predicated region
      $region45: #{tpu_custom_call.1} parent=5 // pred_check
        _
      $region46: #{tpu_custom_call.1} parent=5 // pred_check_branch
        %297 = sbr.rel (%p294) target = $region48
      $region47: #{tpu_custom_call.1} parent=5 // pred_region
        %s298 = ssub.s32 %s21, 1
        %s299 = sand.u32 %s34, 1
        %s300 = scalar_lea.sflag [#allocation4], %s299
        %s301 = sand.u32 %s34, 1
        %s302 = smul.addr %s301, 4
        %s303 = scalar_lea.vmem [#allocation3], %s302
        // Predicated region
        $region49: #{tpu_custom_call.1} parent=47 // pred_check
          %p304 = pneg %p47
        $region50: #{tpu_custom_call.1} parent=47 // pred_check_branch
          %306 = sbr.rel (%p304) target = $region52
        $region51: #{tpu_custom_call.1} parent=47 // pred_region
          %307 = dma.done %s300, 64
        $region52: #{tpu_custom_call.1} parent=47 // pred_fallthru
          _
        // Predicated region
        $region53: #{tpu_custom_call.1} parent=47 // pred_check
          %p308 = pneg %p68
        $region54: #{tpu_custom_call.1} parent=47 // pred_check_branch
          %310 = sbr.rel (%p308) target = $region56
        $region55: #{tpu_custom_call.1} parent=47 // pred_region
          %311 = dma.done [#allocation7], 8192
        $region56: #{tpu_custom_call.1} parent=47 // pred_fallthru
          _
        // Predicated region
        $region57: #{tpu_custom_call.1} parent=47 // pred_check
          %p312 = pneg %p89
        $region58: #{tpu_custom_call.1} parent=47 // pred_check_branch
          %314 = sbr.rel (%p312) target = $region60
        $region59: #{tpu_custom_call.1} parent=47 // pred_region
          %315 = dma.done [#allocation7], 128
        $region60: #{tpu_custom_call.1} parent=47 // pred_fallthru
          _
        // Predicated region
        $region61: #{tpu_custom_call.1} parent=47 // pred_check
          %p316 = pneg %p110
        $region62: #{tpu_custom_call.1} parent=47 // pred_check_branch
          %318 = sbr.rel (%p316) target = $region64
        $region63: #{tpu_custom_call.1} parent=47 // pred_region
          %319 = dma.done [#allocation10], 16384
        $region64: #{tpu_custom_call.1} parent=47 // pred_fallthru
          _
        // Predicated region
        $region65: #{tpu_custom_call.1} parent=47 // pred_check
          %p320 = pneg %p152
        $region66: #{tpu_custom_call.1} parent=47 // pred_check_branch
          %322 = sbr.rel (%p320) target = $region68
        $region67: #{tpu_custom_call.1} parent=47 // pred_region
          %323 = dma.done [#allocation10], 2048
        $region68: #{tpu_custom_call.1} parent=47 // pred_fallthru
          _
        %s324 = sand.u32 %s34, 1
        %s325 = scalar_lea.sflag [#allocation4], %s324
        %s326 = sand.u32 %s34, 1
        %s327 = smul.addr %s326, 4
        %s328 = scalar_lea.vmem [#allocation3], %s327
        %p329 = pneg %p47
        %p330 = pneg %p44
        %p331 = pneg %p68
        %p332 = pneg %p65
        %p333 = pneg %p89
        %p334 = pneg %p86
        %p335 = pneg %p110
        %p336 = pneg %p107
        %p337 = pneg %p131
        %p338 = pneg %p128
        %p339 = pneg %p152
        %p340 = pneg %p149
        %p341 = pneg %p173
        %p342 = pneg %p170
        %p343 = pneg %p199
        %p344 = pneg %p196
        %s345 = sand.u32 %s186, 1
        %s346 = scalar_lea.sflag [#allocation5], %s345
        %s347 = sand.u32 %s186, 1
        %s348 = smul.addr %s347, 4
        %s349 = scalar_lea.vmem [#allocation12], %s348
        %v351 = vld [vmem:[%s303] sm:$0xf]
        %v352 = vld [vmem:[#allocation6] sm:$0xff]
        %v353 = vld [vmem:[#allocation6 + $0x20] sm:$0xff]
        %v354 = vld [vmem:[#allocation6 + $0x40] sm:$0xff]
        %v355 = vld [vmem:[#allocation6 + $0x60] sm:$0xff]
        %v356 = vld [vmem:[#allocation6 + $0x80] sm:$0xff]
        %v357 = vld [vmem:[#allocation6 + $0xa0] sm:$0xff]
        %v358 = vld [vmem:[#allocation6 + $0xc0] sm:$0xff]
        %v359 = vld [vmem:[#allocation6 + $0xe0] sm:$0xff]
        %v360 = vld [vmem:[#allocation6 + $0x100] sm:$0xff]
        %v361 = vld [vmem:[#allocation6 + $0x120] sm:$0xff]
        %v362 = vld [vmem:[#allocation6 + $0x140] sm:$0xff]
        %v363 = vld [vmem:[#allocation6 + $0x160] sm:$0xff]
        %v364 = vld [vmem:[#allocation6 + $0x180] sm:$0xff]
        %v365 = vld [vmem:[#allocation6 + $0x1a0] sm:$0xff]
        %v366 = vld [vmem:[#allocation6 + $0x1c0] sm:$0xff]
        %v367 = vld [vmem:[#allocation6 + $0x1e0] sm:$0xff]
        %v368 = vld [vmem:[#allocation8] sm:$0x3]
        %v370 = vlaneseq
        %v371 = vshrl.u32 %v370, 7
        %v372 = vsub.s32 0, %v371
        %v373 = vrot.slane %v368, %v372
        %v374 = vlaneseq
        %v375 = vshrl.u32 %v374, 7
        %v376 = vsub.s32 1, %v375
        %v377 = vrot.slane %v368, %v376
        %v396 = vunpack.c.l.b16 %v352
        %v397 = vunpack.c.h.b16 %v352
        %v398 = vunpack.c.l.b16 %v353
        %v399 = vunpack.c.h.b16 %v353
        %v400 = vunpack.c.l.b16 %v354
        %v401 = vunpack.c.h.b16 %v354
        %v402 = vunpack.c.l.b16 %v355
        %v403 = vunpack.c.h.b16 %v355
        %v404 = vunpack.c.l.b16 %v356
        %v405 = vunpack.c.h.b16 %v356
        %v406 = vunpack.c.l.b16 %v357
        %v407 = vunpack.c.h.b16 %v357
        %v408 = vunpack.c.l.b16 %v358
        %v409 = vunpack.c.h.b16 %v358
        %v410 = vunpack.c.l.b16 %v359
        %v411 = vunpack.c.h.b16 %v359
        %v412 = vunpack.c.l.b16 %v360
        %v413 = vunpack.c.h.b16 %v360
        %v414 = vunpack.c.l.b16 %v361
        %v415 = vunpack.c.h.b16 %v361
        %v416 = vunpack.c.l.b16 %v362
        %v417 = vunpack.c.h.b16 %v362
        %v418 = vunpack.c.l.b16 %v363
        %v419 = vunpack.c.h.b16 %v363
        %v420 = vunpack.c.l.b16 %v364
        %v421 = vunpack.c.h.b16 %v364
        %v422 = vunpack.c.l.b16 %v365
        %v423 = vunpack.c.h.b16 %v365
        %v424 = vunpack.c.l.b16 %v366
        %v425 = vunpack.c.h.b16 %v366
        %v426 = vunpack.c.l.b16 %v367
        %v427 = vunpack.c.h.b16 %v367
        %v428 = vpack.c.b16 %v398, %v396
        %v429 = vpack.c.b16 %v399, %v397
        %v430 = vpack.c.b16 %v402, %v400
        %v431 = vpack.c.b16 %v403, %v401
        %v432 = vpack.c.b16 %v406, %v404
        %v433 = vpack.c.b16 %v407, %v405
        %v434 = vpack.c.b16 %v410, %v408
        %v435 = vpack.c.b16 %v411, %v409
        %v436 = vpack.c.b16 %v414, %v412
        %v437 = vpack.c.b16 %v415, %v413
        %v438 = vpack.c.b16 %v418, %v416
        %v439 = vpack.c.b16 %v419, %v417
        %v440 = vpack.c.b16 %v422, %v420
        %v441 = vpack.c.b16 %v423, %v421
        %v442 = vpack.c.b16 %v426, %v424
        %v443 = vpack.c.b16 %v427, %v425
        %460 = vmatprep.subr.bf16.mxu0 %v443
        %461 = vmatpush1.bf16.msra.mxu0 %v442
        %462 = vmatprep.subr.bf16.mxu0 %v441
        %463 = vmatpush1.bf16.msra.mxu0 %v440
        %464 = vmatprep.subr.bf16.mxu0 %v439
        %465 = vmatpush1.bf16.msra.mxu0 %v438
        %466 = vmatprep.subr.bf16.mxu0 %v437
        %467 = vmatpush1.bf16.msra.mxu0 %v436
        %468 = vmatprep.subr.bf16.mxu0 %v435
        %469 = vmatpush1.bf16.msra.mxu0 %v434
        %470 = vmatprep.subr.bf16.mxu0 %v433
        %471 = vmatpush1.bf16.msra.mxu0 %v432
        %472 = vmatprep.subr.bf16.mxu0 %v431
        %473 = vmatpush1.bf16.msra.mxu0 %v430
        %474 = vmatprep.subr.bf16.mxu0 %v429
        %475 = vmatpush1.bf16.msra.mxu0 %v428
        %476 = vmatprep.subr.bf16.mxu0 0
        %477 = vmatpush2.bf16.msra.mxu0 0
        %478 = vmatprep.subr.bf16.mxu0 0
        %479 = vmatpush2.bf16.msra.mxu0 0
        %480 = vmatprep.subr.bf16.mxu0 0
        %481 = vmatpush2.bf16.msra.mxu0 0
        %482 = vmatprep.subr.bf16.mxu0 0
        %483 = vmatpush2.bf16.msra.mxu0 0
        %484 = vmatprep.subr.bf16.mxu0 0
        %485 = vmatpush2.bf16.msra.mxu0 0
        %486 = vmatprep.subr.bf16.mxu0 0
        %487 = vmatpush2.bf16.msra.mxu0 0
        %488 = vmatprep.subr.bf16.mxu0 0
        %489 = vmatpush2.bf16.msra.mxu0 0
        %490 = vmatprep.subr.bf16.mxu0 0
        %491 = vmatpush2.bf16.msra.mxu0 0
        %492 = vmatprep.mubr.bf16.mxu0 0
        %493 = vmatmul.mubr.bf16.gmra.mxu0 %v351
        %v494 = vpop.f32.mrf.mxu0
        %v495 = vadd.f32 %v373, %v494
        %v496 = vpop.f32.mrf.mxu0
        %v497 = vadd.f32 %v377, %v496
        %v498 = vpop.f32.mrf.mxu0
        %v499 = vpop.f32.mrf.mxu0
        %500 = vdwg.mxu0
        %v501 = vmax.f32 %v495, 0.0
        %v502 = vmax.f32 %v497, 0.0
        %v503 = vpack.c.bf16 %v501, %v501
        %v504 = vpack.c.bf16 %v502, %v502
        %v505 = vld [vmem:[#allocation9] sm:$0xff]
        %v506 = vld [vmem:[#allocation9 + $0x8] sm:$0xff]
        %v507 = vld [vmem:[#allocation9 + $0x10] sm:$0xff]
        %v508 = vld [vmem:[#allocation9 + $0x18] sm:$0xff]
        %v509 = vld [vmem:[#allocation9 + $0x20] sm:$0xff]
        %v510 = vld [vmem:[#allocation9 + $0x28] sm:$0xff]
        %v511 = vld [vmem:[#allocation9 + $0x30] sm:$0xff]
        %v512 = vld [vmem:[#allocation9 + $0x38] sm:$0xff]
        %v513 = vld [vmem:[#allocation9 + $0x40] sm:$0xff]
        %v514 = vld [vmem:[#allocation9 + $0x48] sm:$0xff]
        %v515 = vld [vmem:[#allocation9 + $0x50] sm:$0xff]
        %v516 = vld [vmem:[#allocation9 + $0x58] sm:$0xff]
        %v517 = vld [vmem:[#allocation9 + $0x60] sm:$0xff]
        %v518 = vld [vmem:[#allocation9 + $0x68] sm:$0xff]
        %v519 = vld [vmem:[#allocation9 + $0x70] sm:$0xff]
        %v520 = vld [vmem:[#allocation9 + $0x78] sm:$0xff]
        %v521 = vld [vmem:[#allocation9 + $0x80] sm:$0xff]
        %v522 = vld [vmem:[#allocation9 + $0x88] sm:$0xff]
        %v523 = vld [vmem:[#allocation9 + $0x90] sm:$0xff]
        %v524 = vld [vmem:[#allocation9 + $0x98] sm:$0xff]
        %v525 = vld [vmem:[#allocation9 + $0xa0] sm:$0xff]
        %v526 = vld [vmem:[#allocation9 + $0xa8] sm:$0xff]
        %v527 = vld [vmem:[#allocation9 + $0xb0] sm:$0xff]
        %v528 = vld [vmem:[#allocation9 + $0xb8] sm:$0xff]
        %v529 = vld [vmem:[#allocation9 + $0xc0] sm:$0xff]
        %v530 = vld [vmem:[#allocation9 + $0xc8] sm:$0xff]
        %v531 = vld [vmem:[#allocation9 + $0xd0] sm:$0xff]
        %v532 = vld [vmem:[#allocation9 + $0xd8] sm:$0xff]
        %v533 = vld [vmem:[#allocation9 + $0xe0] sm:$0xff]
        %v534 = vld [vmem:[#allocation9 + $0xe8] sm:$0xff]
        %v535 = vld [vmem:[#allocation9 + $0xf0] sm:$0xff]
        %v536 = vld [vmem:[#allocation9 + $0xf8] sm:$0xff]
        %v569 = vunpack.c.l.b16 %v505
        %v570 = vunpack.c.h.b16 %v505
        %v571 = vunpack.c.l.b16 %v506
        %v572 = vunpack.c.h.b16 %v506
        %v573 = vunpack.c.l.b16 %v507
        %v574 = vunpack.c.h.b16 %v507
        %v575 = vunpack.c.l.b16 %v508
        %v576 = vunpack.c.h.b16 %v508
        %v577 = vunpack.c.l.b16 %v509
        %v578 = vunpack.c.h.b16 %v509
        %v579 = vunpack.c.l.b16 %v510
        %v580 = vunpack.c.h.b16 %v510
        %v581 = vunpack.c.l.b16 %v511
        %v582 = vunpack.c.h.b16 %v511
        %v583 = vunpack.c.l.b16 %v512
        %v584 = vunpack.c.h.b16 %v512
        %v585 = vunpack.c.l.b16 %v513
        %v586 = vunpack.c.h.b16 %v513
        %v587 = vunpack.c.l.b16 %v514
        %v588 = vunpack.c.h.b16 %v514
        %v589 = vunpack.c.l.b16 %v515
        %v590 = vunpack.c.h.b16 %v515
        %v591 = vunpack.c.l.b16 %v516
        %v592 = vunpack.c.h.b16 %v516
        %v593 = vunpack.c.l.b16 %v517
        %v594 = vunpack.c.h.b16 %v517
        %v595 = vunpack.c.l.b16 %v518
        %v596 = vunpack.c.h.b16 %v518
        %v597 = vunpack.c.l.b16 %v519
        %v598 = vunpack.c.h.b16 %v519
        %v599 = vunpack.c.l.b16 %v520
        %v600 = vunpack.c.h.b16 %v520
        %v601 = vunpack.c.l.b16 %v521
        %v602 = vunpack.c.h.b16 %v521
        %v603 = vunpack.c.l.b16 %v522
        %v604 = vunpack.c.h.b16 %v522
        %v605 = vunpack.c.l.b16 %v523
        %v606 = vunpack.c.h.b16 %v523
        %v607 = vunpack.c.l.b16 %v524
        %v608 = vunpack.c.h.b16 %v524
        %v609 = vunpack.c.l.b16 %v525
        %v610 = vunpack.c.h.b16 %v525
        %v611 = vunpack.c.l.b16 %v526
        %v612 = vunpack.c.h.b16 %v526
        %v613 = vunpack.c.l.b16 %v527
        %v614 = vunpack.c.h.b16 %v527
        %v615 = vunpack.c.l.b16 %v528
        %v616 = vunpack.c.h.b16 %v528
        %v617 = vunpack.c.l.b16 %v529
        %v618 = vunpack.c.h.b16 %v529
        %v619 = vunpack.c.l.b16 %v530
        %v620 = vunpack.c.h.b16 %v530
        %v621 = vunpack.c.l.b16 %v531
        %v622 = vunpack.c.h.b16 %v531
        %v623 = vunpack.c.l.b16 %v532
        %v624 = vunpack.c.h.b16 %v532
        %v625 = vunpack.c.l.b16 %v533
        %v626 = vunpack.c.h.b16 %v533
        %v627 = vunpack.c.l.b16 %v534
        %v628 = vunpack.c.h.b16 %v534
        %v629 = vunpack.c.l.b16 %v535
        %v630 = vunpack.c.h.b16 %v535
        %v631 = vunpack.c.l.b16 %v536
        %v632 = vunpack.c.h.b16 %v536
        %v633 = vpack.c.b16 %v571, %v569
        %v634 = vpack.c.b16 %v572, %v570
        %v635 = vpack.c.b16 %v575, %v573
        %v636 = vpack.c.b16 %v576, %v574
        %v637 = vpack.c.b16 %v579, %v577
        %v638 = vpack.c.b16 %v580, %v578
        %v639 = vpack.c.b16 %v583, %v581
        %v640 = vpack.c.b16 %v584, %v582
        %v641 = vpack.c.b16 %v587, %v585
        %v642 = vpack.c.b16 %v588, %v586
        %v643 = vpack.c.b16 %v591, %v589
        %v644 = vpack.c.b16 %v592, %v590
        %v645 = vpack.c.b16 %v595, %v593
        %v646 = vpack.c.b16 %v596, %v594
        %v647 = vpack.c.b16 %v599, %v597
        %v648 = vpack.c.b16 %v600, %v598
        %v649 = vpack.c.b16 %v603, %v601
        %v650 = vpack.c.b16 %v604, %v602
        %v651 = vpack.c.b16 %v607, %v605
        %v652 = vpack.c.b16 %v608, %v606
        %v653 = vpack.c.b16 %v611, %v609
        %v654 = vpack.c.b16 %v612, %v610
        %v655 = vpack.c.b16 %v615, %v613
        %v656 = vpack.c.b16 %v616, %v614
        %v657 = vpack.c.b16 %v619, %v617
        %v658 = vpack.c.b16 %v620, %v618
        %v659 = vpack.c.b16 %v623, %v621
        %v660 = vpack.c.b16 %v624, %v622
        %v661 = vpack.c.b16 %v627, %v625
        %v662 = vpack.c.b16 %v628, %v626
        %v663 = vpack.c.b16 %v631, %v629
        %v664 = vpack.c.b16 %v632, %v630
        %697 = vmatprep.subr.bf16.mxu0 %v648
        %698 = vmatpush1.bf16.msra.mxu0 %v647
        %699 = vmatprep.subr.bf16.mxu0 %v646
        %700 = vmatpush1.bf16.msra.mxu0 %v645
        %701 = vmatprep.subr.bf16.mxu0 %v644
        %702 = vmatpush1.bf16.msra.mxu0 %v643
        %703 = vmatprep.subr.bf16.mxu0 %v642
        %704 = vmatpush1.bf16.msra.mxu0 %v641
        %705 = vmatprep.subr.bf16.mxu0 %v640
        %706 = vmatpush1.bf16.msra.mxu0 %v639
        %707 = vmatprep.subr.bf16.mxu0 %v638
        %708 = vmatpush1.bf16.msra.mxu0 %v637
        %709 = vmatprep.subr.bf16.mxu0 %v636
        %710 = vmatpush1.bf16.msra.mxu0 %v635
        %711 = vmatprep.subr.bf16.mxu0 %v634
        %712 = vmatpush1.bf16.msra.mxu0 %v633
        %713 = vmatprep.subr.bf16.mxu0 %v664
        %714 = vmatpush2.bf16.msra.mxu0 %v663
        %715 = vmatprep.subr.bf16.mxu0 %v662
        %716 = vmatpush2.bf16.msra.mxu0 %v661
        %717 = vmatprep.subr.bf16.mxu0 %v660
        %718 = vmatpush2.bf16.msra.mxu0 %v659
        %719 = vmatprep.subr.bf16.mxu0 %v658
        %720 = vmatpush2.bf16.msra.mxu0 %v657
        %721 = vmatprep.subr.bf16.mxu0 %v656
        %722 = vmatpush2.bf16.msra.mxu0 %v655
        %723 = vmatprep.subr.bf16.mxu0 %v654
        %724 = vmatpush2.bf16.msra.mxu0 %v653
        %725 = vmatprep.subr.bf16.mxu0 %v652
        %726 = vmatpush2.bf16.msra.mxu0 %v651
        %727 = vmatprep.subr.bf16.mxu0 %v650
        %728 = vmatpush2.bf16.msra.mxu0 %v649
        %729 = vmatprep.mubr.bf16.mxu0 %v504
        %730 = vmatmul.mubr.bf16.gmra.mxu0 %v503
        %v731 = vpop.f32.mrf.mxu0
        %v732 = vadd.f32 0.0, %v731
        %v733 = vpop.f32.mrf.mxu0
        %v734 = vadd.f32 0.0, %v733
        %v735 = vpop.f32.mrf.mxu0
        %v736 = vpop.f32.mrf.mxu0
        %737 = vdwg.mxu0
        %738 = vst [vmem:[#allocation2] sm:$0xff] %v732
        %739 = vst [vmem:[#allocation2 + $0x8] sm:$0xff] %v734
        %v740 = vld [vmem:[#allocation6 + $0x8] sm:$0xff]
        %v741 = vld [vmem:[#allocation6 + $0x28] sm:$0xff]
        %v742 = vld [vmem:[#allocation6 + $0x48] sm:$0xff]
        %v743 = vld [vmem:[#allocation6 + $0x68] sm:$0xff]
        %v744 = vld [vmem:[#allocation6 + $0x88] sm:$0xff]
        %v745 = vld [vmem:[#allocation6 + $0xa8] sm:$0xff]
        %v746 = vld [vmem:[#allocation6 + $0xc8] sm:$0xff]
        %v747 = vld [vmem:[#allocation6 + $0xe8] sm:$0xff]
        %v748 = vld [vmem:[#allocation6 + $0x108] sm:$0xff]
        %v749 = vld [vmem:[#allocation6 + $0x128] sm:$0xff]
        %v750 = vld [vmem:[#allocation6 + $0x148] sm:$0xff]
        %v751 = vld [vmem:[#allocation6 + $0x168] sm:$0xff]
        %v752 = vld [vmem:[#allocation6 + $0x188] sm:$0xff]
        %v753 = vld [vmem:[#allocation6 + $0x1a8] sm:$0xff]
        %v754 = vld [vmem:[#allocation6 + $0x1c8] sm:$0xff]
        %v755 = vld [vmem:[#allocation6 + $0x1e8] sm:$0xff]
        %v756 = vld [vmem:[#allocation8 + $0x2] sm:$0x3]
        %v758 = vlaneseq
        %v759 = vshrl.u32 %v758, 7
        %v760 = vsub.s32 0, %v759
        %v761 = vrot.slane %v756, %v760
        %v762 = vlaneseq
        %v763 = vshrl.u32 %v762, 7
        %v764 = vsub.s32 1, %v763
        %v765 = vrot.slane %v756, %v764
        %v784 = vunpack.c.l.b16 %v740
        %v785 = vunpack.c.h.b16 %v740
        %v786 = vunpack.c.l.b16 %v741
        %v787 = vunpack.c.h.b16 %v741
        %v788 = vunpack.c.l.b16 %v742
        %v789 = vunpack.c.h.b16 %v742
        %v790 = vunpack.c.l.b16 %v743
        %v791 = vunpack.c.h.b16 %v743
        %v792 = vunpack.c.l.b16 %v744
        %v793 = vunpack.c.h.b16 %v744
        %v794 = vunpack.c.l.b16 %v745
        %v795 = vunpack.c.h.b16 %v745
        %v796 = vunpack.c.l.b16 %v746
        %v797 = vunpack.c.h.b16 %v746
        %v798 = vunpack.c.l.b16 %v747
        %v799 = vunpack.c.h.b16 %v747
        %v800 = vunpack.c.l.b16 %v748
        %v801 = vunpack.c.h.b16 %v748
        %v802 = vunpack.c.l.b16 %v749
        %v803 = vunpack.c.h.b16 %v749
        %v804 = vunpack.c.l.b16 %v750
        %v805 = vunpack.c.h.b16 %v750
        %v806 = vunpack.c.l.b16 %v751
        %v807 = vunpack.c.h.b16 %v751
        %v808 = vunpack.c.l.b16 %v752
        %v809 = vunpack.c.h.b16 %v752
        %v810 = vunpack.c.l.b16 %v753
        %v811 = vunpack.c.h.b16 %v753
        %v812 = vunpack.c.l.b16 %v754
        %v813 = vunpack.c.h.b16 %v754
        %v814 = vunpack.c.l.b16 %v755
        %v815 = vunpack.c.h.b16 %v755
        %v816 = vpack.c.b16 %v786, %v784
        %v817 = vpack.c.b16 %v787, %v785
        %v818 = vpack.c.b16 %v790, %v788
        %v819 = vpack.c.b16 %v791, %v789
        %v820 = vpack.c.b16 %v794, %v792
        %v821 = vpack.c.b16 %v795, %v793
        %v822 = vpack.c.b16 %v798, %v796
        %v823 = vpack.c.b16 %v799, %v797
        %v824 = vpack.c.b16 %v802, %v800
        %v825 = vpack.c.b16 %v803, %v801
        %v826 = vpack.c.b16 %v806, %v804
        %v827 = vpack.c.b16 %v807, %v805
        %v828 = vpack.c.b16 %v810, %v808
        %v829 = vpack.c.b16 %v811, %v809
        %v830 = vpack.c.b16 %v814, %v812
        %v831 = vpack.c.b16 %v815, %v813
        %848 = vmatprep.subr.bf16.mxu0 %v831
        %849 = vmatpush1.bf16.msra.mxu0 %v830
        %850 = vmatprep.subr.bf16.mxu0 %v829
        %851 = vmatpush1.bf16.msra.mxu0 %v828
        %852 = vmatprep.subr.bf16.mxu0 %v827
        %853 = vmatpush1.bf16.msra.mxu0 %v826
        %854 = vmatprep.subr.bf16.mxu0 %v825
        %855 = vmatpush1.bf16.msra.mxu0 %v824
        %856 = vmatprep.subr.bf16.mxu0 %v823
        %857 = vmatpush1.bf16.msra.mxu0 %v822
        %858 = vmatprep.subr.bf16.mxu0 %v821
        %859 = vmatpush1.bf16.msra.mxu0 %v820
        %860 = vmatprep.subr.bf16.mxu0 %v819
        %861 = vmatpush1.bf16.msra.mxu0 %v818
        %862 = vmatprep.subr.bf16.mxu0 %v817
        %863 = vmatpush1.bf16.msra.mxu0 %v816
        %864 = vmatprep.subr.bf16.mxu0 0
        %865 = vmatpush2.bf16.msra.mxu0 0
        %866 = vmatprep.subr.bf16.mxu0 0
        %867 = vmatpush2.bf16.msra.mxu0 0
        %868 = vmatprep.subr.bf16.mxu0 0
        %869 = vmatpush2.bf16.msra.mxu0 0
        %870 = vmatprep.subr.bf16.mxu0 0
        %871 = vmatpush2.bf16.msra.mxu0 0
        %872 = vmatprep.subr.bf16.mxu0 0
        %873 = vmatpush2.bf16.msra.mxu0 0
        %874 = vmatprep.subr.bf16.mxu0 0
        %875 = vmatpush2.bf16.msra.mxu0 0
        %876 = vmatprep.subr.bf16.mxu0 0
        %877 = vmatpush2.bf16.msra.mxu0 0
        %878 = vmatprep.subr.bf16.mxu0 0
        %879 = vmatpush2.bf16.msra.mxu0 0
        %880 = vmatprep.mubr.bf16.mxu0 0
        %881 = vmatmul.mubr.bf16.gmra.mxu0 %v351
        %v882 = vpop.f32.mrf.mxu0
        %v883 = vadd.f32 %v761, %v882
        %v884 = vpop.f32.mrf.mxu0
        %v885 = vadd.f32 %v765, %v884
        %v886 = vpop.f32.mrf.mxu0
        %v887 = vpop.f32.mrf.mxu0
        %888 = vdwg.mxu0
        %v889 = vmax.f32 %v883, 0.0
        %v890 = vmax.f32 %v885, 0.0
        %v891 = vpack.c.bf16 %v889, %v889
        %v892 = vpack.c.bf16 %v890, %v890
        %v893 = vld [vmem:[#allocation9 + $0x100] sm:$0xff]
        %v894 = vld [vmem:[#allocation9 + $0x108] sm:$0xff]
        %v895 = vld [vmem:[#allocation9 + $0x110] sm:$0xff]
        %v896 = vld [vmem:[#allocation9 + $0x118] sm:$0xff]
        %v897 = vld [vmem:[#allocation9 + $0x120] sm:$0xff]
        %v898 = vld [vmem:[#allocation9 + $0x128] sm:$0xff]
        %v899 = vld [vmem:[#allocation9 + $0x130] sm:$0xff]
        %v900 = vld [vmem:[#allocation9 + $0x138] sm:$0xff]
        %v901 = vld [vmem:[#allocation9 + $0x140] sm:$0xff]
        %v902 = vld [vmem:[#allocation9 + $0x148] sm:$0xff]
        %v903 = vld [vmem:[#allocation9 + $0x150] sm:$0xff]
        %v904 = vld [vmem:[#allocation9 + $0x158] sm:$0xff]
        %v905 = vld [vmem:[#allocation9 + $0x160] sm:$0xff]
        %v906 = vld [vmem:[#allocation9 + $0x168] sm:$0xff]
        %v907 = vld [vmem:[#allocation9 + $0x170] sm:$0xff]
        %v908 = vld [vmem:[#allocation9 + $0x178] sm:$0xff]
        %v909 = vld [vmem:[#allocation9 + $0x180] sm:$0xff]
        %v910 = vld [vmem:[#allocation9 + $0x188] sm:$0xff]
        %v911 = vld [vmem:[#allocation9 + $0x190] sm:$0xff]
        %v912 = vld [vmem:[#allocation9 + $0x198] sm:$0xff]
        %v913 = vld [vmem:[#allocation9 + $0x1a0] sm:$0xff]
        %v914 = vld [vmem:[#allocation9 + $0x1a8] sm:$0xff]
        %v915 = vld [vmem:[#allocation9 + $0x1b0] sm:$0xff]
        %v916 = vld [vmem:[#allocation9 + $0x1b8] sm:$0xff]
        %v917 = vld [vmem:[#allocation9 + $0x1c0] sm:$0xff]
        %v918 = vld [vmem:[#allocation9 + $0x1c8] sm:$0xff]
        %v919 = vld [vmem:[#allocation9 + $0x1d0] sm:$0xff]
        %v920 = vld [vmem:[#allocation9 + $0x1d8] sm:$0xff]
        %v921 = vld [vmem:[#allocation9 + $0x1e0] sm:$0xff]
        %v922 = vld [vmem:[#allocation9 + $0x1e8] sm:$0xff]
        %v923 = vld [vmem:[#allocation9 + $0x1f0] sm:$0xff]
        %v924 = vld [vmem:[#allocation9 + $0x1f8] sm:$0xff]
        %v957 = vunpack.c.l.b16 %v893
        %v958 = vunpack.c.h.b16 %v893
        %v959 = vunpack.c.l.b16 %v894
        %v960 = vunpack.c.h.b16 %v894
        %v961 = vunpack.c.l.b16 %v895
        %v962 = vunpack.c.h.b16 %v895
        %v963 = vunpack.c.l.b16 %v896
        %v964 = vunpack.c.h.b16 %v896
        %v965 = vunpack.c.l.b16 %v897
        %v966 = vunpack.c.h.b16 %v897
        %v967 = vunpack.c.l.b16 %v898
        %v968 = vunpack.c.h.b16 %v898
        %v969 = vunpack.c.l.b16 %v899
        %v970 = vunpack.c.h.b16 %v899
        %v971 = vunpack.c.l.b16 %v900
        %v972 = vunpack.c.h.b16 %v900
        %v973 = vunpack.c.l.b16 %v901
        %v974 = vunpack.c.h.b16 %v901
        %v975 = vunpack.c.l.b16 %v902
        %v976 = vunpack.c.h.b16 %v902
        %v977 = vunpack.c.l.b16 %v903
        %v978 = vunpack.c.h.b16 %v903
        %v979 = vunpack.c.l.b16 %v904
        %v980 = vunpack.c.h.b16 %v904
        %v981 = vunpack.c.l.b16 %v905
        %v982 = vunpack.c.h.b16 %v905
        %v983 = vunpack.c.l.b16 %v906
        %v984 = vunpack.c.h.b16 %v906
        %v985 = vunpack.c.l.b16 %v907
        %v986 = vunpack.c.h.b16 %v907
        %v987 = vunpack.c.l.b16 %v908
        %v988 = vunpack.c.h.b16 %v908
        %v989 = vunpack.c.l.b16 %v909
        %v990 = vunpack.c.h.b16 %v909
        %v991 = vunpack.c.l.b16 %v910
        %v992 = vunpack.c.h.b16 %v910
        %v993 = vunpack.c.l.b16 %v911
        %v994 = vunpack.c.h.b16 %v911
        %v995 = vunpack.c.l.b16 %v912
        %v996 = vunpack.c.h.b16 %v912
        %v997 = vunpack.c.l.b16 %v913
        %v998 = vunpack.c.h.b16 %v913
        %v999 = vunpack.c.l.b16 %v914
        %v1000 = vunpack.c.h.b16 %v914
        %v1001 = vunpack.c.l.b16 %v915
        %v1002 = vunpack.c.h.b16 %v915
        %v1003 = vunpack.c.l.b16 %v916
        %v1004 = vunpack.c.h.b16 %v916
        %v1005 = vunpack.c.l.b16 %v917
        %v1006 = vunpack.c.h.b16 %v917
        %v1007 = vunpack.c.l.b16 %v918
        %v1008 = vunpack.c.h.b16 %v918
        %v1009 = vunpack.c.l.b16 %v919
        %v1010 = vunpack.c.h.b16 %v919
        %v1011 = vunpack.c.l.b16 %v920
        %v1012 = vunpack.c.h.b16 %v920
        %v1013 = vunpack.c.l.b16 %v921
        %v1014 = vunpack.c.h.b16 %v921
        %v1015 = vunpack.c.l.b16 %v922
        %v1016 = vunpack.c.h.b16 %v922
        %v1017 = vunpack.c.l.b16 %v923
        %v1018 = vunpack.c.h.b16 %v923
        %v1019 = vunpack.c.l.b16 %v924
        %v1020 = vunpack.c.h.b16 %v924
        %v1021 = vpack.c.b16 %v959, %v957
        %v1022 = vpack.c.b16 %v960, %v958
        %v1023 = vpack.c.b16 %v963, %v961
        %v1024 = vpack.c.b16 %v964, %v962
        %v1025 = vpack.c.b16 %v967, %v965
        %v1026 = vpack.c.b16 %v968, %v966
        %v1027 = vpack.c.b16 %v971, %v969
        %v1028 = vpack.c.b16 %v972, %v970
        %v1029 = vpack.c.b16 %v975, %v973
        %v1030 = vpack.c.b16 %v976, %v974
        %v1031 = vpack.c.b16 %v979, %v977
        %v1032 = vpack.c.b16 %v980, %v978
        %v1033 = vpack.c.b16 %v983, %v981
        %v1034 = vpack.c.b16 %v984, %v982
        %v1035 = vpack.c.b16 %v987, %v985
        %v1036 = vpack.c.b16 %v988, %v986
        %v1037 = vpack.c.b16 %v991, %v989
        %v1038 = vpack.c.b16 %v992, %v990
        %v1039 = vpack.c.b16 %v995, %v993
        %v1040 = vpack.c.b16 %v996, %v994
        %v1041 = vpack.c.b16 %v999, %v997
        %v1042 = vpack.c.b16 %v1000, %v998
        %v1043 = vpack.c.b16 %v1003, %v1001
        %v1044 = vpack.c.b16 %v1004, %v1002
        %v1045 = vpack.c.b16 %v1007, %v1005
        %v1046 = vpack.c.b16 %v1008, %v1006
        %v1047 = vpack.c.b16 %v1011, %v1009
        %v1048 = vpack.c.b16 %v1012, %v1010
        %v1049 = vpack.c.b16 %v1015, %v1013
        %v1050 = vpack.c.b16 %v1016, %v1014
        %v1051 = vpack.c.b16 %v1019, %v1017
        %v1052 = vpack.c.b16 %v1020, %v1018
        %1085 = vmatprep.subr.bf16.mxu0 %v1036
        %1086 = vmatpush1.bf16.msra.mxu0 %v1035
        %1087 = vmatprep.subr.bf16.mxu0 %v1034
        %1088 = vmatpush1.bf16.msra.mxu0 %v1033
        %1089 = vmatprep.subr.bf16.mxu0 %v1032
        %1090 = vmatpush1.bf16.msra.mxu0 %v1031
        %1091 = vmatprep.subr.bf16.mxu0 %v1030
        %1092 = vmatpush1.bf16.msra.mxu0 %v1029
        %1093 = vmatprep.subr.bf16.mxu0 %v1028
        %1094 = vmatpush1.bf16.msra.mxu0 %v1027
        %1095 = vmatprep.subr.bf16.mxu0 %v1026
        %1096 = vmatpush1.bf16.msra.mxu0 %v1025
        %1097 = vmatprep.subr.bf16.mxu0 %v1024
        %1098 = vmatpush1.bf16.msra.mxu0 %v1023
        %1099 = vmatprep.subr.bf16.mxu0 %v1022
        %1100 = vmatpush1.bf16.msra.mxu0 %v1021
        %1101 = vmatprep.subr.bf16.mxu0 %v1052
        %1102 = vmatpush2.bf16.msra.mxu0 %v1051
        %1103 = vmatprep.subr.bf16.mxu0 %v1050
        %1104 = vmatpush2.bf16.msra.mxu0 %v1049
        %1105 = vmatprep.subr.bf16.mxu0 %v1048
        %1106 = vmatpush2.bf16.msra.mxu0 %v1047
        %1107 = vmatprep.subr.bf16.mxu0 %v1046
        %1108 = vmatpush2.bf16.msra.mxu0 %v1045
        %1109 = vmatprep.subr.bf16.mxu0 %v1044
        %1110 = vmatpush2.bf16.msra.mxu0 %v1043
        %1111 = vmatprep.subr.bf16.mxu0 %v1042
        %1112 = vmatpush2.bf16.msra.mxu0 %v1041
        %1113 = vmatprep.subr.bf16.mxu0 %v1040
        %1114 = vmatpush2.bf16.msra.mxu0 %v1039
        %1115 = vmatprep.subr.bf16.mxu0 %v1038
        %1116 = vmatpush2.bf16.msra.mxu0 %v1037
        %1117 = vmatprep.mubr.bf16.mxu0 %v892
        %1118 = vmatmul.mubr.bf16.gmra.mxu0 %v891
        %v1119 = vpop.f32.mrf.mxu0
        %v1120 = vadd.f32 0.0, %v1119
        %v1121 = vpop.f32.mrf.mxu0
        %v1122 = vadd.f32 0.0, %v1121
        %v1123 = vpop.f32.mrf.mxu0
        %v1124 = vpop.f32.mrf.mxu0
        %1125 = vdwg.mxu0
        %v1126 = vld [vmem:[#allocation2] sm:$0xff]
        %v1127 = vld [vmem:[#allocation2 + $0x8] sm:$0xff]
        %v1128 = vadd.f32 %v1126, %v1120
        %v1129 = vadd.f32 %v1127, %v1122
        %1130 = vst [vmem:[#allocation2] sm:$0xff] %v1128
        %1131 = vst [vmem:[#allocation2 + $0x8] sm:$0xff] %v1129
        %v1132 = vld [vmem:[#allocation6 + $0x10] sm:$0xff]
        %v1133 = vld [vmem:[#allocation6 + $0x30] sm:$0xff]
        %v1134 = vld [vmem:[#allocation6 + $0x50] sm:$0xff]
        %v1135 = vld [vmem:[#allocation6 + $0x70] sm:$0xff]
        %v1136 = vld [vmem:[#allocation6 + $0x90] sm:$0xff]
        %v1137 = vld [vmem:[#allocation6 + $0xb0] sm:$0xff]
        %v1138 = vld [vmem:[#allocation6 + $0xd0] sm:$0xff]
        %v1139 = vld [vmem:[#allocation6 + $0xf0] sm:$0xff]
        %v1140 = vld [vmem:[#allocation6 + $0x110] sm:$0xff]
        %v1141 = vld [vmem:[#allocation6 + $0x130] sm:$0xff]
        %v1142 = vld [vmem:[#allocation6 + $0x150] sm:$0xff]
        %v1143 = vld [vmem:[#allocation6 + $0x170] sm:$0xff]
        %v1144 = vld [vmem:[#allocation6 + $0x190] sm:$0xff]
        %v1145 = vld [vmem:[#allocation6 + $0x1b0] sm:$0xff]
        %v1146 = vld [vmem:[#allocation6 + $0x1d0] sm:$0xff]
        %v1147 = vld [vmem:[#allocation6 + $0x1f0] sm:$0xff]
        %v1148 = vld [vmem:[#allocation8 + $0x4] sm:$0x3]
        %v1150 = vlaneseq
        %v1151 = vshrl.u32 %v1150, 7
        %v1152 = vsub.s32 0, %v1151
        %v1153 = vrot.slane %v1148, %v1152
        %v1154 = vlaneseq
        %v1155 = vshrl.u32 %v1154, 7
        %v1156 = vsub.s32 1, %v1155
        %v1157 = vrot.slane %v1148, %v1156
        %v1176 = vunpack.c.l.b16 %v1132
        %v1177 = vunpack.c.h.b16 %v1132
        %v1178 = vunpack.c.l.b16 %v1133
        %v1179 = vunpack.c.h.b16 %v1133
        %v1180 = vunpack.c.l.b16 %v1134
        %v1181 = vunpack.c.h.b16 %v1134
        %v1182 = vunpack.c.l.b16 %v1135
        %v1183 = vunpack.c.h.b16 %v1135
        %v1184 = vunpack.c.l.b16 %v1136
        %v1185 = vunpack.c.h.b16 %v1136
        %v1186 = vunpack.c.l.b16 %v1137
        %v1187 = vunpack.c.h.b16 %v1137
        %v1188 = vunpack.c.l.b16 %v1138
        %v1189 = vunpack.c.h.b16 %v1138
        %v1190 = vunpack.c.l.b16 %v1139
        %v1191 = vunpack.c.h.b16 %v1139
        %v1192 = vunpack.c.l.b16 %v1140
        %v1193 = vunpack.c.h.b16 %v1140
        %v1194 = vunpack.c.l.b16 %v1141
        %v1195 = vunpack.c.h.b16 %v1141
        %v1196 = vunpack.c.l.b16 %v1142
        %v1197 = vunpack.c.h.b16 %v1142
        %v1198 = vunpack.c.l.b16 %v1143
        %v1199 = vunpack.c.h.b16 %v1143
        %v1200 = vunpack.c.l.b16 %v1144
        %v1201 = vunpack.c.h.b16 %v1144
        %v1202 = vunpack.c.l.b16 %v1145
        %v1203 = vunpack.c.h.b16 %v1145
        %v1204 = vunpack.c.l.b16 %v1146
        %v1205 = vunpack.c.h.b16 %v1146
        %v1206 = vunpack.c.l.b16 %v1147
        %v1207 = vunpack.c.h.b16 %v1147
        %v1208 = vpack.c.b16 %v1178, %v1176
        %v1209 = vpack.c.b16 %v1179, %v1177
        %v1210 = vpack.c.b16 %v1182, %v1180
        %v1211 = vpack.c.b16 %v1183, %v1181
        %v1212 = vpack.c.b16 %v1186, %v1184
        %v1213 = vpack.c.b16 %v1187, %v1185
        %v1214 = vpack.c.b16 %v1190, %v1188
        %v1215 = vpack.c.b16 %v1191, %v1189
        %v1216 = vpack.c.b16 %v1194, %v1192
        %v1217 = vpack.c.b16 %v1195, %v1193
        %v1218 = vpack.c.b16 %v1198, %v1196
        %v1219 = vpack.c.b16 %v1199, %v1197
        %v1220 = vpack.c.b16 %v1202, %v1200
        %v1221 = vpack.c.b16 %v1203, %v1201
        %v1222 = vpack.c.b16 %v1206, %v1204
        %v1223 = vpack.c.b16 %v1207, %v1205
        %1240 = vmatprep.subr.bf16.mxu0 %v1223
        %1241 = vmatpush1.bf16.msra.mxu0 %v1222
        %1242 = vmatprep.subr.bf16.mxu0 %v1221
        %1243 = vmatpush1.bf16.msra.mxu0 %v1220
        %1244 = vmatprep.subr.bf16.mxu0 %v1219
        %1245 = vmatpush1.bf16.msra.mxu0 %v1218
        %1246 = vmatprep.subr.bf16.mxu0 %v1217
        %1247 = vmatpush1.bf16.msra.mxu0 %v1216
        %1248 = vmatprep.subr.bf16.mxu0 %v1215
        %1249 = vmatpush1.bf16.msra.mxu0 %v1214
        %1250 = vmatprep.subr.bf16.mxu0 %v1213
        %1251 = vmatpush1.bf16.msra.mxu0 %v1212
        %1252 = vmatprep.subr.bf16.mxu0 %v1211
        %1253 = vmatpush1.bf16.msra.mxu0 %v1210
        %1254 = vmatprep.subr.bf16.mxu0 %v1209
        %1255 = vmatpush1.bf16.msra.mxu0 %v1208
        %1256 = vmatprep.subr.bf16.mxu0 0
        %1257 = vmatpush2.bf16.msra.mxu0 0
        %1258 = vmatprep.subr.bf16.mxu0 0
        %1259 = vmatpush2.bf16.msra.mxu0 0
        %1260 = vmatprep.subr.bf16.mxu0 0
        %1261 = vmatpush2.bf16.msra.mxu0 0
        %1262 = vmatprep.subr.bf16.mxu0 0
        %1263 = vmatpush2.bf16.msra.mxu0 0
        %1264 = vmatprep.subr.bf16.mxu0 0
        %1265 = vmatpush2.bf16.msra.mxu0 0
        %1266 = vmatprep.subr.bf16.mxu0 0
        %1267 = vmatpush2.bf16.msra.mxu0 0
        %1268 = vmatprep.subr.bf16.mxu0 0
        %1269 = vmatpush2.bf16.msra.mxu0 0
        %1270 = vmatprep.subr.bf16.mxu0 0
        %1271 = vmatpush2.bf16.msra.mxu0 0
        %1272 = vmatprep.mubr.bf16.mxu0 0
        %1273 = vmatmul.mubr.bf16.gmra.mxu0 %v351
        %v1274 = vpop.f32.mrf.mxu0
        %v1275 = vadd.f32 %v1153, %v1274
        %v1276 = vpop.f32.mrf.mxu0
        %v1277 = vadd.f32 %v1157, %v1276
        %v1278 = vpop.f32.mrf.mxu0
        %v1279 = vpop.f32.mrf.mxu0
        %1280 = vdwg.mxu0
        %v1281 = vmax.f32 %v1275, 0.0
        %v1282 = vmax.f32 %v1277, 0.0
        %v1283 = vpack.c.bf16 %v1281, %v1281
        %v1284 = vpack.c.bf16 %v1282, %v1282
        %v1285 = vld [vmem:[#allocation9 + $0x200] sm:$0xff]
        %v1286 = vld [vmem:[#allocation9 + $0x208] sm:$0xff]
        %v1287 = vld [vmem:[#allocation9 + $0x210] sm:$0xff]
        %v1288 = vld [vmem:[#allocation9 + $0x218] sm:$0xff]
        %v1289 = vld [vmem:[#allocation9 + $0x220] sm:$0xff]
        %v1290 = vld [vmem:[#allocation9 + $0x228] sm:$0xff]
        %v1291 = vld [vmem:[#allocation9 + $0x230] sm:$0xff]
        %v1292 = vld [vmem:[#allocation9 + $0x238] sm:$0xff]
        %v1293 = vld [vmem:[#allocation9 + $0x240] sm:$0xff]
        %v1294 = vld [vmem:[#allocation9 + $0x248] sm:$0xff]
        %v1295 = vld [vmem:[#allocation9 + $0x250] sm:$0xff]
        %v1296 = vld [vmem:[#allocation9 + $0x258] sm:$0xff]
        %v1297 = vld [vmem:[#allocation9 + $0x260] sm:$0xff]
        %v1298 = vld [vmem:[#allocation9 + $0x268] sm:$0xff]
        %v1299 = vld [vmem:[#allocation9 + $0x270] sm:$0xff]
        %v1300 = vld [vmem:[#allocation9 + $0x278] sm:$0xff]
        %v1301 = vld [vmem:[#allocation9 + $0x280] sm:$0xff]
        %v1302 = vld [vmem:[#allocation9 + $0x288] sm:$0xff]
        %v1303 = vld [vmem:[#allocation9 + $0x290] sm:$0xff]
        %v1304 = vld [vmem:[#allocation9 + $0x298] sm:$0xff]
        %v1305 = vld [vmem:[#allocation9 + $0x2a0] sm:$0xff]
        %v1306 = vld [vmem:[#allocation9 + $0x2a8] sm:$0xff]
        %v1307 = vld [vmem:[#allocation9 + $0x2b0] sm:$0xff]
        %v1308 = vld [vmem:[#allocation9 + $0x2b8] sm:$0xff]
        %v1309 = vld [vmem:[#allocation9 + $0x2c0] sm:$0xff]
        %v1310 = vld [vmem:[#allocation9 + $0x2c8] sm:$0xff]
        %v1311 = vld [vmem:[#allocation9 + $0x2d0] sm:$0xff]
        %v1312 = vld [vmem:[#allocation9 + $0x2d8] sm:$0xff]
        %v1313 = vld [vmem:[#allocation9 + $0x2e0] sm:$0xff]
        %v1314 = vld [vmem:[#allocation9 + $0x2e8] sm:$0xff]
        %v1315 = vld [vmem:[#allocation9 + $0x2f0] sm:$0xff]
        %v1316 = vld [vmem:[#allocation9 + $0x2f8] sm:$0xff]
        %v1349 = vunpack.c.l.b16 %v1285
        %v1350 = vunpack.c.h.b16 %v1285
        %v1351 = vunpack.c.l.b16 %v1286
        %v1352 = vunpack.c.h.b16 %v1286
        %v1353 = vunpack.c.l.b16 %v1287
        %v1354 = vunpack.c.h.b16 %v1287
        %v1355 = vunpack.c.l.b16 %v1288
        %v1356 = vunpack.c.h.b16 %v1288
        %v1357 = vunpack.c.l.b16 %v1289
        %v1358 = vunpack.c.h.b16 %v1289
        %v1359 = vunpack.c.l.b16 %v1290
        %v1360 = vunpack.c.h.b16 %v1290
        %v1361 = vunpack.c.l.b16 %v1291
        %v1362 = vunpack.c.h.b16 %v1291
        %v1363 = vunpack.c.l.b16 %v1292
        %v1364 = vunpack.c.h.b16 %v1292
        %v1365 = vunpack.c.l.b16 %v1293
        %v1366 = vunpack.c.h.b16 %v1293
        %v1367 = vunpack.c.l.b16 %v1294
        %v1368 = vunpack.c.h.b16 %v1294
        %v1369 = vunpack.c.l.b16 %v1295
        %v1370 = vunpack.c.h.b16 %v1295
        %v1371 = vunpack.c.l.b16 %v1296
        %v1372 = vunpack.c.h.b16 %v1296
        %v1373 = vunpack.c.l.b16 %v1297
        %v1374 = vunpack.c.h.b16 %v1297
        %v1375 = vunpack.c.l.b16 %v1298
        %v1376 = vunpack.c.h.b16 %v1298
        %v1377 = vunpack.c.l.b16 %v1299
        %v1378 = vunpack.c.h.b16 %v1299
        %v1379 = vunpack.c.l.b16 %v1300
        %v1380 = vunpack.c.h.b16 %v1300
        %v1381 = vunpack.c.l.b16 %v1301
        %v1382 = vunpack.c.h.b16 %v1301
        %v1383 = vunpack.c.l.b16 %v1302
        %v1384 = vunpack.c.h.b16 %v1302
        %v1385 = vunpack.c.l.b16 %v1303
        %v1386 = vunpack.c.h.b16 %v1303
        %v1387 = vunpack.c.l.b16 %v1304
        %v1388 = vunpack.c.h.b16 %v1304
        %v1389 = vunpack.c.l.b16 %v1305
        %v1390 = vunpack.c.h.b16 %v1305
        %v1391 = vunpack.c.l.b16 %v1306
        %v1392 = vunpack.c.h.b16 %v1306
        %v1393 = vunpack.c.l.b16 %v1307
        %v1394 = vunpack.c.h.b16 %v1307
        %v1395 = vunpack.c.l.b16 %v1308
        %v1396 = vunpack.c.h.b16 %v1308
        %v1397 = vunpack.c.l.b16 %v1309
        %v1398 = vunpack.c.h.b16 %v1309
        %v1399 = vunpack.c.l.b16 %v1310
        %v1400 = vunpack.c.h.b16 %v1310
        %v1401 = vunpack.c.l.b16 %v1311
        %v1402 = vunpack.c.h.b16 %v1311
        %v1403 = vunpack.c.l.b16 %v1312
        %v1404 = vunpack.c.h.b16 %v1312
        %v1405 = vunpack.c.l.b16 %v1313
        %v1406 = vunpack.c.h.b16 %v1313
        %v1407 = vunpack.c.l.b16 %v1314
        %v1408 = vunpack.c.h.b16 %v1314
        %v1409 = vunpack.c.l.b16 %v1315
        %v1410 = vunpack.c.h.b16 %v1315
        %v1411 = vunpack.c.l.b16 %v1316
        %v1412 = vunpack.c.h.b16 %v1316
        %v1413 = vpack.c.b16 %v1351, %v1349
        %v1414 = vpack.c.b16 %v1352, %v1350
        %v1415 = vpack.c.b16 %v1355, %v1353
        %v1416 = vpack.c.b16 %v1356, %v1354
        %v1417 = vpack.c.b16 %v1359, %v1357
        %v1418 = vpack.c.b16 %v1360, %v1358
        %v1419 = vpack.c.b16 %v1363, %v1361
        %v1420 = vpack.c.b16 %v1364, %v1362
        %v1421 = vpack.c.b16 %v1367, %v1365
        %v1422 = vpack.c.b16 %v1368, %v1366
        %v1423 = vpack.c.b16 %v1371, %v1369
        %v1424 = vpack.c.b16 %v1372, %v1370
        %v1425 = vpack.c.b16 %v1375, %v1373
        %v1426 = vpack.c.b16 %v1376, %v1374
        %v1427 = vpack.c.b16 %v1379, %v1377
        %v1428 = vpack.c.b16 %v1380, %v1378
        %v1429 = vpack.c.b16 %v1383, %v1381
        %v1430 = vpack.c.b16 %v1384, %v1382
        %v1431 = vpack.c.b16 %v1387, %v1385
        %v1432 = vpack.c.b16 %v1388, %v1386
        %v1433 = vpack.c.b16 %v1391, %v1389
        %v1434 = vpack.c.b16 %v1392, %v1390
        %v1435 = vpack.c.b16 %v1395, %v1393
        %v1436 = vpack.c.b16 %v1396, %v1394
        %v1437 = vpack.c.b16 %v1399, %v1397
        %v1438 = vpack.c.b16 %v1400, %v1398
        %v1439 = vpack.c.b16 %v1403, %v1401
        %v1440 = vpack.c.b16 %v1404, %v1402
        %v1441 = vpack.c.b16 %v1407, %v1405
        %v1442 = vpack.c.b16 %v1408, %v1406
        %v1443 = vpack.c.b16 %v1411, %v1409
        %v1444 = vpack.c.b16 %v1412, %v1410
        %1477 = vmatprep.subr.bf16.mxu0 %v1428
        %1478 = vmatpush1.bf16.msra.mxu0 %v1427
        %1479 = vmatprep.subr.bf16.mxu0 %v1426
        %1480 = vmatpush1.bf16.msra.mxu0 %v1425
        %1481 = vmatprep.subr.bf16.mxu0 %v1424
        %1482 = vmatpush1.bf16.msra.mxu0 %v1423
        %1483 = vmatprep.subr.bf16.mxu0 %v1422
        %1484 = vmatpush1.bf16.msra.mxu0 %v1421
        %1485 = vmatprep.subr.bf16.mxu0 %v1420
        %1486 = vmatpush1.bf16.msra.mxu0 %v1419
        %1487 = vmatprep.subr.bf16.mxu0 %v1418
        %1488 = vmatpush1.bf16.msra.mxu0 %v1417
        %1489 = vmatprep.subr.bf16.mxu0 %v1416
        %1490 = vmatpush1.bf16.msra.mxu0 %v1415
        %1491 = vmatprep.subr.bf16.mxu0 %v1414
        %1492 = vmatpush1.bf16.msra.mxu0 %v1413
        %1493 = vmatprep.subr.bf16.mxu0 %v1444
        %1494 = vmatpush2.bf16.msra.mxu0 %v1443
        %1495 = vmatprep.subr.bf16.mxu0 %v1442
        %1496 = vmatpush2.bf16.msra.mxu0 %v1441
        %1497 = vmatprep.subr.bf16.mxu0 %v1440
        %1498 = vmatpush2.bf16.msra.mxu0 %v1439
        %1499 = vmatprep.subr.bf16.mxu0 %v1438
        %1500 = vmatpush2.bf16.msra.mxu0 %v1437
        %1501 = vmatprep.subr.bf16.mxu0 %v1436
        %1502 = vmatpush2.bf16.msra.mxu0 %v1435
        %1503 = vmatprep.subr.bf16.mxu0 %v1434
        %1504 = vmatpush2.bf16.msra.mxu0 %v1433
        %1505 = vmatprep.subr.bf16.mxu0 %v1432
        %1506 = vmatpush2.bf16.msra.mxu0 %v1431
        %1507 = vmatprep.subr.bf16.mxu0 %v1430
        %1508 = vmatpush2.bf16.msra.mxu0 %v1429
        %1509 = vmatprep.mubr.bf16.mxu0 %v1284
        %1510 = vmatmul.mubr.bf16.gmra.mxu0 %v1283
        %v1511 = vpop.f32.mrf.mxu0
        %v1512 = vadd.f32 0.0, %v1511
        %v1513 = vpop.f32.mrf.mxu0
        %v1514 = vadd.f32 0.0, %v1513
        %v1515 = vpop.f32.mrf.mxu0
        %v1516 = vpop.f32.mrf.mxu0
        %1517 = vdwg.mxu0
        %v1518 = vld [vmem:[#allocation2] sm:$0xff]
        %v1519 = vld [vmem:[#allocation2 + $0x8] sm:$0xff]
        %v1520 = vadd.f32 %v1518, %v1512
        %v1521 = vadd.f32 %v1519, %v1514
        %1522 = vst [vmem:[#allocation2] sm:$0xff] %v1520
        %1523 = vst [vmem:[#allocation2 + $0x8] sm:$0xff] %v1521
        %v1524 = vld [vmem:[#allocation6 + $0x18] sm:$0xff]
        %v1525 = vld [vmem:[#allocation6 + $0x38] sm:$0xff]
        %v1526 = vld [vmem:[#allocation6 + $0x58] sm:$0xff]
        %v1527 = vld [vmem:[#allocation6 + $0x78] sm:$0xff]
        %v1528 = vld [vmem:[#allocation6 + $0x98] sm:$0xff]
        %v1529 = vld [vmem:[#allocation6 + $0xb8] sm:$0xff]
        %v1530 = vld [vmem:[#allocation6 + $0xd8] sm:$0xff]
        %v1531 = vld [vmem:[#allocation6 + $0xf8] sm:$0xff]
        %v1532 = vld [vmem:[#allocation6 + $0x118] sm:$0xff]
        %v1533 = vld [vmem:[#allocation6 + $0x138] sm:$0xff]
        %v1534 = vld [vmem:[#allocation6 + $0x158] sm:$0xff]
        %v1535 = vld [vmem:[#allocation6 + $0x178] sm:$0xff]
        %v1536 = vld [vmem:[#allocation6 + $0x198] sm:$0xff]
        %v1537 = vld [vmem:[#allocation6 + $0x1b8] sm:$0xff]
        %v1538 = vld [vmem:[#allocation6 + $0x1d8] sm:$0xff]
        %v1539 = vld [vmem:[#allocation6 + $0x1f8] sm:$0xff]
        %v1540 = vld [vmem:[#allocation8 + $0x6] sm:$0x3]
        %v1542 = vlaneseq
        %v1543 = vshrl.u32 %v1542, 7
        %v1544 = vsub.s32 0, %v1543
        %v1545 = vrot.slane %v1540, %v1544
        %v1546 = vlaneseq
        %v1547 = vshrl.u32 %v1546, 7
        %v1548 = vsub.s32 1, %v1547
        %v1549 = vrot.slane %v1540, %v1548
        %v1568 = vunpack.c.l.b16 %v1524
        %v1569 = vunpack.c.h.b16 %v1524
        %v1570 = vunpack.c.l.b16 %v1525
        %v1571 = vunpack.c.h.b16 %v1525
        %v1572 = vunpack.c.l.b16 %v1526
        %v1573 = vunpack.c.h.b16 %v1526
        %v1574 = vunpack.c.l.b16 %v1527
        %v1575 = vunpack.c.h.b16 %v1527
        %v1576 = vunpack.c.l.b16 %v1528
        %v1577 = vunpack.c.h.b16 %v1528
        %v1578 = vunpack.c.l.b16 %v1529
        %v1579 = vunpack.c.h.b16 %v1529
        %v1580 = vunpack.c.l.b16 %v1530
        %v1581 = vunpack.c.h.b16 %v1530
        %v1582 = vunpack.c.l.b16 %v1531
        %v1583 = vunpack.c.h.b16 %v1531
        %v1584 = vunpack.c.l.b16 %v1532
        %v1585 = vunpack.c.h.b16 %v1532
        %v1586 = vunpack.c.l.b16 %v1533
        %v1587 = vunpack.c.h.b16 %v1533
        %v1588 = vunpack.c.l.b16 %v1534
        %v1589 = vunpack.c.h.b16 %v1534
        %v1590 = vunpack.c.l.b16 %v1535
        %v1591 = vunpack.c.h.b16 %v1535
        %v1592 = vunpack.c.l.b16 %v1536
        %v1593 = vunpack.c.h.b16 %v1536
        %v1594 = vunpack.c.l.b16 %v1537
        %v1595 = vunpack.c.h.b16 %v1537
        %v1596 = vunpack.c.l.b16 %v1538
        %v1597 = vunpack.c.h.b16 %v1538
        %v1598 = vunpack.c.l.b16 %v1539
        %v1599 = vunpack.c.h.b16 %v1539
        %v1600 = vpack.c.b16 %v1570, %v1568
        %v1601 = vpack.c.b16 %v1571, %v1569
        %v1602 = vpack.c.b16 %v1574, %v1572
        %v1603 = vpack.c.b16 %v1575, %v1573
        %v1604 = vpack.c.b16 %v1578, %v1576
        %v1605 = vpack.c.b16 %v1579, %v1577
        %v1606 = vpack.c.b16 %v1582, %v1580
        %v1607 = vpack.c.b16 %v1583, %v1581
        %v1608 = vpack.c.b16 %v1586, %v1584
        %v1609 = vpack.c.b16 %v1587, %v1585
        %v1610 = vpack.c.b16 %v1590, %v1588
        %v1611 = vpack.c.b16 %v1591, %v1589
        %v1612 = vpack.c.b16 %v1594, %v1592
        %v1613 = vpack.c.b16 %v1595, %v1593
        %v1614 = vpack.c.b16 %v1598, %v1596
        %v1615 = vpack.c.b16 %v1599, %v1597
        %1632 = vmatprep.subr.bf16.mxu0 %v1615
        %1633 = vmatpush1.bf16.msra.mxu0 %v1614
        %1634 = vmatprep.subr.bf16.mxu0 %v1613
        %1635 = vmatpush1.bf16.msra.mxu0 %v1612
        %1636 = vmatprep.subr.bf16.mxu0 %v1611
        %1637 = vmatpush1.bf16.msra.mxu0 %v1610
        %1638 = vmatprep.subr.bf16.mxu0 %v1609
        %1639 = vmatpush1.bf16.msra.mxu0 %v1608
        %1640 = vmatprep.subr.bf16.mxu0 %v1607
        %1641 = vmatpush1.bf16.msra.mxu0 %v1606
        %1642 = vmatprep.subr.bf16.mxu0 %v1605
        %1643 = vmatpush1.bf16.msra.mxu0 %v1604
        %1644 = vmatprep.subr.bf16.mxu0 %v1603
        %1645 = vmatpush1.bf16.msra.mxu0 %v1602
        %1646 = vmatprep.subr.bf16.mxu0 %v1601
        %1647 = vmatpush1.bf16.msra.mxu0 %v1600
        %1648 = vmatprep.subr.bf16.mxu0 0
        %1649 = vmatpush2.bf16.msra.mxu0 0
        %1650 = vmatprep.subr.bf16.mxu0 0
        %1651 = vmatpush2.bf16.msra.mxu0 0
        %1652 = vmatprep.subr.bf16.mxu0 0
        %1653 = vmatpush2.bf16.msra.mxu0 0
        %1654 = vmatprep.subr.bf16.mxu0 0
        %1655 = vmatpush2.bf16.msra.mxu0 0
        %1656 = vmatprep.subr.bf16.mxu0 0
        %1657 = vmatpush2.bf16.msra.mxu0 0
        %1658 = vmatprep.subr.bf16.mxu0 0
        %1659 = vmatpush2.bf16.msra.mxu0 0
        %1660 = vmatprep.subr.bf16.mxu0 0
        %1661 = vmatpush2.bf16.msra.mxu0 0
        %1662 = vmatprep.subr.bf16.mxu0 0
        %1663 = vmatpush2.bf16.msra.mxu0 0
        %1664 = vmatprep.mubr.bf16.mxu0 0
        %1665 = vmatmul.mubr.bf16.gmra.mxu0 %v351
        %v1666 = vpop.f32.mrf.mxu0
        %v1667 = vadd.f32 %v1545, %v1666
        %v1668 = vpop.f32.mrf.mxu0
        %v1669 = vadd.f32 %v1549, %v1668
        %v1670 = vpop.f32.mrf.mxu0
        %v1671 = vpop.f32.mrf.mxu0
        %1672 = vdwg.mxu0
        %v1673 = vmax.f32 %v1667, 0.0
        %v1674 = vmax.f32 %v1669, 0.0
        %v1675 = vpack.c.bf16 %v1673, %v1673
        %v1676 = vpack.c.bf16 %v1674, %v1674
        %v1677 = vld [vmem:[#allocation9 + $0x300] sm:$0xff]
        %v1678 = vld [vmem:[#allocation9 + $0x308] sm:$0xff]
        %v1679 = vld [vmem:[#allocation9 + $0x310] sm:$0xff]
        %v1680 = vld [vmem:[#allocation9 + $0x318] sm:$0xff]
        %v1681 = vld [vmem:[#allocation9 + $0x320] sm:$0xff]
        %v1682 = vld [vmem:[#allocation9 + $0x328] sm:$0xff]
        %v1683 = vld [vmem:[#allocation9 + $0x330] sm:$0xff]
        %v1684 = vld [vmem:[#allocation9 + $0x338] sm:$0xff]
        %v1685 = vld [vmem:[#allocation9 + $0x340] sm:$0xff]
        %v1686 = vld [vmem:[#allocation9 + $0x348] sm:$0xff]
        %v1687 = vld [vmem:[#allocation9 + $0x350] sm:$0xff]
        %v1688 = vld [vmem:[#allocation9 + $0x358] sm:$0xff]
        %v1689 = vld [vmem:[#allocation9 + $0x360] sm:$0xff]
        %v1690 = vld [vmem:[#allocation9 + $0x368] sm:$0xff]
        %v1691 = vld [vmem:[#allocation9 + $0x370] sm:$0xff]
        %v1692 = vld [vmem:[#allocation9 + $0x378] sm:$0xff]
        %v1693 = vld [vmem:[#allocation9 + $0x380] sm:$0xff]
        %v1694 = vld [vmem:[#allocation9 + $0x388] sm:$0xff]
        %v1695 = vld [vmem:[#allocation9 + $0x390] sm:$0xff]
        %v1696 = vld [vmem:[#allocation9 + $0x398] sm:$0xff]
        %v1697 = vld [vmem:[#allocation9 + $0x3a0] sm:$0xff]
        %v1698 = vld [vmem:[#allocation9 + $0x3a8] sm:$0xff]
        %v1699 = vld [vmem:[#allocation9 + $0x3b0] sm:$0xff]
        %v1700 = vld [vmem:[#allocation9 + $0x3b8] sm:$0xff]
        %v1701 = vld [vmem:[#allocation9 + $0x3c0] sm:$0xff]
        %v1702 = vld [vmem:[#allocation9 + $0x3c8] sm:$0xff]
        %v1703 = vld [vmem:[#allocation9 + $0x3d0] sm:$0xff]
        %v1704 = vld [vmem:[#allocation9 + $0x3d8] sm:$0xff]
        %v1705 = vld [vmem:[#allocation9 + $0x3e0] sm:$0xff]
        %v1706 = vld [vmem:[#allocation9 + $0x3e8] sm:$0xff]
        %v1707 = vld [vmem:[#allocation9 + $0x3f0] sm:$0xff]
        %v1708 = vld [vmem:[#allocation9 + $0x3f8] sm:$0xff]
        %v1741 = vunpack.c.l.b16 %v1677
        %v1742 = vunpack.c.h.b16 %v1677
        %v1743 = vunpack.c.l.b16 %v1678
        %v1744 = vunpack.c.h.b16 %v1678
        %v1745 = vunpack.c.l.b16 %v1679
        %v1746 = vunpack.c.h.b16 %v1679
        %v1747 = vunpack.c.l.b16 %v1680
        %v1748 = vunpack.c.h.b16 %v1680
        %v1749 = vunpack.c.l.b16 %v1681
        %v1750 = vunpack.c.h.b16 %v1681
        %v1751 = vunpack.c.l.b16 %v1682
        %v1752 = vunpack.c.h.b16 %v1682
        %v1753 = vunpack.c.l.b16 %v1683
        %v1754 = vunpack.c.h.b16 %v1683
        %v1755 = vunpack.c.l.b16 %v1684
        %v1756 = vunpack.c.h.b16 %v1684
        %v1757 = vunpack.c.l.b16 %v1685
        %v1758 = vunpack.c.h.b16 %v1685
        %v1759 = vunpack.c.l.b16 %v1686
        %v1760 = vunpack.c.h.b16 %v1686
        %v1761 = vunpack.c.l.b16 %v1687
        %v1762 = vunpack.c.h.b16 %v1687
        %v1763 = vunpack.c.l.b16 %v1688
        %v1764 = vunpack.c.h.b16 %v1688
        %v1765 = vunpack.c.l.b16 %v1689
        %v1766 = vunpack.c.h.b16 %v1689
        %v1767 = vunpack.c.l.b16 %v1690
        %v1768 = vunpack.c.h.b16 %v1690
        %v1769 = vunpack.c.l.b16 %v1691
        %v1770 = vunpack.c.h.b16 %v1691
        %v1771 = vunpack.c.l.b16 %v1692
        %v1772 = vunpack.c.h.b16 %v1692
        %v1773 = vunpack.c.l.b16 %v1693
        %v1774 = vunpack.c.h.b16 %v1693
        %v1775 = vunpack.c.l.b16 %v1694
        %v1776 = vunpack.c.h.b16 %v1694
        %v1777 = vunpack.c.l.b16 %v1695
        %v1778 = vunpack.c.h.b16 %v1695
        %v1779 = vunpack.c.l.b16 %v1696
        %v1780 = vunpack.c.h.b16 %v1696
        %v1781 = vunpack.c.l.b16 %v1697
        %v1782 = vunpack.c.h.b16 %v1697
        %v1783 = vunpack.c.l.b16 %v1698
        %v1784 = vunpack.c.h.b16 %v1698
        %v1785 = vunpack.c.l.b16 %v1699
        %v1786 = vunpack.c.h.b16 %v1699
        %v1787 = vunpack.c.l.b16 %v1700
        %v1788 = vunpack.c.h.b16 %v1700
        %v1789 = vunpack.c.l.b16 %v1701
        %v1790 = vunpack.c.h.b16 %v1701
        %v1791 = vunpack.c.l.b16 %v1702
        %v1792 = vunpack.c.h.b16 %v1702
        %v1793 = vunpack.c.l.b16 %v1703
        %v1794 = vunpack.c.h.b16 %v1703
        %v1795 = vunpack.c.l.b16 %v1704
        %v1796 = vunpack.c.h.b16 %v1704
        %v1797 = vunpack.c.l.b16 %v1705
        %v1798 = vunpack.c.h.b16 %v1705
        %v1799 = vunpack.c.l.b16 %v1706
        %v1800 = vunpack.c.h.b16 %v1706
        %v1801 = vunpack.c.l.b16 %v1707
        %v1802 = vunpack.c.h.b16 %v1707
        %v1803 = vunpack.c.l.b16 %v1708
        %v1804 = vunpack.c.h.b16 %v1708
        %v1805 = vpack.c.b16 %v1743, %v1741
        %v1806 = vpack.c.b16 %v1744, %v1742
        %v1807 = vpack.c.b16 %v1747, %v1745
        %v1808 = vpack.c.b16 %v1748, %v1746
        %v1809 = vpack.c.b16 %v1751, %v1749
        %v1810 = vpack.c.b16 %v1752, %v1750
        %v1811 = vpack.c.b16 %v1755, %v1753
        %v1812 = vpack.c.b16 %v1756, %v1754
        %v1813 = vpack.c.b16 %v1759, %v1757
        %v1814 = vpack.c.b16 %v1760, %v1758
        %v1815 = vpack.c.b16 %v1763, %v1761
        %v1816 = vpack.c.b16 %v1764, %v1762
        %v1817 = vpack.c.b16 %v1767, %v1765
        %v1818 = vpack.c.b16 %v1768, %v1766
        %v1819 = vpack.c.b16 %v1771, %v1769
        %v1820 = vpack.c.b16 %v1772, %v1770
        %v1821 = vpack.c.b16 %v1775, %v1773
        %v1822 = vpack.c.b16 %v1776, %v1774
        %v1823 = vpack.c.b16 %v1779, %v1777
        %v1824 = vpack.c.b16 %v1780, %v1778
        %v1825 = vpack.c.b16 %v1783, %v1781
        %v1826 = vpack.c.b16 %v1784, %v1782
        %v1827 = vpack.c.b16 %v1787, %v1785
        %v1828 = vpack.c.b16 %v1788, %v1786
        %v1829 = vpack.c.b16 %v1791, %v1789
        %v1830 = vpack.c.b16 %v1792, %v1790
        %v1831 = vpack.c.b16 %v1795, %v1793
        %v1832 = vpack.c.b16 %v1796, %v1794
        %v1833 = vpack.c.b16 %v1799, %v1797
        %v1834 = vpack.c.b16 %v1800, %v1798
        %v1835 = vpack.c.b16 %v1803, %v1801
        %v1836 = vpack.c.b16 %v1804, %v1802
        %1869 = vmatprep.subr.bf16.mxu0 %v1820
        %1870 = vmatpush1.bf16.msra.mxu0 %v1819
        %1871 = vmatprep.subr.bf16.mxu0 %v1818
        %1872 = vmatpush1.bf16.msra.mxu0 %v1817
        %1873 = vmatprep.subr.bf16.mxu0 %v1816
        %1874 = vmatpush1.bf16.msra.mxu0 %v1815
        %1875 = vmatprep.subr.bf16.mxu0 %v1814
        %1876 = vmatpush1.bf16.msra.mxu0 %v1813
        %1877 = vmatprep.subr.bf16.mxu0 %v1812
        %1878 = vmatpush1.bf16.msra.mxu0 %v1811
        %1879 = vmatprep.subr.bf16.mxu0 %v1810
        %1880 = vmatpush1.bf16.msra.mxu0 %v1809
        %1881 = vmatprep.subr.bf16.mxu0 %v1808
        %1882 = vmatpush1.bf16.msra.mxu0 %v1807
        %1883 = vmatprep.subr.bf16.mxu0 %v1806
        %1884 = vmatpush1.bf16.msra.mxu0 %v1805
        %1885 = vmatprep.subr.bf16.mxu0 %v1836
        %1886 = vmatpush2.bf16.msra.mxu0 %v1835
        %1887 = vmatprep.subr.bf16.mxu0 %v1834
        %1888 = vmatpush2.bf16.msra.mxu0 %v1833
        %1889 = vmatprep.subr.bf16.mxu0 %v1832
        %1890 = vmatpush2.bf16.msra.mxu0 %v1831
        %1891 = vmatprep.subr.bf16.mxu0 %v1830
        %1892 = vmatpush2.bf16.msra.mxu0 %v1829
        %1893 = vmatprep.subr.bf16.mxu0 %v1828
        %1894 = vmatpush2.bf16.msra.mxu0 %v1827
        %1895 = vmatprep.subr.bf16.mxu0 %v1826
        %1896 = vmatpush2.bf16.msra.mxu0 %v1825
        %1897 = vmatprep.subr.bf16.mxu0 %v1824
        %1898 = vmatpush2.bf16.msra.mxu0 %v1823
        %1899 = vmatprep.subr.bf16.mxu0 %v1822
        %1900 = vmatpush2.bf16.msra.mxu0 %v1821
        %1901 = vmatprep.mubr.bf16.mxu0 %v1676
        %1902 = vmatmul.mubr.bf16.gmra.mxu0 %v1675
        %v1903 = vpop.f32.mrf.mxu0
        %v1904 = vadd.f32 0.0, %v1903
        %v1905 = vpop.f32.mrf.mxu0
        %v1906 = vadd.f32 0.0, %v1905
        %v1907 = vpop.f32.mrf.mxu0
        %v1908 = vpop.f32.mrf.mxu0
        %1909 = vdwg.mxu0
        %v1910 = vld [vmem:[#allocation2] sm:$0xff]
        %v1911 = vld [vmem:[#allocation2 + $0x8] sm:$0xff]
        %v1912 = vadd.f32 %v1910, %v1904
        %v1913 = vadd.f32 %v1911, %v1906
        %1914 = vst [vmem:[#allocation2] sm:$0xff] %v1912
        %1915 = vst [vmem:[#allocation2 + $0x8] sm:$0xff] %v1913
        %v1916 = vld [vmem:[#allocation2] sm:$0xff]
        %v1917 = vld [vmem:[#allocation2 + $0x8] sm:$0xff]
        %v1918 = vld [vmem:[%s4] sm:$0x3]
        %v1920 = vlaneseq
        %v1921 = vshrl.u32 %v1920, 7
        %v1922 = vsub.s32 0, %v1921
        %v1923 = vrot.slane %v1918, %v1922
        %v1924 = vlaneseq
        %v1925 = vshrl.u32 %v1924, 7
        %v1926 = vsub.s32 1, %v1925
        %v1927 = vrot.slane %v1918, %v1926
        %v1930 = vadd.f32 %v1916, %v1923
        %v1931 = vadd.f32 %v1917, %v1927
        %v1932 = vmax.f32 %v1930, 0.0
        %v1933 = vmax.f32 %v1931, 0.0
        %v1934 = vpack.c.bf16 %v1932, %v1932
        %v1935 = vpack.c.bf16 %v1933, %v1933
        %v1936 = vld [vmem:[#allocation11] sm:$0xf]
        %v1937 = vld [vmem:[#allocation11 + $0x4] sm:$0xf]
        %v1938 = vld [vmem:[#allocation11 + $0x8] sm:$0xf]
        %v1939 = vld [vmem:[#allocation11 + $0xc] sm:$0xf]
        %v1940 = vld [vmem:[#allocation11 + $0x10] sm:$0xf]
        %v1941 = vld [vmem:[#allocation11 + $0x14] sm:$0xf]
        %v1942 = vld [vmem:[#allocation11 + $0x18] sm:$0xf]
        %v1943 = vld [vmem:[#allocation11 + $0x1c] sm:$0xf]
        %v1944 = vld [vmem:[#allocation11 + $0x20] sm:$0xf]
        %v1945 = vld [vmem:[#allocation11 + $0x24] sm:$0xf]
        %v1946 = vld [vmem:[#allocation11 + $0x28] sm:$0xf]
        %v1947 = vld [vmem:[#allocation11 + $0x2c] sm:$0xf]
        %v1948 = vld [vmem:[#allocation11 + $0x30] sm:$0xf]
        %v1949 = vld [vmem:[#allocation11 + $0x34] sm:$0xf]
        %v1950 = vld [vmem:[#allocation11 + $0x38] sm:$0xf]
        %v1951 = vld [vmem:[#allocation11 + $0x3c] sm:$0xf]
        %v1952 = vld [vmem:[#allocation11 + $0x40] sm:$0xf]
        %v1953 = vld [vmem:[#allocation11 + $0x44] sm:$0xf]
        %v1954 = vld [vmem:[#allocation11 + $0x48] sm:$0xf]
        %v1955 = vld [vmem:[#allocation11 + $0x4c] sm:$0xf]
        %v1956 = vld [vmem:[#allocation11 + $0x50] sm:$0xf]
        %v1957 = vld [vmem:[#allocation11 + $0x54] sm:$0xf]
        %v1958 = vld [vmem:[#allocation11 + $0x58] sm:$0xf]
        %v1959 = vld [vmem:[#allocation11 + $0x5c] sm:$0xf]
        %v1960 = vld [vmem:[#allocation11 + $0x60] sm:$0xf]
        %v1961 = vld [vmem:[#allocation11 + $0x64] sm:$0xf]
        %v1962 = vld [vmem:[#allocation11 + $0x68] sm:$0xf]
        %v1963 = vld [vmem:[#allocation11 + $0x6c] sm:$0xf]
        %v1964 = vld [vmem:[#allocation11 + $0x70] sm:$0xf]
        %v1965 = vld [vmem:[#allocation11 + $0x74] sm:$0xf]
        %v1966 = vld [vmem:[#allocation11 + $0x78] sm:$0xf]
        %v1967 = vld [vmem:[#allocation11 + $0x7c] sm:$0xf]
        %v1968 = vld [vmem:[%s6] sm:$0x1]
        %v1970 = vlaneseq
        %v1971 = vshrl.u32 %v1970, 7
        %v1972 = vsub.s32 0, %v1971
        %v1973 = vrot.slane %v1968, %v1972
        %v2007 = vunpack.c.l.b16 %v1936
        %v2008 = vunpack.c.l.b16 %v1937
        %v2009 = vunpack.c.l.b16 %v1938
        %v2010 = vunpack.c.l.b16 %v1939
        %v2011 = vunpack.c.l.b16 %v1940
        %v2012 = vunpack.c.l.b16 %v1941
        %v2013 = vunpack.c.l.b16 %v1942
        %v2014 = vunpack.c.l.b16 %v1943
        %v2015 = vunpack.c.l.b16 %v1944
        %v2016 = vunpack.c.l.b16 %v1945
        %v2017 = vunpack.c.l.b16 %v1946
        %v2018 = vunpack.c.l.b16 %v1947
        %v2019 = vunpack.c.l.b16 %v1948
        %v2020 = vunpack.c.l.b16 %v1949
        %v2021 = vunpack.c.l.b16 %v1950
        %v2022 = vunpack.c.l.b16 %v1951
        %v2023 = vunpack.c.l.b16 %v1952
        %v2024 = vunpack.c.l.b16 %v1953
        %v2025 = vunpack.c.l.b16 %v1954
        %v2026 = vunpack.c.l.b16 %v1955
        %v2027 = vunpack.c.l.b16 %v1956
        %v2028 = vunpack.c.l.b16 %v1957
        %v2029 = vunpack.c.l.b16 %v1958
        %v2030 = vunpack.c.l.b16 %v1959
        %v2031 = vunpack.c.l.b16 %v1960
        %v2032 = vunpack.c.l.b16 %v1961
        %v2033 = vunpack.c.l.b16 %v1962
        %v2034 = vunpack.c.l.b16 %v1963
        %v2035 = vunpack.c.l.b16 %v1964
        %v2036 = vunpack.c.l.b16 %v1965
        %v2037 = vunpack.c.l.b16 %v1966
        %v2038 = vunpack.c.l.b16 %v1967
        %v2039 = vpack.c.b16 %v2008, %v2007
        %v2040 = vpack.c.b16 %v2010, %v2009
        %v2041 = vpack.c.b16 %v2012, %v2011
        %v2042 = vpack.c.b16 %v2014, %v2013
        %v2043 = vpack.c.b16 %v2016, %v2015
        %v2044 = vpack.c.b16 %v2018, %v2017
        %v2045 = vpack.c.b16 %v2020, %v2019
        %v2046 = vpack.c.b16 %v2022, %v2021
        %v2047 = vpack.c.b16 %v2024, %v2023
        %v2048 = vpack.c.b16 %v2026, %v2025
        %v2049 = vpack.c.b16 %v2028, %v2027
        %v2050 = vpack.c.b16 %v2030, %v2029
        %v2051 = vpack.c.b16 %v2032, %v2031
        %v2052 = vpack.c.b16 %v2034, %v2033
        %v2053 = vpack.c.b16 %v2036, %v2035
        %v2054 = vpack.c.b16 %v2038, %v2037
        %2071 = vmatprep.subr.bf16.mxu0 0
        %2072 = vmatpush1.bf16.msra.mxu0 %v2046
        %2073 = vmatprep.subr.bf16.mxu0 0
        %2074 = vmatpush1.bf16.msra.mxu0 %v2045
        %2075 = vmatprep.subr.bf16.mxu0 0
        %2076 = vmatpush1.bf16.msra.mxu0 %v2044
        %2077 = vmatprep.subr.bf16.mxu0 0
        %2078 = vmatpush1.bf16.msra.mxu0 %v2043
        %2079 = vmatprep.subr.bf16.mxu0 0
        %2080 = vmatpush1.bf16.msra.mxu0 %v2042
        %2081 = vmatprep.subr.bf16.mxu0 0
        %2082 = vmatpush1.bf16.msra.mxu0 %v2041
        %2083 = vmatprep.subr.bf16.mxu0 0
        %2084 = vmatpush1.bf16.msra.mxu0 %v2040
        %2085 = vmatprep.subr.bf16.mxu0 0
        %2086 = vmatpush1.bf16.msra.mxu0 %v2039
        %2087 = vmatprep.subr.bf16.mxu0 0
        %2088 = vmatpush2.bf16.msra.mxu0 %v2054
        %2089 = vmatprep.subr.bf16.mxu0 0
        %2090 = vmatpush2.bf16.msra.mxu0 %v2053
        %2091 = vmatprep.subr.bf16.mxu0 0
        %2092 = vmatpush2.bf16.msra.mxu0 %v2052
        %2093 = vmatprep.subr.bf16.mxu0 0
        %2094 = vmatpush2.bf16.msra.mxu0 %v2051
        %2095 = vmatprep.subr.bf16.mxu0 0
        %2096 = vmatpush2.bf16.msra.mxu0 %v2050
        %2097 = vmatprep.subr.bf16.mxu0 0
        %2098 = vmatpush2.bf16.msra.mxu0 %v2049
        %2099 = vmatprep.subr.bf16.mxu0 0
        %2100 = vmatpush2.bf16.msra.mxu0 %v2048
        %2101 = vmatprep.subr.bf16.mxu0 0
        %2102 = vmatpush2.bf16.msra.mxu0 %v2047
        %2103 = vmatprep.mubr.bf16.mxu0 %v1935
        %2104 = vmatmul.mubr.bf16.gmra.mxu0 %v1934
        %v2105 = vpop.f32.mrf.mxu0
        %v2106 = vadd.f32 %v1973, %v2105
        %v2107 = vpop.f32.mrf.mxu0
        %v2108 = vpop.f32.mrf.mxu0
        %v2109 = vpop.f32.mrf.mxu0
        %2110 = vdwg.mxu0
        %v2111 = vpack.c.bf16 %v2106, %v2106
        %2112 = vst [vmem:[%s349] sm:$0xf] %v2111
        %s2113 = sand.u32 %s186, 1
        %s2114 = scalar_lea.sflag [#allocation5], %s2113
        %s2115 = sand.u32 %s186, 1
        %s2116 = smul.addr %s2115, 4
        %s2117 = scalar_lea.vmem [#allocation12], %s2116
        // Predicated region
        $region69: #{tpu_custom_call.1} parent=47 // pred_check
          %p2118 = pneg %p196
        $region70: #{tpu_custom_call.1} parent=47 // pred_check_branch
          %2120 = sbr.rel (%p2118) target = $region72
        $region71: #{tpu_custom_call.1} parent=47 // pred_region
          %s2122 = ssub.s32 64, 64
          %2123 = vsyncadd %s2114, %s2122
          %s2124 = smul.addr %s26, 64
          %s2125 = scalar_lea.hbm %s7, %s2124
          %s2127 = sshll.u32 %s2117, 4
          %s2128 = int_to_ptr.vmem [resolvable:$true] %s2127
          %2130 = dma.vmem_to_hbm [thread:$0]  %s2128, 64, %s2125, %s2114
        $region72: #{tpu_custom_call.1} parent=47 // pred_fallthru
          _
      $region48: #{tpu_custom_call.1} parent=5 // pred_fallthru
        _
      %p2131 = scmp.le.s32.totalorder 2, %s21
      // Predicated region
      $region73: #{tpu_custom_call.1} parent=5 // pred_check
        %p2132 = pneg %p2131
      $region74: #{tpu_custom_call.1} parent=5 // pred_check_branch
        %2134 = sbr.rel (%p2132) target = $region76
      $region75: #{tpu_custom_call.1} parent=5 // pred_region
        %s2135 = ssub.s32 %s21, 2
        // Predicated region
        $region77: #{tpu_custom_call.1} parent=75 // pred_check
          %p2136 = pneg %p202
        $region78: #{tpu_custom_call.1} parent=75 // pred_check_branch
          %2138 = sbr.rel (%p2136) target = $region80
        $region79: #{tpu_custom_call.1} parent=75 // pred_region
          %s2139 = sand.u32 %s187, 1
          %s2140 = scalar_lea.sflag [#allocation5], %s2139
          %s2141 = sand.u32 %s187, 1
          %s2142 = smul.addr %s2141, 4
          %s2143 = scalar_lea.vmem [#allocation12], %s2142
          %2144 = dma.done %s2140, 64
        $region80: #{tpu_custom_call.1} parent=75 // pred_fallthru
          _
      $region76: #{tpu_custom_call.1} parent=5 // pred_fallthru
        _
    $region6: #{tpu_custom_call.1} parent=1 // loop_footer
      %s25 = sadd.s32 1, %s21
    $region7: #{tpu_custom_call.1} parent=1 // loop_footer_branch
      %20 = sbr.rel target = $region3
    $region8: #{tpu_custom_call.1} parent=1 // loop_exit
      _
    %2145 = vsyncpa [#allocation4], 1
    %s2146 = scalar_lea.sflag [#allocation4], 1
    %2147 = vsyncpa %s2146, 1
    %2148 = vsyncpa [#allocation7], 1
    %2149 = vsyncpa [#allocation10], 1
    %2150 = vsyncpa [#allocation5], 1
    %s2151 = scalar_lea.sflag [#allocation5], 1
    %2152 = vsyncpa %s2151, 1

</llo_original>
